<compile_context>
chip_gen: v7x
topology: tpu7x:2x2x1
jax: 0.10.0
libtpu: 0.0.40
codegen_flags: <defaults>
</compile_context>

<pallas_src>
import math
import jax
import jax.numpy as jnp
from jax.experimental import pallas as pl
from jax.experimental.pallas import tpu as pltpu

# ----- small synthetic BERT config ------------------------------------------
B, S, H = 2, 8, 32          # batch, seq len, hidden size
NH = 4                      # attention heads
DH = H // NH                # head dim
L = 2                       # encoder layers
I = 64                      # intermediate (FFN) size
VOCAB, MAXPOS, NTYPES = 100, 16, 2
EPS = 1e-12                 # BERT LayerNorm eps
NEG_INF = -1e9              # additive mask value (f32 activations)
BS = B * S                  # flattened token count


def _layernorm(x, g, b):
    mu = jnp.mean(x, axis=-1, keepdims=True)
    var = jnp.mean((x - mu) ** 2, axis=-1, keepdims=True)
    return (x - mu) * jax.lax.rsqrt(var + EPS) * g + b


def _gelu(x):
    # TODO(synk): HF BERT uses exact erf-GELU; tanh approximation used here.
    c = math.sqrt(2.0 / math.pi)
    return 0.5 * x * (1.0 + jnp.tanh(c * (x + 0.044715 * x * x * x)))


def bert_pool_kernel(x_ref, bias_ref, pmat_ref,
                     emb_g_ref, emb_b_ref,
                     wqkv_ref, bqkv_ref, wo_ref, bo_ref, ln1g_ref, ln1b_ref,
                     wi_ref, bi_ref, wo2_ref, bo2_ref, ln2g_ref, ln2b_ref,
                     wc_ref, bc_ref,
                     out_ref):
    # Single program: whole (BS, H) activation slab resident in VMEM.
    x = _layernorm(x_ref[...], emb_g_ref[...], emb_b_ref[...])      # (BS, H)
    bias = bias_ref[...]                                            # (BS, BS)
    scale = 1.0 / math.sqrt(DH)

    for l in range(L):                       # static unrolled layer loop
        # fused QKV projection: one (BS,H)x(H,3H) MXU push instead of three
        qkv = jnp.dot(x, wqkv_ref[l],
                      preferred_element_type=jnp.float32) + bqkv_ref[l]   # (BS, 3H)

        ctx_heads = []
        for h in range(NH):                  # static head loop, plain 2-D dots
            q = qkv[:, h * DH:(h + 1) * DH]                     # (BS, DH)
            k = qkv[:, H + h * DH:H + (h + 1) * DH]             # (BS, DH)
            v = qkv[:, 2 * H + h * DH:2 * H + (h + 1) * DH]     # (BS, DH)
            # block-diagonal bias keeps attention inside each batch element
            # and masks padded keys (== BERT extended attention mask).
            sc = jnp.dot(q, k.T, preferred_element_type=jnp.float32) * scale + bias
            sc = sc - jnp.max(sc, axis=-1, keepdims=True)
            p = jnp.exp(sc)
            p = p * pl.reciprocal(jnp.sum(p, axis=-1, keepdims=True), approx=True)
            ctx_heads.append(jnp.dot(p, v, preferred_element_type=jnp.float32))
        ctx = jnp.concatenate(ctx_heads, axis=-1)               # (BS, H)

        attn_out = jnp.dot(ctx, wo_ref[l],
                           preferred_element_type=jnp.float32) + bo_ref[l]
        x = _layernorm(x + attn_out, ln1g_ref[l], ln1b_ref[l])

        ff = jnp.dot(x, wi_ref[l], preferred_element_type=jnp.float32) + bi_ref[l]
        ff = _gelu(ff)
        ff = jnp.dot(ff, wo2_ref[l], preferred_element_type=jnp.float32) + bo2_ref[l]
        x = _layernorm(x + ff, ln2g_ref[l], ln2b_ref[l])

    # masked mean pooling as an MXU matmul (no cross-sublane reduction)
    pmat = pmat_ref[...]                                        # (B, BS)
    pooled_sum = jnp.dot(pmat, x, preferred_element_type=jnp.float32)   # (B, H)
    denom = jnp.sum(pmat, axis=-1, keepdims=True)               # (B, 1) = mask.sum(-1)
    # NOTE: like the PyTorch reference, an all-padding row would divide by 0.
    pooled = pooled_sum * pl.reciprocal(denom, approx=True)

    # classifier (lane-dense (1, H) weight) + sigmoid
    logit = jnp.sum(pooled * wc_ref[...], axis=-1, keepdims=True) + bc_ref[...]  # (B, 1)
    # exact sigmoid for the 2 output values (keeps probs strictly in [0, 1])
    out_ref[...] = 1.0 / (1.0 + jnp.exp(-logit))


def model_forward(src, seg, mask_src, params):
    """src, seg, mask_src: int32 (B, S).  Returns float32 (B,) probabilities."""
    mask_f = mask_src.astype(jnp.float32)                       # (B, S)

    # --- embedding gathers (glue, plain JAX) ---
    x = (params["word_emb"][src]
         + params["pos_emb"][jnp.arange(S)][None, :, :]
         + params["type_emb"][seg]).astype(jnp.float32)         # (B, S, H)
    x = x.reshape(BS, H)

    # block-diagonal additive attention bias over flattened tokens:
    # key j is visible to query i iff same batch element AND mask[j] == 1.
    batch_id = jnp.repeat(jnp.arange(B), S)                     # (BS,)
    same = (batch_id[:, None] == batch_id[None, :]).astype(jnp.float32)
    key_ok = same * mask_f.reshape(BS)[None, :]
    attn_bias = (1.0 - key_ok) * NEG_INF                        # (BS, BS)

    # block-diagonal pooling matrix: pool_mat[b, b*S + s] = mask[b, s]
    pool_mat = (jnp.eye(B, dtype=jnp.float32)[:, :, None]
                * mask_f[None, :, :]).reshape(B, BS)            # (B, BS)

    out = pl.pallas_call(
        bert_pool_kernel,
        out_shape=jax.ShapeDtypeStruct((B, 1), jnp.float32),
        # no grid: single program, all operands fully resident in VMEM
    )(x, attn_bias, pool_mat,
      params["emb_g"], params["emb_b"],
      params["wqkv"], params["bqkv"], params["wo"], params["bo"],
      params["ln1g"], params["ln1b"],
      params["wi"], params["bi"], params["wo2"], params["bo2"],
      params["ln2g"], params["ln2b"],
      params["wc"], params["bc"])

    return out.reshape(B)   # matches .squeeze() -> (B,) probabilities


def init_params(key):
    ks = jax.random.split(key, 8)
    n = lambda k, shape: (0.02 * jax.random.normal(k, shape)).astype(jnp.float32)
    return {
        "word_emb": n(ks[0], (VOCAB, H)),
        "pos_emb":  n(ks[1], (MAXPOS, H)),
        "type_emb": n(ks[2], (NTYPES, H)),
        "emb_g": jnp.ones((1, H), jnp.float32),
        "emb_b": jnp.zeros((1, H), jnp.float32),
        # fused QKV weights: (L, H, 3H) = [Wq | Wk | Wv]
        "wqkv": n(ks[3], (L, H, 3 * H)),
        "bqkv": jnp.zeros((L, 1, 3 * H), jnp.float32),
        "wo": n(ks[4], (L, H, H)), "bo": jnp.zeros((L, 1, H), jnp.float32),
        "ln1g": jnp.ones((L, 1, H), jnp.float32),
        "ln1b": jnp.zeros((L, 1, H), jnp.float32),
        "wi": n(ks[5], (L, H, I)), "bi": jnp.zeros((L, 1, I), jnp.float32),
        "wo2": n(ks[6], (L, I, H)), "bo2": jnp.zeros((L, 1, H), jnp.float32),
        "ln2g": jnp.ones((L, 1, H), jnp.float32),
        "ln2b": jnp.zeros((L, 1, H), jnp.float32),
        # classifier weight stored lane-dense as (1, H)
        "wc": n(ks[7], (1, H)),
        "bc": jnp.zeros((1, 1), jnp.float32),
    }


if __name__ == "__main__":
    key = jax.random.PRNGKey(0)
    kp, ks, kt = jax.random.split(key, 3)

    params = init_params(kp)

    # token ids; last two positions of each row are padding (id 0),
    # mirroring `mask_src = 0 + (src != 0)` from the Batch class.
    src = jax.random.randint(ks, (B, S), 1, VOCAB, dtype=jnp.int32)
    src = src.at[:, -2:].set(0)
    seg = jnp.zeros((B, S), jnp.int32)
    mask_src = (src != 0).astype(jnp.int32)

    probs = jax.block_until_ready(model_forward(src, seg, mask_src, params))
    assert probs.shape == (B,)
    assert bool(jnp.all((probs >= 0.0) & (probs <= 1.0)))
    print("KERNEL_OK")
</pallas_src>

<mosaic_0001>
module attributes {stable_mosaic.version = 11 : i64} {
  func.func @bert_pool_kernel(%arg0: memref<16x32xf32, #tpu.memory_space<vmem>>, %arg1: memref<16x16xf32, #tpu.memory_space<vmem>>, %arg2: memref<2x16xf32, #tpu.memory_space<vmem>>, %arg3: memref<1x32xf32, #tpu.memory_space<vmem>>, %arg4: memref<1x32xf32, #tpu.memory_space<vmem>>, %arg5: memref<2x32x96xf32, #tpu.memory_space<vmem>>, %arg6: memref<2x1x96xf32, #tpu.memory_space<vmem>>, %arg7: memref<2x32x32xf32, #tpu.memory_space<vmem>>, %arg8: memref<2x1x32xf32, #tpu.memory_space<vmem>>, %arg9: memref<2x1x32xf32, #tpu.memory_space<vmem>>, %arg10: memref<2x1x32xf32, #tpu.memory_space<vmem>>, %arg11: memref<2x32x64xf32, #tpu.memory_space<vmem>>, %arg12: memref<2x1x64xf32, #tpu.memory_space<vmem>>, %arg13: memref<2x64x32xf32, #tpu.memory_space<vmem>>, %arg14: memref<2x1x32xf32, #tpu.memory_space<vmem>>, %arg15: memref<2x1x32xf32, #tpu.memory_space<vmem>>, %arg16: memref<2x1x32xf32, #tpu.memory_space<vmem>>, %arg17: memref<1x32xf32, #tpu.memory_space<vmem>>, %arg18: memref<1x1xf32, #tpu.memory_space<vmem>>, %arg19: memref<2x1xf32, #tpu.memory_space<vmem>>) attributes {dimension_semantics = [], scalar_prefetch = 0 : i64, scratch_operands = 0 : i64, tpu.core_type = #tpu.core_type<tc>} {
    %c0 = arith.constant 0 : index
    %c0_0 = arith.constant 0 : index
    %0 = vector.load %arg0[%c0, %c0_0] : memref<16x32xf32, #tpu.memory_space<vmem>>, vector<16x32xf32>
    %c0_1 = arith.constant 0 : index
    %c0_2 = arith.constant 0 : index
    %1 = vector.load %arg3[%c0_1, %c0_2] : memref<1x32xf32, #tpu.memory_space<vmem>>, vector<1x32xf32>
    %c0_3 = arith.constant 0 : index
    %c0_4 = arith.constant 0 : index
    %2 = vector.load %arg4[%c0_3, %c0_4] : memref<1x32xf32, #tpu.memory_space<vmem>>, vector<1x32xf32>
    %cst = arith.constant dense<0.000000e+00> : vector<16xf32>
    %3 = vector.multi_reduction <add>, %0, %cst [1] : vector<16x32xf32> to vector<16xf32>
    %4 = vector.shape_cast %3 : vector<16xf32> to vector<16x1xf32>
    %cst_5 = arith.constant 3.200000e+01 : f32
    %5 = vector.broadcast %cst_5 : f32 to vector<16x1xf32>
    %6 = arith.divf %4, %5 : vector<16x1xf32>
    %7 = vector.broadcast %6 : vector<16x1xf32> to vector<16x32xf32>
    %8 = arith.subf %0, %7 : vector<16x32xf32>
    %9 = arith.mulf %8, %8 : vector<16x32xf32>
    %cst_6 = arith.constant dense<0.000000e+00> : vector<16xf32>
    %10 = vector.multi_reduction <add>, %9, %cst_6 [1] : vector<16x32xf32> to vector<16xf32>
    %11 = vector.shape_cast %10 : vector<16xf32> to vector<16x1xf32>
    %cst_7 = arith.constant 3.200000e+01 : f32
    %12 = vector.broadcast %cst_7 : f32 to vector<16x1xf32>
    %13 = arith.divf %11, %12 : vector<16x1xf32>
    %14 = vector.broadcast %6 : vector<16x1xf32> to vector<16x32xf32>
    %15 = arith.subf %0, %14 : vector<16x32xf32>
    %cst_8 = arith.constant 9.99999996E-13 : f32
    %16 = vector.broadcast %cst_8 : f32 to vector<16x1xf32>
    %17 = arith.addf %13, %16 : vector<16x1xf32>
    %18 = math.rsqrt %17 : vector<16x1xf32>
    %19 = vector.broadcast %18 : vector<16x1xf32> to vector<16x32xf32>
    %20 = arith.mulf %15, %19 : vector<16x32xf32>
    %21 = vector.broadcast %1 : vector<1x32xf32> to vector<16x32xf32>
    %22 = arith.mulf %20, %21 : vector<16x32xf32>
    %23 = vector.broadcast %2 : vector<1x32xf32> to vector<16x32xf32>
    %24 = arith.addf %22, %23 : vector<16x32xf32>
    %c0_9 = arith.constant 0 : index
    %c0_10 = arith.constant 0 : index
    %25 = vector.load %arg1[%c0_9, %c0_10] : memref<16x16xf32, #tpu.memory_space<vmem>>, vector<16x16xf32>
    %c0_11 = arith.constant 0 : index
    %c0_12 = arith.constant 0 : index
    %c0_13 = arith.constant 0 : index
    %26 = vector.load %arg5[%c0_11, %c0_12, %c0_13] : memref<2x32x96xf32, #tpu.memory_space<vmem>>, vector<1x32x96xf32>
    %27 = vector.shape_cast %26 : vector<1x32x96xf32> to vector<32x96xf32>
    %cst_14 = arith.constant dense<0.000000e+00> : vector<16x96xf32>
    %28 = tpu.matmul %24, %27, %cst_14 {dimension_numbers = #tpu.dot_dimension_numbers<[1], [0], [0], [1], [0, 0, 1, 1], [], []>} : vector<16x32xf32>, vector<32x96xf32>, vector<16x96xf32> -> vector<16x96xf32>
    %c0_15 = arith.constant 0 : index
    %c0_16 = arith.constant 0 : index
    %c0_17 = arith.constant 0 : index
    %29 = vector.load %arg6[%c0_15, %c0_16, %c0_17] : memref<2x1x96xf32, #tpu.memory_space<vmem>>, vector<1x1x96xf32>
    %30 = vector.shape_cast %29 : vector<1x1x96xf32> to vector<1x96xf32>
    %31 = vector.broadcast %30 : vector<1x96xf32> to vector<16x96xf32>
    %32 = arith.addf %28, %31 : vector<16x96xf32>
    %33 = vector.extract_strided_slice %32 {offsets = [0, 0], sizes = [16, 8], strides = [1, 1]} : vector<16x96xf32> to vector<16x8xf32>
    %34 = vector.extract_strided_slice %32 {offsets = [0, 32], sizes = [16, 8], strides = [1, 1]} : vector<16x96xf32> to vector<16x8xf32>
    %35 = vector.extract_strided_slice %32 {offsets = [0, 64], sizes = [16, 8], strides = [1, 1]} : vector<16x96xf32> to vector<16x8xf32>
    %36 = tpu.transpose %34, [1, 0] : vector<16x8xf32> -> vector<8x16xf32>
    %cst_18 = arith.constant dense<0.000000e+00> : vector<16x16xf32>
    %37 = tpu.matmul %33, %36, %cst_18 {dimension_numbers = #tpu.dot_dimension_numbers<[1], [0], [0], [1], [0, 0, 1, 1], [], []>} : vector<16x8xf32>, vector<8x16xf32>, vector<16x16xf32> -> vector<16x16xf32>
    %cst_19 = arith.constant 0.353553385 : f32
    %38 = vector.broadcast %cst_19 : f32 to vector<16x16xf32>
    %39 = arith.mulf %37, %38 : vector<16x16xf32>
    %40 = arith.addf %39, %25 : vector<16x16xf32>
    %cst_20 = arith.constant dense<0xFF800000> : vector<16xf32>
    %41 = vector.multi_reduction <maximumf>, %40, %cst_20 [1] : vector<16x16xf32> to vector<16xf32>
    %42 = vector.shape_cast %41 : vector<16xf32> to vector<16x1xf32>
    %43 = vector.broadcast %42 : vector<16x1xf32> to vector<16x16xf32>
    %44 = arith.subf %40, %43 : vector<16x16xf32>
    %45 = math.exp %44 : vector<16x16xf32>
    %cst_21 = arith.constant dense<0.000000e+00> : vector<16xf32>
    %46 = vector.multi_reduction <add>, %45, %cst_21 [1] : vector<16x16xf32> to vector<16xf32>
    %47 = vector.shape_cast %46 : vector<16xf32> to vector<16x1xf32>
    %48 = tpu.reciprocal %47 {approx = true} : vector<16x1xf32> -> vector<16x1xf32>
    %49 = vector.broadcast %48 : vector<16x1xf32> to vector<16x16xf32>
    %50 = arith.mulf %45, %49 : vector<16x16xf32>
    %cst_22 = arith.constant dense<0.000000e+00> : vector<16x8xf32>
    %51 = tpu.matmul %50, %35, %cst_22 {dimension_numbers = #tpu.dot_dimension_numbers<[1], [0], [0], [1], [0, 0, 1, 1], [], []>} : vector<16x16xf32>, vector<16x8xf32>, vector<16x8xf32> -> vector<16x8xf32>
    %52 = vector.extract_strided_slice %32 {offsets = [0, 8], sizes = [16, 8], strides = [1, 1]} : vector<16x96xf32> to vector<16x8xf32>
    %53 = vector.extract_strided_slice %32 {offsets = [0, 40], sizes = [16, 8], strides = [1, 1]} : vector<16x96xf32> to vector<16x8xf32>
    %54 = vector.extract_strided_slice %32 {offsets = [0, 72], sizes = [16, 8], strides = [1, 1]} : vector<16x96xf32> to vector<16x8xf32>
    %55 = tpu.transpose %53, [1, 0] : vector<16x8xf32> -> vector<8x16xf32>
    %cst_23 = arith.constant dense<0.000000e+00> : vector<16x16xf32>
    %56 = tpu.matmul %52, %55, %cst_23 {dimension_numbers = #tpu.dot_dimension_numbers<[1], [0], [0], [1], [0, 0, 1, 1], [], []>} : vector<16x8xf32>, vector<8x16xf32>, vector<16x16xf32> -> vector<16x16xf32>
    %cst_24 = arith.constant 0.353553385 : f32
    %57 = vector.broadcast %cst_24 : f32 to vector<16x16xf32>
    %58 = arith.mulf %56, %57 : vector<16x16xf32>
    %59 = arith.addf %58, %25 : vector<16x16xf32>
    %cst_25 = arith.constant dense<0xFF800000> : vector<16xf32>
    %60 = vector.multi_reduction <maximumf>, %59, %cst_25 [1] : vector<16x16xf32> to vector<16xf32>
    %61 = vector.shape_cast %60 : vector<16xf32> to vector<16x1xf32>
    %62 = vector.broadcast %61 : vector<16x1xf32> to vector<16x16xf32>
    %63 = arith.subf %59, %62 : vector<16x16xf32>
    %64 = math.exp %63 : vector<16x16xf32>
    %cst_26 = arith.constant dense<0.000000e+00> : vector<16xf32>
    %65 = vector.multi_reduction <add>, %64, %cst_26 [1] : vector<16x16xf32> to vector<16xf32>
    %66 = vector.shape_cast %65 : vector<16xf32> to vector<16x1xf32>
    %67 = tpu.reciprocal %66 {approx = true} : vector<16x1xf32> -> vector<16x1xf32>
    %68 = vector.broadcast %67 : vector<16x1xf32> to vector<16x16xf32>
    %69 = arith.mulf %64, %68 : vector<16x16xf32>
    %cst_27 = arith.constant dense<0.000000e+00> : vector<16x8xf32>
    %70 = tpu.matmul %69, %54, %cst_27 {dimension_numbers = #tpu.dot_dimension_numbers<[1], [0], [0], [1], [0, 0, 1, 1], [], []>} : vector<16x16xf32>, vector<16x8xf32>, vector<16x8xf32> -> vector<16x8xf32>
    %71 = vector.extract_strided_slice %32 {offsets = [0, 16], sizes = [16, 8], strides = [1, 1]} : vector<16x96xf32> to vector<16x8xf32>
    %72 = vector.extract_strided_slice %32 {offsets = [0, 48], sizes = [16, 8], strides = [1, 1]} : vector<16x96xf32> to vector<16x8xf32>
    %73 = vector.extract_strided_slice %32 {offsets = [0, 80], sizes = [16, 8], strides = [1, 1]} : vector<16x96xf32> to vector<16x8xf32>
    %74 = tpu.transpose %72, [1, 0] : vector<16x8xf32> -> vector<8x16xf32>
    %cst_28 = arith.constant dense<0.000000e+00> : vector<16x16xf32>
    %75 = tpu.matmul %71, %74, %cst_28 {dimension_numbers = #tpu.dot_dimension_numbers<[1], [0], [0], [1], [0, 0, 1, 1], [], []>} : vector<16x8xf32>, vector<8x16xf32>, vector<16x16xf32> -> vector<16x16xf32>
    %cst_29 = arith.constant 0.353553385 : f32
    %76 = vector.broadcast %cst_29 : f32 to vector<16x16xf32>
    %77 = arith.mulf %75, %76 : vector<16x16xf32>
    %78 = arith.addf %77, %25 : vector<16x16xf32>
    %cst_30 = arith.constant dense<0xFF800000> : vector<16xf32>
    %79 = vector.multi_reduction <maximumf>, %78, %cst_30 [1] : vector<16x16xf32> to vector<16xf32>
    %80 = vector.shape_cast %79 : vector<16xf32> to vector<16x1xf32>
    %81 = vector.broadcast %80 : vector<16x1xf32> to vector<16x16xf32>
    %82 = arith.subf %78, %81 : vector<16x16xf32>
    %83 = math.exp %82 : vector<16x16xf32>
    %cst_31 = arith.constant dense<0.000000e+00> : vector<16xf32>
    %84 = vector.multi_reduction <add>, %83, %cst_31 [1] : vector<16x16xf32> to vector<16xf32>
    %85 = vector.shape_cast %84 : vector<16xf32> to vector<16x1xf32>
    %86 = tpu.reciprocal %85 {approx = true} : vector<16x1xf32> -> vector<16x1xf32>
    %87 = vector.broadcast %86 : vector<16x1xf32> to vector<16x16xf32>
    %88 = arith.mulf %83, %87 : vector<16x16xf32>
    %cst_32 = arith.constant dense<0.000000e+00> : vector<16x8xf32>
    %89 = tpu.matmul %88, %73, %cst_32 {dimension_numbers = #tpu.dot_dimension_numbers<[1], [0], [0], [1], [0, 0, 1, 1], [], []>} : vector<16x16xf32>, vector<16x8xf32>, vector<16x8xf32> -> vector<16x8xf32>
    %90 = vector.extract_strided_slice %32 {offsets = [0, 24], sizes = [16, 8], strides = [1, 1]} : vector<16x96xf32> to vector<16x8xf32>
    %91 = vector.extract_strided_slice %32 {offsets = [0, 56], sizes = [16, 8], strides = [1, 1]} : vector<16x96xf32> to vector<16x8xf32>
    %92 = vector.extract_strided_slice %32 {offsets = [0, 88], sizes = [16, 8], strides = [1, 1]} : vector<16x96xf32> to vector<16x8xf32>
    %93 = tpu.transpose %91, [1, 0] : vector<16x8xf32> -> vector<8x16xf32>
    %cst_33 = arith.constant dense<0.000000e+00> : vector<16x16xf32>
    %94 = tpu.matmul %90, %93, %cst_33 {dimension_numbers = #tpu.dot_dimension_numbers<[1], [0], [0], [1], [0, 0, 1, 1], [], []>} : vector<16x8xf32>, vector<8x16xf32>, vector<16x16xf32> -> vector<16x16xf32>
    %cst_34 = arith.constant 0.353553385 : f32
    %95 = vector.broadcast %cst_34 : f32 to vector<16x16xf32>
    %96 = arith.mulf %94, %95 : vector<16x16xf32>
    %97 = arith.addf %96, %25 : vector<16x16xf32>
    %cst_35 = arith.constant dense<0xFF800000> : vector<16xf32>
    %98 = vector.multi_reduction <maximumf>, %97, %cst_35 [1] : vector<16x16xf32> to vector<16xf32>
    %99 = vector.shape_cast %98 : vector<16xf32> to vector<16x1xf32>
    %100 = vector.broadcast %99 : vector<16x1xf32> to vector<16x16xf32>
    %101 = arith.subf %97, %100 : vector<16x16xf32>
    %102 = math.exp %101 : vector<16x16xf32>
    %cst_36 = arith.constant dense<0.000000e+00> : vector<16xf32>
    %103 = vector.multi_reduction <add>, %102, %cst_36 [1] : vector<16x16xf32> to vector<16xf32>
    %104 = vector.shape_cast %103 : vector<16xf32> to vector<16x1xf32>
    %105 = tpu.reciprocal %104 {approx = true} : vector<16x1xf32> -> vector<16x1xf32>
    %106 = vector.broadcast %105 : vector<16x1xf32> to vector<16x16xf32>
    %107 = arith.mulf %102, %106 : vector<16x16xf32>
    %cst_37 = arith.constant dense<0.000000e+00> : vector<16x8xf32>
    %108 = tpu.matmul %107, %92, %cst_37 {dimension_numbers = #tpu.dot_dimension_numbers<[1], [0], [0], [1], [0, 0, 1, 1], [], []>} : vector<16x16xf32>, vector<16x8xf32>, vector<16x8xf32> -> vector<16x8xf32>
    %109 = tpu.concatenate %51, %70, %89, %108 in 1 : vector<16x8xf32>, vector<16x8xf32>, vector<16x8xf32>, vector<16x8xf32> -> vector<16x32xf32>
    %c0_38 = arith.constant 0 : index
    %c0_39 = arith.constant 0 : index
    %c0_40 = arith.constant 0 : index
    %110 = vector.load %arg7[%c0_38, %c0_39, %c0_40] : memref<2x32x32xf32, #tpu.memory_space<vmem>>, vector<1x32x32xf32>
    %111 = vector.shape_cast %110 : vector<1x32x32xf32> to vector<32x32xf32>
    %cst_41 = arith.constant dense<0.000000e+00> : vector<16x32xf32>
    %112 = tpu.matmul %109, %111, %cst_41 {dimension_numbers = #tpu.dot_dimension_numbers<[1], [0], [0], [1], [0, 0, 1, 1], [], []>} : vector<16x32xf32>, vector<32x32xf32>, vector<16x32xf32> -> vector<16x32xf32>
    %c0_42 = arith.constant 0 : index
    %c0_43 = arith.constant 0 : index
    %c0_44 = arith.constant 0 : index
    %113 = vector.load %arg8[%c0_42, %c0_43, %c0_44] : memref<2x1x32xf32, #tpu.memory_space<vmem>>, vector<1x1x32xf32>
    %114 = vector.shape_cast %113 : vector<1x1x32xf32> to vector<1x32xf32>
    %115 = vector.broadcast %114 : vector<1x32xf32> to vector<16x32xf32>
    %116 = arith.addf %112, %115 : vector<16x32xf32>
    %117 = arith.addf %24, %116 : vector<16x32xf32>
    %c0_45 = arith.constant 0 : index
    %c0_46 = arith.constant 0 : index
    %c0_47 = arith.constant 0 : index
    %118 = vector.load %arg9[%c0_45, %c0_46, %c0_47] : memref<2x1x32xf32, #tpu.memory_space<vmem>>, vector<1x1x32xf32>
    %119 = vector.shape_cast %118 : vector<1x1x32xf32> to vector<1x32xf32>
    %c0_48 = arith.constant 0 : index
    %c0_49 = arith.constant 0 : index
    %c0_50 = arith.constant 0 : index
    %120 = vector.load %arg10[%c0_48, %c0_49, %c0_50] : memref<2x1x32xf32, #tpu.memory_space<vmem>>, vector<1x1x32xf32>
    %121 = vector.shape_cast %120 : vector<1x1x32xf32> to vector<1x32xf32>
    %cst_51 = arith.constant dense<0.000000e+00> : vector<16xf32>
    %122 = vector.multi_reduction <add>, %117, %cst_51 [1] : vector<16x32xf32> to vector<16xf32>
    %123 = vector.shape_cast %122 : vector<16xf32> to vector<16x1xf32>
    %cst_52 = arith.constant 3.200000e+01 : f32
    %124 = vector.broadcast %cst_52 : f32 to vector<16x1xf32>
    %125 = arith.divf %123, %124 : vector<16x1xf32>
    %126 = vector.broadcast %125 : vector<16x1xf32> to vector<16x32xf32>
    %127 = arith.subf %117, %126 : vector<16x32xf32>
    %128 = arith.mulf %127, %127 : vector<16x32xf32>
    %cst_53 = arith.constant dense<0.000000e+00> : vector<16xf32>
    %129 = vector.multi_reduction <add>, %128, %cst_53 [1] : vector<16x32xf32> to vector<16xf32>
    %130 = vector.shape_cast %129 : vector<16xf32> to vector<16x1xf32>
    %cst_54 = arith.constant 3.200000e+01 : f32
    %131 = vector.broadcast %cst_54 : f32 to vector<16x1xf32>
    %132 = arith.divf %130, %131 : vector<16x1xf32>
    %133 = vector.broadcast %125 : vector<16x1xf32> to vector<16x32xf32>
    %134 = arith.subf %117, %133 : vector<16x32xf32>
    %cst_55 = arith.constant 9.99999996E-13 : f32
    %135 = vector.broadcast %cst_55 : f32 to vector<16x1xf32>
    %136 = arith.addf %132, %135 : vector<16x1xf32>
    %137 = math.rsqrt %136 : vector<16x1xf32>
    %138 = vector.broadcast %137 : vector<16x1xf32> to vector<16x32xf32>
    %139 = arith.mulf %134, %138 : vector<16x32xf32>
    %140 = vector.broadcast %119 : vector<1x32xf32> to vector<16x32xf32>
    %141 = arith.mulf %139, %140 : vector<16x32xf32>
    %142 = vector.broadcast %121 : vector<1x32xf32> to vector<16x32xf32>
    %143 = arith.addf %141, %142 : vector<16x32xf32>
    %c0_56 = arith.constant 0 : index
    %c0_57 = arith.constant 0 : index
    %c0_58 = arith.constant 0 : index
    %144 = vector.load %arg11[%c0_56, %c0_57, %c0_58] : memref<2x32x64xf32, #tpu.memory_space<vmem>>, vector<1x32x64xf32>
    %145 = vector.shape_cast %144 : vector<1x32x64xf32> to vector<32x64xf32>
    %cst_59 = arith.constant dense<0.000000e+00> : vector<16x64xf32>
    %146 = tpu.matmul %143, %145, %cst_59 {dimension_numbers = #tpu.dot_dimension_numbers<[1], [0], [0], [1], [0, 0, 1, 1], [], []>} : vector<16x32xf32>, vector<32x64xf32>, vector<16x64xf32> -> vector<16x64xf32>
    %c0_60 = arith.constant 0 : index
    %c0_61 = arith.constant 0 : index
    %c0_62 = arith.constant 0 : index
    %147 = vector.load %arg12[%c0_60, %c0_61, %c0_62] : memref<2x1x64xf32, #tpu.memory_space<vmem>>, vector<1x1x64xf32>
    %148 = vector.shape_cast %147 : vector<1x1x64xf32> to vector<1x64xf32>
    %149 = vector.broadcast %148 : vector<1x64xf32> to vector<16x64xf32>
    %150 = arith.addf %146, %149 : vector<16x64xf32>
    %cst_63 = arith.constant 5.000000e-01 : f32
    %151 = vector.broadcast %cst_63 : f32 to vector<16x64xf32>
    %152 = arith.mulf %151, %150 : vector<16x64xf32>
    %cst_64 = arith.constant 4.471500e-02 : f32
    %153 = vector.broadcast %cst_64 : f32 to vector<16x64xf32>
    %154 = arith.mulf %153, %150 : vector<16x64xf32>
    %155 = arith.mulf %154, %150 : vector<16x64xf32>
    %156 = arith.mulf %155, %150 : vector<16x64xf32>
    %157 = arith.addf %150, %156 : vector<16x64xf32>
    %cst_65 = arith.constant 0.797884583 : f32
    %158 = vector.broadcast %cst_65 : f32 to vector<16x64xf32>
    %159 = arith.mulf %158, %157 : vector<16x64xf32>
    %160 = math.tanh %159 : vector<16x64xf32>
    %cst_66 = arith.constant 1.000000e+00 : f32
    %161 = vector.broadcast %cst_66 : f32 to vector<16x64xf32>
    %162 = arith.addf %161, %160 : vector<16x64xf32>
    %163 = arith.mulf %152, %162 : vector<16x64xf32>
    %c0_67 = arith.constant 0 : index
    %c0_68 = arith.constant 0 : index
    %c0_69 = arith.constant 0 : index
    %164 = vector.load %arg13[%c0_67, %c0_68, %c0_69] : memref<2x64x32xf32, #tpu.memory_space<vmem>>, vector<1x64x32xf32>
    %165 = vector.shape_cast %164 : vector<1x64x32xf32> to vector<64x32xf32>
    %cst_70 = arith.constant dense<0.000000e+00> : vector<16x32xf32>
    %166 = tpu.matmul %163, %165, %cst_70 {dimension_numbers = #tpu.dot_dimension_numbers<[1], [0], [0], [1], [0, 0, 1, 1], [], []>} : vector<16x64xf32>, vector<64x32xf32>, vector<16x32xf32> -> vector<16x32xf32>
    %c0_71 = arith.constant 0 : index
    %c0_72 = arith.constant 0 : index
    %c0_73 = arith.constant 0 : index
    %167 = vector.load %arg14[%c0_71, %c0_72, %c0_73] : memref<2x1x32xf32, #tpu.memory_space<vmem>>, vector<1x1x32xf32>
    %168 = vector.shape_cast %167 : vector<1x1x32xf32> to vector<1x32xf32>
    %169 = vector.broadcast %168 : vector<1x32xf32> to vector<16x32xf32>
    %170 = arith.addf %166, %169 : vector<16x32xf32>
    %171 = arith.addf %143, %170 : vector<16x32xf32>
    %c0_74 = arith.constant 0 : index
    %c0_75 = arith.constant 0 : index
    %c0_76 = arith.constant 0 : index
    %172 = vector.load %arg15[%c0_74, %c0_75, %c0_76] : memref<2x1x32xf32, #tpu.memory_space<vmem>>, vector<1x1x32xf32>
    %173 = vector.shape_cast %172 : vector<1x1x32xf32> to vector<1x32xf32>
    %c0_77 = arith.constant 0 : index
    %c0_78 = arith.constant 0 : index
    %c0_79 = arith.constant 0 : index
    %174 = vector.load %arg16[%c0_77, %c0_78, %c0_79] : memref<2x1x32xf32, #tpu.memory_space<vmem>>, vector<1x1x32xf32>
    %175 = vector.shape_cast %174 : vector<1x1x32xf32> to vector<1x32xf32>
    %cst_80 = arith.constant dense<0.000000e+00> : vector<16xf32>
    %176 = vector.multi_reduction <add>, %171, %cst_80 [1] : vector<16x32xf32> to vector<16xf32>
    %177 = vector.shape_cast %176 : vector<16xf32> to vector<16x1xf32>
    %cst_81 = arith.constant 3.200000e+01 : f32
    %178 = vector.broadcast %cst_81 : f32 to vector<16x1xf32>
    %179 = arith.divf %177, %178 : vector<16x1xf32>
    %180 = vector.broadcast %179 : vector<16x1xf32> to vector<16x32xf32>
    %181 = arith.subf %171, %180 : vector<16x32xf32>
    %182 = arith.mulf %181, %181 : vector<16x32xf32>
    %cst_82 = arith.constant dense<0.000000e+00> : vector<16xf32>
    %183 = vector.multi_reduction <add>, %182, %cst_82 [1] : vector<16x32xf32> to vector<16xf32>
    %184 = vector.shape_cast %183 : vector<16xf32> to vector<16x1xf32>
    %cst_83 = arith.constant 3.200000e+01 : f32
    %185 = vector.broadcast %cst_83 : f32 to vector<16x1xf32>
    %186 = arith.divf %184, %185 : vector<16x1xf32>
    %187 = vector.broadcast %179 : vector<16x1xf32> to vector<16x32xf32>
    %188 = arith.subf %171, %187 : vector<16x32xf32>
    %cst_84 = arith.constant 9.99999996E-13 : f32
    %189 = vector.broadcast %cst_84 : f32 to vector<16x1xf32>
    %190 = arith.addf %186, %189 : vector<16x1xf32>
    %191 = math.rsqrt %190 : vector<16x1xf32>
    %192 = vector.broadcast %191 : vector<16x1xf32> to vector<16x32xf32>
    %193 = arith.mulf %188, %192 : vector<16x32xf32>
    %194 = vector.broadcast %173 : vector<1x32xf32> to vector<16x32xf32>
    %195 = arith.mulf %193, %194 : vector<16x32xf32>
    %196 = vector.broadcast %175 : vector<1x32xf32> to vector<16x32xf32>
    %197 = arith.addf %195, %196 : vector<16x32xf32>
    %c1 = arith.constant 1 : index
    %c0_85 = arith.constant 0 : index
    %c0_86 = arith.constant 0 : index
    %198 = vector.load %arg5[%c1, %c0_85, %c0_86] : memref<2x32x96xf32, #tpu.memory_space<vmem>>, vector<1x32x96xf32>
    %199 = vector.shape_cast %198 : vector<1x32x96xf32> to vector<32x96xf32>
    %cst_87 = arith.constant dense<0.000000e+00> : vector<16x96xf32>
    %200 = tpu.matmul %197, %199, %cst_87 {dimension_numbers = #tpu.dot_dimension_numbers<[1], [0], [0], [1], [0, 0, 1, 1], [], []>} : vector<16x32xf32>, vector<32x96xf32>, vector<16x96xf32> -> vector<16x96xf32>
    %c1_88 = arith.constant 1 : index
    %c0_89 = arith.constant 0 : index
    %c0_90 = arith.constant 0 : index
    %201 = vector.load %arg6[%c1_88, %c0_89, %c0_90] : memref<2x1x96xf32, #tpu.memory_space<vmem>>, vector<1x1x96xf32>
    %202 = vector.shape_cast %201 : vector<1x1x96xf32> to vector<1x96xf32>
    %203 = vector.broadcast %202 : vector<1x96xf32> to vector<16x96xf32>
    %204 = arith.addf %200, %203 : vector<16x96xf32>
    %205 = vector.extract_strided_slice %204 {offsets = [0, 0], sizes = [16, 8], strides = [1, 1]} : vector<16x96xf32> to vector<16x8xf32>
    %206 = vector.extract_strided_slice %204 {offsets = [0, 32], sizes = [16, 8], strides = [1, 1]} : vector<16x96xf32> to vector<16x8xf32>
    %207 = vector.extract_strided_slice %204 {offsets = [0, 64], sizes = [16, 8], strides = [1, 1]} : vector<16x96xf32> to vector<16x8xf32>
    %208 = tpu.transpose %206, [1, 0] : vector<16x8xf32> -> vector<8x16xf32>
    %cst_91 = arith.constant dense<0.000000e+00> : vector<16x16xf32>
    %209 = tpu.matmul %205, %208, %cst_91 {dimension_numbers = #tpu.dot_dimension_numbers<[1], [0], [0], [1], [0, 0, 1, 1], [], []>} : vector<16x8xf32>, vector<8x16xf32>, vector<16x16xf32> -> vector<16x16xf32>
    %cst_92 = arith.constant 0.353553385 : f32
    %210 = vector.broadcast %cst_92 : f32 to vector<16x16xf32>
    %211 = arith.mulf %209, %210 : vector<16x16xf32>
    %212 = arith.addf %211, %25 : vector<16x16xf32>
    %cst_93 = arith.constant dense<0xFF800000> : vector<16xf32>
    %213 = vector.multi_reduction <maximumf>, %212, %cst_93 [1] : vector<16x16xf32> to vector<16xf32>
    %214 = vector.shape_cast %213 : vector<16xf32> to vector<16x1xf32>
    %215 = vector.broadcast %214 : vector<16x1xf32> to vector<16x16xf32>
    %216 = arith.subf %212, %215 : vector<16x16xf32>
    %217 = math.exp %216 : vector<16x16xf32>
    %cst_94 = arith.constant dense<0.000000e+00> : vector<16xf32>
    %218 = vector.multi_reduction <add>, %217, %cst_94 [1] : vector<16x16xf32> to vector<16xf32>
    %219 = vector.shape_cast %218 : vector<16xf32> to vector<16x1xf32>
    %220 = tpu.reciprocal %219 {approx = true} : vector<16x1xf32> -> vector<16x1xf32>
    %221 = vector.broadcast %220 : vector<16x1xf32> to vector<16x16xf32>
    %222 = arith.mulf %217, %221 : vector<16x16xf32>
    %cst_95 = arith.constant dense<0.000000e+00> : vector<16x8xf32>
    %223 = tpu.matmul %222, %207, %cst_95 {dimension_numbers = #tpu.dot_dimension_numbers<[1], [0], [0], [1], [0, 0, 1, 1], [], []>} : vector<16x16xf32>, vector<16x8xf32>, vector<16x8xf32> -> vector<16x8xf32>
    %224 = vector.extract_strided_slice %204 {offsets = [0, 8], sizes = [16, 8], strides = [1, 1]} : vector<16x96xf32> to vector<16x8xf32>
    %225 = vector.extract_strided_slice %204 {offsets = [0, 40], sizes = [16, 8], strides = [1, 1]} : vector<16x96xf32> to vector<16x8xf32>
    %226 = vector.extract_strided_slice %204 {offsets = [0, 72], sizes = [16, 8], strides = [1, 1]} : vector<16x96xf32> to vector<16x8xf32>
    %227 = tpu.transpose %225, [1, 0] : vector<16x8xf32> -> vector<8x16xf32>
    %cst_96 = arith.constant dense<0.000000e+00> : vector<16x16xf32>
    %228 = tpu.matmul %224, %227, %cst_96 {dimension_numbers = #tpu.dot_dimension_numbers<[1], [0], [0], [1], [0, 0, 1, 1], [], []>} : vector<16x8xf32>, vector<8x16xf32>, vector<16x16xf32> -> vector<16x16xf32>
    %cst_97 = arith.constant 0.353553385 : f32
    %229 = vector.broadcast %cst_97 : f32 to vector<16x16xf32>
    %230 = arith.mulf %228, %229 : vector<16x16xf32>
    %231 = arith.addf %230, %25 : vector<16x16xf32>
    %cst_98 = arith.constant dense<0xFF800000> : vector<16xf32>
    %232 = vector.multi_reduction <maximumf>, %231, %cst_98 [1] : vector<16x16xf32> to vector<16xf32>
    %233 = vector.shape_cast %232 : vector<16xf32> to vector<16x1xf32>
    %234 = vector.broadcast %233 : vector<16x1xf32> to vector<16x16xf32>
    %235 = arith.subf %231, %234 : vector<16x16xf32>
    %236 = math.exp %235 : vector<16x16xf32>
    %cst_99 = arith.constant dense<0.000000e+00> : vector<16xf32>
    %237 = vector.multi_reduction <add>, %236, %cst_99 [1] : vector<16x16xf32> to vector<16xf32>
    %238 = vector.shape_cast %237 : vector<16xf32> to vector<16x1xf32>
    %239 = tpu.reciprocal %238 {approx = true} : vector<16x1xf32> -> vector<16x1xf32>
    %240 = vector.broadcast %239 : vector<16x1xf32> to vector<16x16xf32>
    %241 = arith.mulf %236, %240 : vector<16x16xf32>
    %cst_100 = arith.constant dense<0.000000e+00> : vector<16x8xf32>
    %242 = tpu.matmul %241, %226, %cst_100 {dimension_numbers = #tpu.dot_dimension_numbers<[1], [0], [0], [1], [0, 0, 1, 1], [], []>} : vector<16x16xf32>, vector<16x8xf32>, vector<16x8xf32> -> vector<16x8xf32>
    %243 = vector.extract_strided_slice %204 {offsets = [0, 16], sizes = [16, 8], strides = [1, 1]} : vector<16x96xf32> to vector<16x8xf32>
    %244 = vector.extract_strided_slice %204 {offsets = [0, 48], sizes = [16, 8], strides = [1, 1]} : vector<16x96xf32> to vector<16x8xf32>
    %245 = vector.extract_strided_slice %204 {offsets = [0, 80], sizes = [16, 8], strides = [1, 1]} : vector<16x96xf32> to vector<16x8xf32>
    %246 = tpu.transpose %244, [1, 0] : vector<16x8xf32> -> vector<8x16xf32>
    %cst_101 = arith.constant dense<0.000000e+00> : vector<16x16xf32>
    %247 = tpu.matmul %243, %246, %cst_101 {dimension_numbers = #tpu.dot_dimension_numbers<[1], [0], [0], [1], [0, 0, 1, 1], [], []>} : vector<16x8xf32>, vector<8x16xf32>, vector<16x16xf32> -> vector<16x16xf32>
    %cst_102 = arith.constant 0.353553385 : f32
    %248 = vector.broadcast %cst_102 : f32 to vector<16x16xf32>
    %249 = arith.mulf %247, %248 : vector<16x16xf32>
    %250 = arith.addf %249, %25 : vector<16x16xf32>
    %cst_103 = arith.constant dense<0xFF800000> : vector<16xf32>
    %251 = vector.multi_reduction <maximumf>, %250, %cst_103 [1] : vector<16x16xf32> to vector<16xf32>
    %252 = vector.shape_cast %251 : vector<16xf32> to vector<16x1xf32>
    %253 = vector.broadcast %252 : vector<16x1xf32> to vector<16x16xf32>
    %254 = arith.subf %250, %253 : vector<16x16xf32>
    %255 = math.exp %254 : vector<16x16xf32>
    %cst_104 = arith.constant dense<0.000000e+00> : vector<16xf32>
    %256 = vector.multi_reduction <add>, %255, %cst_104 [1] : vector<16x16xf32> to vector<16xf32>
    %257 = vector.shape_cast %256 : vector<16xf32> to vector<16x1xf32>
    %258 = tpu.reciprocal %257 {approx = true} : vector<16x1xf32> -> vector<16x1xf32>
    %259 = vector.broadcast %258 : vector<16x1xf32> to vector<16x16xf32>
    %260 = arith.mulf %255, %259 : vector<16x16xf32>
    %cst_105 = arith.constant dense<0.000000e+00> : vector<16x8xf32>
    %261 = tpu.matmul %260, %245, %cst_105 {dimension_numbers = #tpu.dot_dimension_numbers<[1], [0], [0], [1], [0, 0, 1, 1], [], []>} : vector<16x16xf32>, vector<16x8xf32>, vector<16x8xf32> -> vector<16x8xf32>
    %262 = vector.extract_strided_slice %204 {offsets = [0, 24], sizes = [16, 8], strides = [1, 1]} : vector<16x96xf32> to vector<16x8xf32>
    %263 = vector.extract_strided_slice %204 {offsets = [0, 56], sizes = [16, 8], strides = [1, 1]} : vector<16x96xf32> to vector<16x8xf32>
    %264 = vector.extract_strided_slice %204 {offsets = [0, 88], sizes = [16, 8], strides = [1, 1]} : vector<16x96xf32> to vector<16x8xf32>
    %265 = tpu.transpose %263, [1, 0] : vector<16x8xf32> -> vector<8x16xf32>
    %cst_106 = arith.constant dense<0.000000e+00> : vector<16x16xf32>
    %266 = tpu.matmul %262, %265, %cst_106 {dimension_numbers = #tpu.dot_dimension_numbers<[1], [0], [0], [1], [0, 0, 1, 1], [], []>} : vector<16x8xf32>, vector<8x16xf32>, vector<16x16xf32> -> vector<16x16xf32>
    %cst_107 = arith.constant 0.353553385 : f32
    %267 = vector.broadcast %cst_107 : f32 to vector<16x16xf32>
    %268 = arith.mulf %266, %267 : vector<16x16xf32>
    %269 = arith.addf %268, %25 : vector<16x16xf32>
    %cst_108 = arith.constant dense<0xFF800000> : vector<16xf32>
    %270 = vector.multi_reduction <maximumf>, %269, %cst_108 [1] : vector<16x16xf32> to vector<16xf32>
    %271 = vector.shape_cast %270 : vector<16xf32> to vector<16x1xf32>
    %272 = vector.broadcast %271 : vector<16x1xf32> to vector<16x16xf32>
    %273 = arith.subf %269, %272 : vector<16x16xf32>
    %274 = math.exp %273 : vector<16x16xf32>
    %cst_109 = arith.constant dense<0.000000e+00> : vector<16xf32>
    %275 = vector.multi_reduction <add>, %274, %cst_109 [1] : vector<16x16xf32> to vector<16xf32>
    %276 = vector.shape_cast %275 : vector<16xf32> to vector<16x1xf32>
    %277 = tpu.reciprocal %276 {approx = true} : vector<16x1xf32> -> vector<16x1xf32>
    %278 = vector.broadcast %277 : vector<16x1xf32> to vector<16x16xf32>
    %279 = arith.mulf %274, %278 : vector<16x16xf32>
    %cst_110 = arith.constant dense<0.000000e+00> : vector<16x8xf32>
    %280 = tpu.matmul %279, %264, %cst_110 {dimension_numbers = #tpu.dot_dimension_numbers<[1], [0], [0], [1], [0, 0, 1, 1], [], []>} : vector<16x16xf32>, vector<16x8xf32>, vector<16x8xf32> -> vector<16x8xf32>
    %281 = tpu.concatenate %223, %242, %261, %280 in 1 : vector<16x8xf32>, vector<16x8xf32>, vector<16x8xf32>, vector<16x8xf32> -> vector<16x32xf32>
    %c1_111 = arith.constant 1 : index
    %c0_112 = arith.constant 0 : index
    %c0_113 = arith.constant 0 : index
    %282 = vector.load %arg7[%c1_111, %c0_112, %c0_113] : memref<2x32x32xf32, #tpu.memory_space<vmem>>, vector<1x32x32xf32>
    %283 = vector.shape_cast %282 : vector<1x32x32xf32> to vector<32x32xf32>
    %cst_114 = arith.constant dense<0.000000e+00> : vector<16x32xf32>
    %284 = tpu.matmul %281, %283, %cst_114 {dimension_numbers = #tpu.dot_dimension_numbers<[1], [0], [0], [1], [0, 0, 1, 1], [], []>} : vector<16x32xf32>, vector<32x32xf32>, vector<16x32xf32> -> vector<16x32xf32>
    %c1_115 = arith.constant 1 : index
    %c0_116 = arith.constant 0 : index
    %c0_117 = arith.constant 0 : index
    %285 = vector.load %arg8[%c1_115, %c0_116, %c0_117] : memref<2x1x32xf32, #tpu.memory_space<vmem>>, vector<1x1x32xf32>
    %286 = vector.shape_cast %285 : vector<1x1x32xf32> to vector<1x32xf32>
    %287 = vector.broadcast %286 : vector<1x32xf32> to vector<16x32xf32>
    %288 = arith.addf %284, %287 : vector<16x32xf32>
    %289 = arith.addf %197, %288 : vector<16x32xf32>
    %c1_118 = arith.constant 1 : index
    %c0_119 = arith.constant 0 : index
    %c0_120 = arith.constant 0 : index
    %290 = vector.load %arg9[%c1_118, %c0_119, %c0_120] : memref<2x1x32xf32, #tpu.memory_space<vmem>>, vector<1x1x32xf32>
    %291 = vector.shape_cast %290 : vector<1x1x32xf32> to vector<1x32xf32>
    %c1_121 = arith.constant 1 : index
    %c0_122 = arith.constant 0 : index
    %c0_123 = arith.constant 0 : index
    %292 = vector.load %arg10[%c1_121, %c0_122, %c0_123] : memref<2x1x32xf32, #tpu.memory_space<vmem>>, vector<1x1x32xf32>
    %293 = vector.shape_cast %292 : vector<1x1x32xf32> to vector<1x32xf32>
    %cst_124 = arith.constant dense<0.000000e+00> : vector<16xf32>
    %294 = vector.multi_reduction <add>, %289, %cst_124 [1] : vector<16x32xf32> to vector<16xf32>
    %295 = vector.shape_cast %294 : vector<16xf32> to vector<16x1xf32>
    %cst_125 = arith.constant 3.200000e+01 : f32
    %296 = vector.broadcast %cst_125 : f32 to vector<16x1xf32>
    %297 = arith.divf %295, %296 : vector<16x1xf32>
    %298 = vector.broadcast %297 : vector<16x1xf32> to vector<16x32xf32>
    %299 = arith.subf %289, %298 : vector<16x32xf32>
    %300 = arith.mulf %299, %299 : vector<16x32xf32>
    %cst_126 = arith.constant dense<0.000000e+00> : vector<16xf32>
    %301 = vector.multi_reduction <add>, %300, %cst_126 [1] : vector<16x32xf32> to vector<16xf32>
    %302 = vector.shape_cast %301 : vector<16xf32> to vector<16x1xf32>
    %cst_127 = arith.constant 3.200000e+01 : f32
    %303 = vector.broadcast %cst_127 : f32 to vector<16x1xf32>
    %304 = arith.divf %302, %303 : vector<16x1xf32>
    %305 = vector.broadcast %297 : vector<16x1xf32> to vector<16x32xf32>
    %306 = arith.subf %289, %305 : vector<16x32xf32>
    %cst_128 = arith.constant 9.99999996E-13 : f32
    %307 = vector.broadcast %cst_128 : f32 to vector<16x1xf32>
    %308 = arith.addf %304, %307 : vector<16x1xf32>
    %309 = math.rsqrt %308 : vector<16x1xf32>
    %310 = vector.broadcast %309 : vector<16x1xf32> to vector<16x32xf32>
    %311 = arith.mulf %306, %310 : vector<16x32xf32>
    %312 = vector.broadcast %291 : vector<1x32xf32> to vector<16x32xf32>
    %313 = arith.mulf %311, %312 : vector<16x32xf32>
    %314 = vector.broadcast %293 : vector<1x32xf32> to vector<16x32xf32>
    %315 = arith.addf %313, %314 : vector<16x32xf32>
    %c1_129 = arith.constant 1 : index
    %c0_130 = arith.constant 0 : index
    %c0_131 = arith.constant 0 : index
    %316 = vector.load %arg11[%c1_129, %c0_130, %c0_131] : memref<2x32x64xf32, #tpu.memory_space<vmem>>, vector<1x32x64xf32>
    %317 = vector.shape_cast %316 : vector<1x32x64xf32> to vector<32x64xf32>
    %cst_132 = arith.constant dense<0.000000e+00> : vector<16x64xf32>
    %318 = tpu.matmul %315, %317, %cst_132 {dimension_numbers = #tpu.dot_dimension_numbers<[1], [0], [0], [1], [0, 0, 1, 1], [], []>} : vector<16x32xf32>, vector<32x64xf32>, vector<16x64xf32> -> vector<16x64xf32>
    %c1_133 = arith.constant 1 : index
    %c0_134 = arith.constant 0 : index
    %c0_135 = arith.constant 0 : index
    %319 = vector.load %arg12[%c1_133, %c0_134, %c0_135] : memref<2x1x64xf32, #tpu.memory_space<vmem>>, vector<1x1x64xf32>
    %320 = vector.shape_cast %319 : vector<1x1x64xf32> to vector<1x64xf32>
    %321 = vector.broadcast %320 : vector<1x64xf32> to vector<16x64xf32>
    %322 = arith.addf %318, %321 : vector<16x64xf32>
    %cst_136 = arith.constant 5.000000e-01 : f32
    %323 = vector.broadcast %cst_136 : f32 to vector<16x64xf32>
    %324 = arith.mulf %323, %322 : vector<16x64xf32>
    %cst_137 = arith.constant 4.471500e-02 : f32
    %325 = vector.broadcast %cst_137 : f32 to vector<16x64xf32>
    %326 = arith.mulf %325, %322 : vector<16x64xf32>
    %327 = arith.mulf %326, %322 : vector<16x64xf32>
    %328 = arith.mulf %327, %322 : vector<16x64xf32>
    %329 = arith.addf %322, %328 : vector<16x64xf32>
    %cst_138 = arith.constant 0.797884583 : f32
    %330 = vector.broadcast %cst_138 : f32 to vector<16x64xf32>
    %331 = arith.mulf %330, %329 : vector<16x64xf32>
    %332 = math.tanh %331 : vector<16x64xf32>
    %cst_139 = arith.constant 1.000000e+00 : f32
    %333 = vector.broadcast %cst_139 : f32 to vector<16x64xf32>
    %334 = arith.addf %333, %332 : vector<16x64xf32>
    %335 = arith.mulf %324, %334 : vector<16x64xf32>
    %c1_140 = arith.constant 1 : index
    %c0_141 = arith.constant 0 : index
    %c0_142 = arith.constant 0 : index
    %336 = vector.load %arg13[%c1_140, %c0_141, %c0_142] : memref<2x64x32xf32, #tpu.memory_space<vmem>>, vector<1x64x32xf32>
    %337 = vector.shape_cast %336 : vector<1x64x32xf32> to vector<64x32xf32>
    %cst_143 = arith.constant dense<0.000000e+00> : vector<16x32xf32>
    %338 = tpu.matmul %335, %337, %cst_143 {dimension_numbers = #tpu.dot_dimension_numbers<[1], [0], [0], [1], [0, 0, 1, 1], [], []>} : vector<16x64xf32>, vector<64x32xf32>, vector<16x32xf32> -> vector<16x32xf32>
    %c1_144 = arith.constant 1 : index
    %c0_145 = arith.constant 0 : index
    %c0_146 = arith.constant 0 : index
    %339 = vector.load %arg14[%c1_144, %c0_145, %c0_146] : memref<2x1x32xf32, #tpu.memory_space<vmem>>, vector<1x1x32xf32>
    %340 = vector.shape_cast %339 : vector<1x1x32xf32> to vector<1x32xf32>
    %341 = vector.broadcast %340 : vector<1x32xf32> to vector<16x32xf32>
    %342 = arith.addf %338, %341 : vector<16x32xf32>
    %343 = arith.addf %315, %342 : vector<16x32xf32>
    %c1_147 = arith.constant 1 : index
    %c0_148 = arith.constant 0 : index
    %c0_149 = arith.constant 0 : index
    %344 = vector.load %arg15[%c1_147, %c0_148, %c0_149] : memref<2x1x32xf32, #tpu.memory_space<vmem>>, vector<1x1x32xf32>
    %345 = vector.shape_cast %344 : vector<1x1x32xf32> to vector<1x32xf32>
    %c1_150 = arith.constant 1 : index
    %c0_151 = arith.constant 0 : index
    %c0_152 = arith.constant 0 : index
    %346 = vector.load %arg16[%c1_150, %c0_151, %c0_152] : memref<2x1x32xf32, #tpu.memory_space<vmem>>, vector<1x1x32xf32>
    %347 = vector.shape_cast %346 : vector<1x1x32xf32> to vector<1x32xf32>
    %cst_153 = arith.constant dense<0.000000e+00> : vector<16xf32>
    %348 = vector.multi_reduction <add>, %343, %cst_153 [1] : vector<16x32xf32> to vector<16xf32>
    %349 = vector.shape_cast %348 : vector<16xf32> to vector<16x1xf32>
    %cst_154 = arith.constant 3.200000e+01 : f32
    %350 = vector.broadcast %cst_154 : f32 to vector<16x1xf32>
    %351 = arith.divf %349, %350 : vector<16x1xf32>
    %352 = vector.broadcast %351 : vector<16x1xf32> to vector<16x32xf32>
    %353 = arith.subf %343, %352 : vector<16x32xf32>
    %354 = arith.mulf %353, %353 : vector<16x32xf32>
    %cst_155 = arith.constant dense<0.000000e+00> : vector<16xf32>
    %355 = vector.multi_reduction <add>, %354, %cst_155 [1] : vector<16x32xf32> to vector<16xf32>
    %356 = vector.shape_cast %355 : vector<16xf32> to vector<16x1xf32>
    %cst_156 = arith.constant 3.200000e+01 : f32
    %357 = vector.broadcast %cst_156 : f32 to vector<16x1xf32>
    %358 = arith.divf %356, %357 : vector<16x1xf32>
    %359 = vector.broadcast %351 : vector<16x1xf32> to vector<16x32xf32>
    %360 = arith.subf %343, %359 : vector<16x32xf32>
    %cst_157 = arith.constant 9.99999996E-13 : f32
    %361 = vector.broadcast %cst_157 : f32 to vector<16x1xf32>
    %362 = arith.addf %358, %361 : vector<16x1xf32>
    %363 = math.rsqrt %362 : vector<16x1xf32>
    %364 = vector.broadcast %363 : vector<16x1xf32> to vector<16x32xf32>
    %365 = arith.mulf %360, %364 : vector<16x32xf32>
    %366 = vector.broadcast %345 : vector<1x32xf32> to vector<16x32xf32>
    %367 = arith.mulf %365, %366 : vector<16x32xf32>
    %368 = vector.broadcast %347 : vector<1x32xf32> to vector<16x32xf32>
    %369 = arith.addf %367, %368 : vector<16x32xf32>
    %c0_158 = arith.constant 0 : index
    %c0_159 = arith.constant 0 : index
    %370 = vector.load %arg2[%c0_158, %c0_159] : memref<2x16xf32, #tpu.memory_space<vmem>>, vector<2x16xf32>
    %cst_160 = arith.constant dense<0.000000e+00> : vector<2x32xf32>
    %371 = tpu.matmul %370, %369, %cst_160 {dimension_numbers = #tpu.dot_dimension_numbers<[1], [0], [0], [1], [0, 0, 1, 1], [], []>} : vector<2x16xf32>, vector<16x32xf32>, vector<2x32xf32> -> vector<2x32xf32>
    %cst_161 = arith.constant dense<0.000000e+00> : vector<2xf32>
    %372 = vector.multi_reduction <add>, %370, %cst_161 [1] : vector<2x16xf32> to vector<2xf32>
    %373 = vector.shape_cast %372 : vector<2xf32> to vector<2x1xf32>
    %374 = tpu.reciprocal %373 {approx = true} : vector<2x1xf32> -> vector<2x1xf32>
    %375 = vector.broadcast %374 : vector<2x1xf32> to vector<2x32xf32>
    %376 = arith.mulf %371, %375 : vector<2x32xf32>
    %c0_162 = arith.constant 0 : index
    %c0_163 = arith.constant 0 : index
    %377 = vector.load %arg17[%c0_162, %c0_163] : memref<1x32xf32, #tpu.memory_space<vmem>>, vector<1x32xf32>
    %378 = vector.broadcast %377 : vector<1x32xf32> to vector<2x32xf32>
    %379 = arith.mulf %376, %378 : vector<2x32xf32>
    %cst_164 = arith.constant dense<0.000000e+00> : vector<2xf32>
    %380 = vector.multi_reduction <add>, %379, %cst_164 [1] : vector<2x32xf32> to vector<2xf32>
    %381 = vector.shape_cast %380 : vector<2xf32> to vector<2x1xf32>
    %c0_165 = arith.constant 0 : index
    %c0_166 = arith.constant 0 : index
    %382 = vector.load %arg18[%c0_165, %c0_166] : memref<1x1xf32, #tpu.memory_space<vmem>>, vector<1x1xf32>
    %383 = vector.broadcast %382 : vector<1x1xf32> to vector<2x1xf32>
    %384 = arith.addf %381, %383 : vector<2x1xf32>
    %cst_167 = arith.constant 0.000000e+00 : f32
    %385 = vector.broadcast %cst_167 : f32 to vector<2x1xf32>
    %386 = arith.subf %385, %384 : vector<2x1xf32>
    %387 = math.exp %386 : vector<2x1xf32>
    %cst_168 = arith.constant 1.000000e+00 : f32
    %388 = vector.broadcast %cst_168 : f32 to vector<2x1xf32>
    %389 = arith.addf %388, %387 : vector<2x1xf32>
    %cst_169 = arith.constant 1.000000e+00 : f32
    %390 = vector.broadcast %cst_169 : f32 to vector<2x1xf32>
    %391 = arith.divf %390, %389 : vector<2x1xf32>
    %c0_170 = arith.constant 0 : index
    %c0_171 = arith.constant 0 : index
    %392 = vector.load %arg19[%c0_170, %c0_171] : memref<2x1xf32, #tpu.memory_space<vmem>>, vector<2x1xf32>
    tpu.vector_store %arg19[%c0_170, %c0_171], %391 {strides = array<i32>} : memref<2x1xf32, #tpu.memory_space<vmem>>, vector<2x1xf32>,
    return
  }
}

</mosaic_0001>

<llo_original>
// kernel: tpu_custom_call.1
$region0: #{tpu_custom_call.1}
  #allocation0 [shape = 'u32[]', space=smem, size = 0x4, offset = 0x4, fixed_abs, tag = 'smem constant byte address 0x4 - core index']
  #allocation1 [shape = 'u32[144,128]{1,0:T(1,128)}', space=vmem, size = 0x12000, scoped, tag = 'internal scratch']
  #allocation2 [shape = 'f32[1,1]{1,0:T(1,128)S(1)}', space=vmem, size = 0x200, scoped, tag = 'scoped memory for tpu_custom_call.1']
  %s0 = inlined_call_operand.hbm [shape: f32[16,32], index: 0, kind: input, shape index: {}]
  %s1 = inlined_call_operand.hbm [shape: f32[16,16], index: 1, kind: input, shape index: {}]
  %s2 = inlined_call_operand.vmem [shape: f32[2,16], index: 2, kind: input, shape index: {}]
  %s3 = inlined_call_operand.hbm [shape: f32[1,32], index: 3, kind: input, shape index: {}]
  %s4 = inlined_call_operand.hbm [shape: f32[1,32], index: 4, kind: input, shape index: {}]
  %s5 = inlined_call_operand.vmem [shape: f32[2,32,96], index: 5, kind: input, shape index: {}]
  %s6 = inlined_call_operand.vmem [shape: f32[2,1,96], index: 6, kind: input, shape index: {}]
  %s7 = inlined_call_operand.vmem [shape: f32[2,32,32], index: 7, kind: input, shape index: {}]
  %s8 = inlined_call_operand.vmem [shape: f32[2,1,32], index: 8, kind: input, shape index: {}]
  %s9 = inlined_call_operand.vmem [shape: f32[2,1,32], index: 9, kind: input, shape index: {}]
  %s10 = inlined_call_operand.vmem [shape: f32[2,1,32], index: 10, kind: input, shape index: {}]
  %s11 = inlined_call_operand.vmem [shape: f32[2,32,64], index: 11, kind: input, shape index: {}]
  %s12 = inlined_call_operand.vmem [shape: f32[2,1,64], index: 12, kind: input, shape index: {}]
  %s13 = inlined_call_operand.vmem [shape: f32[2,64,32], index: 13, kind: input, shape index: {}]
  %s14 = inlined_call_operand.vmem [shape: f32[2,1,32], index: 14, kind: input, shape index: {}]
  %s15 = inlined_call_operand.vmem [shape: f32[2,1,32], index: 15, kind: input, shape index: {}]
  %s16 = inlined_call_operand.vmem [shape: f32[2,1,32], index: 16, kind: input, shape index: {}]
  %s17 = inlined_call_operand.vmem [shape: f32[1,32], index: 17, kind: input, shape index: {}]
  %s18 = inlined_call_operand.<no memory space> [shape: f32[1,1], index: 18, kind: input, shape index: {}]
  %s19 = inlined_call_operand.vmem [shape: f32[2,1], index: 19, kind: output, shape index: {}]
  %s20 = sld [smem:[#allocation0]]
  $region102: #{tpu_custom_call.1} parent=0
    _
  %s22 = ssub.s32 1, %s20
  %s23 = scalar_select 0, %s22, %s20
  %v24 = vstv %s18
  %25 = vst [vmem:[#allocation2] sm:$0x1] %v24
  $region1: #{tpu_custom_call.1} parent=0
    #allocation3 [shape = 'u8[8192]{0}', space=vmem, size = 0x2000, scoped, tag = 'input window, operand 0, single buffered']
    #allocation4 [shape = 's32[1]{0}', space=sflag, size = 0x4, scoped, tag = 'scoped memory for tpu_custom_call.1']
    #allocation5 [shape = 'u8[8192]{0}', space=vmem, size = 0x2000, scoped, tag = 'input window, operand 1, single buffered']
    #allocation6 [shape = 's32[1]{0}', space=sflag, size = 0x4, scoped, tag = 'scoped memory for tpu_custom_call.1']
    #allocation7 [shape = 'u8[512]{0}', space=vmem, size = 0x400, scoped, tag = 'input window, operand 3, single buffered']
    #allocation8 [shape = 'u8[512]{0}', space=vmem, size = 0x400, scoped, tag = 'input window, operand 4, single buffered']
    #allocation9 [shape = 's32[1]{0}', space=sflag, size = 0x4, scoped, tag = 'scoped memory for tpu_custom_call.1']
    %26 = vsyncpa [#allocation4], 0
    %27 = vsyncpa [#allocation6], 0
    %28 = vsyncpa [#allocation9], 0
    // Predicated region
    $region2: #{tpu_custom_call.1} parent=1 // pred_check
      _
    $region3: #{tpu_custom_call.1} parent=1 // pred_check_branch
      %30 = sbr.rel (0) target = $region5
    $region4: #{tpu_custom_call.1} parent=1 // pred_region
      %s32 = ssub.s32 256, 256
      %33 = vsyncadd [#allocation4], %s32
      %s34 = sshll.u32 [#allocation3], 4
      %s35 = int_to_ptr.vmem [resolvable:$true] %s34
      %40 = dma.hbm_to_vmem [thread:$0]  %s0, 256, %s35, [#allocation4], 128, 128, 8
    $region5: #{tpu_custom_call.1} parent=1 // pred_fallthru
      _
    // Predicated region
    $region6: #{tpu_custom_call.1} parent=1 // pred_check
      _
    $region7: #{tpu_custom_call.1} parent=1 // pred_check_branch
      %42 = sbr.rel (0) target = $region9
    $region8: #{tpu_custom_call.1} parent=1 // pred_region
      %s44 = ssub.s32 256, 256
      %45 = vsyncadd [#allocation6], %s44
      %s46 = sshll.u32 [#allocation5], 4
      %s47 = int_to_ptr.vmem [resolvable:$true] %s46
      %52 = dma.hbm_to_vmem [thread:$0]  %s1, 256, %s47, [#allocation6], 128, 128, 8
    $region9: #{tpu_custom_call.1} parent=1 // pred_fallthru
      _
    // Predicated region
    $region10: #{tpu_custom_call.1} parent=1 // pred_check
      _
    $region11: #{tpu_custom_call.1} parent=1 // pred_check_branch
      %54 = sbr.rel (0) target = $region13
    $region12: #{tpu_custom_call.1} parent=1 // pred_region
      _
    $region13: #{tpu_custom_call.1} parent=1 // pred_fallthru
      _
    // Predicated region
    $region14: #{tpu_custom_call.1} parent=1 // pred_check
      _
    $region15: #{tpu_custom_call.1} parent=1 // pred_check_branch
      %56 = sbr.rel (0) target = $region17
    $region16: #{tpu_custom_call.1} parent=1 // pred_region
      %s58 = ssub.s32 16, 16
      %59 = vsyncadd [#allocation6], %s58
      %s61 = sshll.u32 [#allocation7], 4
      %s62 = int_to_ptr.vmem [resolvable:$true] %s61
      %64 = dma.hbm_to_vmem [thread:$0]  %s3, 16, %s62, [#allocation6]
    $region17: #{tpu_custom_call.1} parent=1 // pred_fallthru
      _
    // Predicated region
    $region18: #{tpu_custom_call.1} parent=1 // pred_check
      _
    $region19: #{tpu_custom_call.1} parent=1 // pred_check_branch
      %66 = sbr.rel (0) target = $region21
    $region20: #{tpu_custom_call.1} parent=1 // pred_region
      %s68 = ssub.s32 16, 16
      %69 = vsyncadd [#allocation9], %s68
      %s71 = sshll.u32 [#allocation8], 4
      %s72 = int_to_ptr.vmem [resolvable:$true] %s71
      %74 = dma.hbm_to_vmem [thread:$0]  %s4, 16, %s72, [#allocation9]
    $region21: #{tpu_custom_call.1} parent=1 // pred_fallthru
      _
    // Predicated region
    $region22: #{tpu_custom_call.1} parent=1 // pred_check
      _
    $region23: #{tpu_custom_call.1} parent=1 // pred_check_branch
      %76 = sbr.rel (0) target = $region25
    $region24: #{tpu_custom_call.1} parent=1 // pred_region
      _
    $region25: #{tpu_custom_call.1} parent=1 // pred_fallthru
      _
    // Predicated region
    $region26: #{tpu_custom_call.1} parent=1 // pred_check
      _
    $region27: #{tpu_custom_call.1} parent=1 // pred_check_branch
      %78 = sbr.rel (0) target = $region29
    $region28: #{tpu_custom_call.1} parent=1 // pred_region
      _
    $region29: #{tpu_custom_call.1} parent=1 // pred_fallthru
      _
    // Predicated region
    $region30: #{tpu_custom_call.1} parent=1 // pred_check
      _
    $region31: #{tpu_custom_call.1} parent=1 // pred_check_branch
      %80 = sbr.rel (0) target = $region33
    $region32: #{tpu_custom_call.1} parent=1 // pred_region
      _
    $region33: #{tpu_custom_call.1} parent=1 // pred_fallthru
      _
    // Predicated region
    $region34: #{tpu_custom_call.1} parent=1 // pred_check
      _
    $region35: #{tpu_custom_call.1} parent=1 // pred_check_branch
      %82 = sbr.rel (0) target = $region37
    $region36: #{tpu_custom_call.1} parent=1 // pred_region
      _
    $region37: #{tpu_custom_call.1} parent=1 // pred_fallthru
      _
    // Predicated region
    $region38: #{tpu_custom_call.1} parent=1 // pred_check
      _
    $region39: #{tpu_custom_call.1} parent=1 // pred_check_branch
      %84 = sbr.rel (0) target = $region41
    $region40: #{tpu_custom_call.1} parent=1 // pred_region
      _
    $region41: #{tpu_custom_call.1} parent=1 // pred_fallthru
      _
    // Predicated region
    $region42: #{tpu_custom_call.1} parent=1 // pred_check
      _
    $region43: #{tpu_custom_call.1} parent=1 // pred_check_branch
      %86 = sbr.rel (0) target = $region45
    $region44: #{tpu_custom_call.1} parent=1 // pred_region
      _
    $region45: #{tpu_custom_call.1} parent=1 // pred_fallthru
      _
    // Predicated region
    $region46: #{tpu_custom_call.1} parent=1 // pred_check
      _
    $region47: #{tpu_custom_call.1} parent=1 // pred_check_branch
      %88 = sbr.rel (0) target = $region49
    $region48: #{tpu_custom_call.1} parent=1 // pred_region
      _
    $region49: #{tpu_custom_call.1} parent=1 // pred_fallthru
      _
    // Predicated region
    $region50: #{tpu_custom_call.1} parent=1 // pred_check
      _
    $region51: #{tpu_custom_call.1} parent=1 // pred_check_branch
      %90 = sbr.rel (0) target = $region53
    $region52: #{tpu_custom_call.1} parent=1 // pred_region
      _
    $region53: #{tpu_custom_call.1} parent=1 // pred_fallthru
      _
    // Predicated region
    $region54: #{tpu_custom_call.1} parent=1 // pred_check
      _
    $region55: #{tpu_custom_call.1} parent=1 // pred_check_branch
      %92 = sbr.rel (0) target = $region57
    $region56: #{tpu_custom_call.1} parent=1 // pred_region
      _
    $region57: #{tpu_custom_call.1} parent=1 // pred_fallthru
      _
    // Predicated region
    $region58: #{tpu_custom_call.1} parent=1 // pred_check
      _
    $region59: #{tpu_custom_call.1} parent=1 // pred_check_branch
      %94 = sbr.rel (0) target = $region61
    $region60: #{tpu_custom_call.1} parent=1 // pred_region
      _
    $region61: #{tpu_custom_call.1} parent=1 // pred_fallthru
      _
    // Predicated region
    $region62: #{tpu_custom_call.1} parent=1 // pred_check
      _
    $region63: #{tpu_custom_call.1} parent=1 // pred_check_branch
      %96 = sbr.rel (0) target = $region65
    $region64: #{tpu_custom_call.1} parent=1 // pred_region
      _
    $region65: #{tpu_custom_call.1} parent=1 // pred_fallthru
      _
    // Predicated region
    $region66: #{tpu_custom_call.1} parent=1 // pred_check
      _
    $region67: #{tpu_custom_call.1} parent=1 // pred_check_branch
      %98 = sbr.rel (0) target = $region69
    $region68: #{tpu_custom_call.1} parent=1 // pred_region
      _
    $region69: #{tpu_custom_call.1} parent=1 // pred_fallthru
      _
    // Predicated region
    $region70: #{tpu_custom_call.1} parent=1 // pred_check
      _
    $region71: #{tpu_custom_call.1} parent=1 // pred_check_branch
      %100 = sbr.rel (0) target = $region73
    $region72: #{tpu_custom_call.1} parent=1 // pred_region
      _
    $region73: #{tpu_custom_call.1} parent=1 // pred_fallthru
      _
    // Predicated region
    $region74: #{tpu_custom_call.1} parent=1 // pred_check
      _
    $region75: #{tpu_custom_call.1} parent=1 // pred_check_branch
      %102 = sbr.rel (0) target = $region77
    $region76: #{tpu_custom_call.1} parent=1 // pred_region
      _
    $region77: #{tpu_custom_call.1} parent=1 // pred_fallthru
      _
    // Predicated region
    $region78: #{tpu_custom_call.1} parent=1 // pred_check
      _
    $region79: #{tpu_custom_call.1} parent=1 // pred_check_branch
      %104 = sbr.rel (0) target = $region81
    $region80: #{tpu_custom_call.1} parent=1 // pred_region
      %105 = dma.done [#allocation4], 256
    $region81: #{tpu_custom_call.1} parent=1 // pred_fallthru
      _
    // Predicated region
    $region82: #{tpu_custom_call.1} parent=1 // pred_check
      _
    $region83: #{tpu_custom_call.1} parent=1 // pred_check_branch
      %107 = sbr.rel (0) target = $region85
    $region84: #{tpu_custom_call.1} parent=1 // pred_region
      %108 = dma.done [#allocation6], 256
    $region85: #{tpu_custom_call.1} parent=1 // pred_fallthru
      _
    // Predicated region
    $region86: #{tpu_custom_call.1} parent=1 // pred_check
      _
    $region87: #{tpu_custom_call.1} parent=1 // pred_check_branch
      %110 = sbr.rel (0) target = $region89
    $region88: #{tpu_custom_call.1} parent=1 // pred_region
      %111 = dma.done [#allocation6], 16
    $region89: #{tpu_custom_call.1} parent=1 // pred_fallthru
      _
    // Predicated region
    $region90: #{tpu_custom_call.1} parent=1 // pred_check
      _
    $region91: #{tpu_custom_call.1} parent=1 // pred_check_branch
      %113 = sbr.rel (0) target = $region93
    $region92: #{tpu_custom_call.1} parent=1 // pred_region
      %114 = dma.done [#allocation9], 16
    $region93: #{tpu_custom_call.1} parent=1 // pred_fallthru
      _
    %v115 = vld [vmem:[#allocation3] sm:$0xff]
    %v116 = vld [vmem:[#allocation3 + $0x8] sm:$0xff]
    %v117 = vld [vmem:[#allocation7] sm:$0x1]
    %v118 = vld [vmem:[#allocation8] sm:$0x1]
    %vm119 = vcmask 261120
    %v120 = vsel %vm119, %v115, 0.0
    %121 = vadd.xlane.f32.xlu0 %v120
    %v122 = vpop.xlane.xlu0 %121
    %v123 = vsel %vm119, %v116, 0.0
    %124 = vadd.xlane.f32.xlu0 %v123
    %v125 = vpop.xlane.xlu0 %124
    %v126 = vrcp.pop 32.0
    %v127 = vmul.f32 %v122, %v126
    %v128 = vmul.f32 %v125, %v126
    %v129 = vsub.f32 %v115, %v127
    %v130 = vsub.f32 %v116, %v128
    %v131 = vmul.f32 %v129, %v129
    %v132 = vmul.f32 %v130, %v130
    %v133 = vsel %vm119, %v131, 0.0
    %134 = vadd.xlane.f32.xlu0 %v133
    %v135 = vpop.xlane.xlu0 %134
    %v136 = vsel %vm119, %v132, 0.0
    %137 = vadd.xlane.f32.xlu0 %v136
    %v138 = vpop.xlane.xlu0 %137
    %v139 = vmul.f32 %v135, %v126
    %v140 = vmul.f32 %v138, %v126
    %v141 = vadd.f32 %v139, 1e-12
    %v142 = vadd.f32 %v140, 1e-12
    %v143 = vrsqrt.pop %v141
    %v144 = vrsqrt.pop %v142
    %v145 = vmul.f32 %v129, %v143
    %v146 = vmul.f32 %v130, %v144
    %v148 = vlaneseq
    %v149 = vshrl.u32 %v148, 7
    %v150 = vsub.s32 0, %v149
    %v151 = vrot.slane %v117, %v150
    %v153 = vmul.f32 %v145, %v151
    %v154 = vmul.f32 %v146, %v151
    %v156 = vlaneseq
    %v157 = vshrl.u32 %v156, 7
    %v158 = vsub.s32 0, %v157
    %v159 = vrot.slane %v118, %v158
    %v161 = vadd.f32 %v153, %v159
    %v162 = vadd.f32 %v154, %v159
    %v163 = vld [vmem:[#allocation5] sm:$0xff]
    %v164 = vld [vmem:[#allocation5 + $0x8] sm:$0xff]
    %v165 = vld [vmem:[%s5] sm:$0xff]
    %v166 = vld [vmem:[%s5 + $0x8] sm:$0xff]
    %v167 = vld [vmem:[%s5 + $0x10] sm:$0xff]
    %v168 = vld [vmem:[%s5 + $0x18] sm:$0xff]
    %v169 = vld [vmem:[%s6] sm:$0x1]
    %v171 = vlaneseq
    %v172 = vshrl.u32 %v171, 7
    %v173 = vsub.s32 0, %v172
    %v174 = vrot.slane %v169, %v173
    %v177 = vsel %vm119, %v161, 0
    %v180 = vsel %vm119, %v162, 0
    %182 = vmatprep.subr.mxu0 0.0
    %183 = vmatpush1.msra.mxu0 %v165
    %184 = vmatprep.subr.mxu0 0.0
    %185 = vmatpush1.msra.mxu0 %v166
    %186 = vmatprep.subr.mxu0 0.0
    %187 = vmatpush1.msra.mxu0 %v167
    %188 = vmatprep.subr.mxu0 0.0
    %189 = vmatpush1.msra.mxu0 %v168
    %190 = vmatprep.subr.mxu0 0.0
    %191 = vmatpush1.msra.mxu0 0.0
    %192 = vmatprep.subr.mxu0 0.0
    %193 = vmatpush1.msra.mxu0 0.0
    %194 = vmatprep.subr.mxu0 0.0
    %195 = vmatpush1.msra.mxu0 0.0
    %196 = vmatprep.subr.mxu0 0.0
    %197 = vmatpush1.msra.mxu0 0.0
    %198 = vmatprep.subr.mxu0 0.0
    %199 = vmatpush1.msra.mxu0 0.0
    %200 = vmatprep.subr.mxu0 0.0
    %201 = vmatpush1.msra.mxu0 0.0
    %202 = vmatprep.subr.mxu0 0.0
    %203 = vmatpush1.msra.mxu0 0.0
    %204 = vmatprep.subr.mxu0 0.0
    %205 = vmatpush1.msra.mxu0 0.0
    %206 = vmatprep.subr.mxu0 0.0
    %207 = vmatpush1.msra.mxu0 0.0
    %208 = vmatprep.subr.mxu0 0.0
    %209 = vmatpush1.msra.mxu0 0.0
    %210 = vmatprep.subr.mxu0 0.0
    %211 = vmatpush1.msra.mxu0 0.0
    %212 = vmatprep.subr.mxu0 0.0
    %213 = vmatpush1.msra.mxu0 0.0
    %214 = vmatprep.subr.mxu0 0.0
    %215 = vmatpush1.msra.mxu0 0.0
    %216 = vmatprep.subr.mxu0 0.0
    %217 = vmatpush1.msra.mxu0 0.0
    %218 = vmatprep.subr.mxu0 0.0
    %219 = vmatpush1.msra.mxu0 0.0
    %220 = vmatprep.subr.mxu0 0.0
    %221 = vmatpush1.msra.mxu0 0.0
    %222 = vmatprep.subr.mxu0 0.0
    %223 = vmatpush1.msra.mxu0 0.0
    %224 = vmatprep.subr.mxu0 0.0
    %225 = vmatpush1.msra.mxu0 0.0
    %226 = vmatprep.subr.mxu0 0.0
    %227 = vmatpush1.msra.mxu0 0.0
    %228 = vmatprep.subr.mxu0 0.0
    %229 = vmatpush1.msra.mxu0 0.0
    %230 = vmatprep.subr.mxu0 0.0
    %231 = vmatpush1.msra.mxu0 0.0
    %232 = vmatprep.subr.mxu0 0.0
    %233 = vmatpush1.msra.mxu0 0.0
    %234 = vmatprep.subr.mxu0 0.0
    %235 = vmatpush1.msra.mxu0 0.0
    %236 = vmatprep.subr.mxu0 0.0
    %237 = vmatpush1.msra.mxu0 0.0
    %238 = vmatprep.subr.mxu0 0.0
    %239 = vmatpush1.msra.mxu0 0.0
    %240 = vmatprep.subr.mxu0 0.0
    %241 = vmatpush1.msra.mxu0 0.0
    %242 = vmatprep.subr.mxu0 0.0
    %243 = vmatpush1.msra.mxu0 0.0
    %244 = vmatprep.subr.mxu0 0.0
    %245 = vmatpush1.msra.mxu0 0.0
    %246 = vmatprep.mubr.f32.mxu0 0.0
    %247 = vmatmul.mubr.f32.gmra.mrb[0].mxu0 %v177
    %v248 = vpop.f32.mrb[0].mxu0
    %v249 = vadd.f32 %v174, %v248
    %v250 = vpop.f32.mrb[0].mxu0
    %251 = vmatprep.mubr.f32.mxu0 0.0
    %252 = vmatmul.mubr.f32.gmra.mrb[0].mxu0 %v180
    %v253 = vpop.f32.mrb[0].mxu0
    %v254 = vadd.f32 %v174, %v253
    %v255 = vpop.f32.mrb[0].mxu0
    %256 = vdwg.mxu0
    %259 = vrot.lane.b32.xlu0 %v249, 96
    %v260 = vpop.permute.xlu0 %259
    %261 = vrot.lane.b32.xlu0 %v254, 96
    %v262 = vpop.permute.xlu0 %261
    %vm263 = vcmask 64512
    %v264 = vsel %vm263, %v249, 0
    %v266 = vsel %vm263, %v254, 0
    %v268 = vsel %vm263, %v260, 0
    %v270 = vsel %vm263, %v262, 0
    %272 = vmatprep.subr.mxu0 0.0
    %273 = vmatpush1.xpose.msra.mxu0 %v268
    %274 = vmatprep.subr.mxu0 0.0
    %275 = vmatpush1.xpose.msra.mxu0 %v270
    %276 = vmatprep.subr.mxu0 0.0
    %277 = vmatpush1.xpose.msra.mxu0 0.0
    %278 = vmatprep.subr.mxu0 0.0
    %279 = vmatpush1.xpose.msra.mxu0 0.0
    %280 = vmatprep.subr.mxu0 0.0
    %281 = vmatpush1.xpose.msra.mxu0 0.0
    %282 = vmatprep.subr.mxu0 0.0
    %283 = vmatpush1.xpose.msra.mxu0 0.0
    %284 = vmatprep.subr.mxu0 0.0
    %285 = vmatpush1.xpose.msra.mxu0 0.0
    %286 = vmatprep.subr.mxu0 0.0
    %287 = vmatpush1.xpose.msra.mxu0 0.0
    %288 = vmatprep.subr.mxu0 0.0
    %289 = vmatpush1.xpose.msra.mxu0 0.0
    %290 = vmatprep.subr.mxu0 0.0
    %291 = vmatpush1.xpose.msra.mxu0 0.0
    %292 = vmatprep.subr.mxu0 0.0
    %293 = vmatpush1.xpose.msra.mxu0 0.0
    %294 = vmatprep.subr.mxu0 0.0
    %295 = vmatpush1.xpose.msra.mxu0 0.0
    %296 = vmatprep.subr.mxu0 0.0
    %297 = vmatpush1.xpose.msra.mxu0 0.0
    %298 = vmatprep.subr.mxu0 0.0
    %299 = vmatpush1.xpose.msra.mxu0 0.0
    %300 = vmatprep.subr.mxu0 0.0
    %301 = vmatpush1.xpose.msra.mxu0 0.0
    %302 = vmatprep.subr.mxu0 0.0
    %303 = vmatpush1.xpose.msra.mxu0 0.0
    %304 = vmatprep.subr.mxu0 0.0
    %305 = vmatpush1.xpose.msra.mxu0 0.0
    %306 = vmatprep.subr.mxu0 0.0
    %307 = vmatpush1.xpose.msra.mxu0 0.0
    %308 = vmatprep.subr.mxu0 0.0
    %309 = vmatpush1.xpose.msra.mxu0 0.0
    %310 = vmatprep.subr.mxu0 0.0
    %311 = vmatpush1.xpose.msra.mxu0 0.0
    %312 = vmatprep.subr.mxu0 0.0
    %313 = vmatpush1.xpose.msra.mxu0 0.0
    %314 = vmatprep.subr.mxu0 0.0
    %315 = vmatpush1.xpose.msra.mxu0 0.0
    %316 = vmatprep.subr.mxu0 0.0
    %317 = vmatpush1.xpose.msra.mxu0 0.0
    %318 = vmatprep.subr.mxu0 0.0
    %319 = vmatpush1.xpose.msra.mxu0 0.0
    %320 = vmatprep.subr.mxu0 0.0
    %321 = vmatpush1.xpose.msra.mxu0 0.0
    %322 = vmatprep.subr.mxu0 0.0
    %323 = vmatpush1.xpose.msra.mxu0 0.0
    %324 = vmatprep.subr.mxu0 0.0
    %325 = vmatpush1.xpose.msra.mxu0 0.0
    %326 = vmatprep.subr.mxu0 0.0
    %327 = vmatpush1.xpose.msra.mxu0 0.0
    %328 = vmatprep.subr.mxu0 0.0
    %329 = vmatpush1.xpose.msra.mxu0 0.0
    %330 = vmatprep.subr.mxu0 0.0
    %331 = vmatpush1.xpose.msra.mxu0 0.0
    %332 = vmatprep.subr.mxu0 0.0
    %333 = vmatpush1.xpose.msra.mxu0 0.0
    %334 = vmatprep.subr.mxu0 0.0
    %335 = vmatpush1.xpose.msra.mxu0 0.0
    %336 = vmatprep.mubr.f32.mxu0 0.0
    %337 = vmatmul.mubr.f32.gmra.mrb[0].mxu0 %v264
    %v338 = vpop.f32.mrb[0].mxu0
    %v339 = vadd.f32 0.0, %v338
    %v340 = vpop.f32.mrb[0].mxu0
    %341 = vmatprep.mubr.f32.mxu0 0.0
    %342 = vmatmul.mubr.f32.gmra.mrb[0].mxu0 %v266
    %v343 = vpop.f32.mrb[0].mxu0
    %v344 = vadd.f32 0.0, %v343
    %v345 = vpop.f32.mrb[0].mxu0
    %346 = vdwg.mxu0
    %v347 = vmul.f32 %v339, 0.35355338
    %v348 = vmul.f32 %v344, 0.35355338
    %v349 = vadd.f32 %v347, %v163
    %v350 = vadd.f32 %v348, %v164
    %vm351 = vcmask 130048
    %v352 = vsel %vm351, %v349, -inf
    %353 = vmax.xlane.f32.xlu0 %v352
    %v354 = vpop.xlane.xlu0 %353
    %v355 = vsel %vm351, %v350, -inf
    %356 = vmax.xlane.f32.xlu0 %v355
    %v357 = vpop.xlane.xlu0 %356
    %v358 = vsub.f32 %v349, %v354
    %v359 = vsub.f32 %v350, %v357
    %v360 = vmul.f32 %v358, 1.442695
    %v361 = vpow.pop %v360
    %v362 = vmul.f32 %v359, 1.442695
    %v363 = vpow.pop %v362
    %v364 = vsel %vm351, %v361, 0.0
    %365 = vadd.xlane.f32.xlu0 %v364
    %v366 = vpop.xlane.xlu0 %365
    %v367 = vsel %vm351, %v363, 0.0
    %368 = vadd.xlane.f32.xlu0 %v367
    %v369 = vpop.xlane.xlu0 %368
    %v370 = vrcp.pop %v366
    %v371 = vrcp.pop %v369
    %v372 = vmul.f32 %v361, %v370
    %v373 = vmul.f32 %v363, %v371
    %374 = vrot.lane.b32.xlu0 %v249, 64
    %v375 = vpop.permute.xlu0 %374
    %376 = vrot.lane.b32.xlu0 %v254, 64
    %v377 = vpop.permute.xlu0 %376
    %v381 = vsel %vm351, %v372, 0
    %v384 = vsel %vm351, %v373, 0
    %386 = vmatprep.subr.mxu0 0.0
    %387 = vmatpush1.msra.mxu0 %v375
    %388 = vmatprep.subr.mxu0 0.0
    %389 = vmatpush1.msra.mxu0 %v377
    %390 = vmatprep.subr.mxu0 0.0
    %391 = vmatpush1.msra.mxu0 0.0
    %392 = vmatprep.subr.mxu0 0.0
    %393 = vmatpush1.msra.mxu0 0.0
    %394 = vmatprep.subr.mxu0 0.0
    %395 = vmatpush1.msra.mxu0 0.0
    %396 = vmatprep.subr.mxu0 0.0
    %397 = vmatpush1.msra.mxu0 0.0
    %398 = vmatprep.subr.mxu0 0.0
    %399 = vmatpush1.msra.mxu0 0.0
    %400 = vmatprep.subr.mxu0 0.0
    %401 = vmatpush1.msra.mxu0 0.0
    %402 = vmatprep.subr.mxu0 0.0
    %403 = vmatpush1.msra.mxu0 0.0
    %404 = vmatprep.subr.mxu0 0.0
    %405 = vmatpush1.msra.mxu0 0.0
    %406 = vmatprep.subr.mxu0 0.0
    %407 = vmatpush1.msra.mxu0 0.0
    %408 = vmatprep.subr.mxu0 0.0
    %409 = vmatpush1.msra.mxu0 0.0
    %410 = vmatprep.subr.mxu0 0.0
    %411 = vmatpush1.msra.mxu0 0.0
    %412 = vmatprep.subr.mxu0 0.0
    %413 = vmatpush1.msra.mxu0 0.0
    %414 = vmatprep.subr.mxu0 0.0
    %415 = vmatpush1.msra.mxu0 0.0
    %416 = vmatprep.subr.mxu0 0.0
    %417 = vmatpush1.msra.mxu0 0.0
    %418 = vmatprep.subr.mxu0 0.0
    %419 = vmatpush1.msra.mxu0 0.0
    %420 = vmatprep.subr.mxu0 0.0
    %421 = vmatpush1.msra.mxu0 0.0
    %422 = vmatprep.subr.mxu0 0.0
    %423 = vmatpush1.msra.mxu0 0.0
    %424 = vmatprep.subr.mxu0 0.0
    %425 = vmatpush1.msra.mxu0 0.0
    %426 = vmatprep.subr.mxu0 0.0
    %427 = vmatpush1.msra.mxu0 0.0
    %428 = vmatprep.subr.mxu0 0.0
    %429 = vmatpush1.msra.mxu0 0.0
    %430 = vmatprep.subr.mxu0 0.0
    %431 = vmatpush1.msra.mxu0 0.0
    %432 = vmatprep.subr.mxu0 0.0
    %433 = vmatpush1.msra.mxu0 0.0
    %434 = vmatprep.subr.mxu0 0.0
    %435 = vmatpush1.msra.mxu0 0.0
    %436 = vmatprep.subr.mxu0 0.0
    %437 = vmatpush1.msra.mxu0 0.0
    %438 = vmatprep.subr.mxu0 0.0
    %439 = vmatpush1.msra.mxu0 0.0
    %440 = vmatprep.subr.mxu0 0.0
    %441 = vmatpush1.msra.mxu0 0.0
    %442 = vmatprep.subr.mxu0 0.0
    %443 = vmatpush1.msra.mxu0 0.0
    %444 = vmatprep.subr.mxu0 0.0
    %445 = vmatpush1.msra.mxu0 0.0
    %446 = vmatprep.subr.mxu0 0.0
    %447 = vmatpush1.msra.mxu0 0.0
    %448 = vmatprep.subr.mxu0 0.0
    %449 = vmatpush1.msra.mxu0 0.0
    %450 = vmatprep.mubr.f32.mxu0 0.0
    %451 = vmatmul.mubr.f32.gmra.mrb[0].mxu0 %v381
    %v452 = vpop.f32.mrb[0].mxu0
    %v453 = vadd.f32 0.0, %v452
    %v454 = vpop.f32.mrb[0].mxu0
    %455 = vmatprep.mubr.f32.mxu0 0.0
    %456 = vmatmul.mubr.f32.gmra.mrb[0].mxu0 %v384
    %v457 = vpop.f32.mrb[0].mxu0
    %v458 = vadd.f32 0.0, %v457
    %v459 = vpop.f32.mrb[0].mxu0
    %460 = vdwg.mxu0
    %461 = vrot.lane.b32.xlu0 %v249, 120
    %v462 = vpop.permute.xlu0 %461
    %463 = vrot.lane.b32.xlu0 %v254, 120
    %v464 = vpop.permute.xlu0 %463
    %465 = vrot.lane.b32.xlu0 %v249, 88
    %v466 = vpop.permute.xlu0 %465
    %467 = vrot.lane.b32.xlu0 %v254, 88
    %v468 = vpop.permute.xlu0 %467
    %v469 = vsel %vm263, %v462, 0
    %v471 = vsel %vm263, %v464, 0
    %v473 = vsel %vm263, %v466, 0
    %v475 = vsel %vm263, %v468, 0
    %477 = vmatprep.subr.mxu0 0.0
    %478 = vmatpush1.xpose.msra.mxu0 %v473
    %479 = vmatprep.subr.mxu0 0.0
    %480 = vmatpush1.xpose.msra.mxu0 %v475
    %481 = vmatprep.subr.mxu0 0.0
    %482 = vmatpush1.xpose.msra.mxu0 0.0
    %483 = vmatprep.subr.mxu0 0.0
    %484 = vmatpush1.xpose.msra.mxu0 0.0
    %485 = vmatprep.subr.mxu0 0.0
    %486 = vmatpush1.xpose.msra.mxu0 0.0
    %487 = vmatprep.subr.mxu0 0.0
    %488 = vmatpush1.xpose.msra.mxu0 0.0
    %489 = vmatprep.subr.mxu0 0.0
    %490 = vmatpush1.xpose.msra.mxu0 0.0
    %491 = vmatprep.subr.mxu0 0.0
    %492 = vmatpush1.xpose.msra.mxu0 0.0
    %493 = vmatprep.subr.mxu0 0.0
    %494 = vmatpush1.xpose.msra.mxu0 0.0
    %495 = vmatprep.subr.mxu0 0.0
    %496 = vmatpush1.xpose.msra.mxu0 0.0
    %497 = vmatprep.subr.mxu0 0.0
    %498 = vmatpush1.xpose.msra.mxu0 0.0
    %499 = vmatprep.subr.mxu0 0.0
    %500 = vmatpush1.xpose.msra.mxu0 0.0
    %501 = vmatprep.subr.mxu0 0.0
    %502 = vmatpush1.xpose.msra.mxu0 0.0
    %503 = vmatprep.subr.mxu0 0.0
    %504 = vmatpush1.xpose.msra.mxu0 0.0
    %505 = vmatprep.subr.mxu0 0.0
    %506 = vmatpush1.xpose.msra.mxu0 0.0
    %507 = vmatprep.subr.mxu0 0.0
    %508 = vmatpush1.xpose.msra.mxu0 0.0
    %509 = vmatprep.subr.mxu0 0.0
    %510 = vmatpush1.xpose.msra.mxu0 0.0
    %511 = vmatprep.subr.mxu0 0.0
    %512 = vmatpush1.xpose.msra.mxu0 0.0
    %513 = vmatprep.subr.mxu0 0.0
    %514 = vmatpush1.xpose.msra.mxu0 0.0
    %515 = vmatprep.subr.mxu0 0.0
    %516 = vmatpush1.xpose.msra.mxu0 0.0
    %517 = vmatprep.subr.mxu0 0.0
    %518 = vmatpush1.xpose.msra.mxu0 0.0
    %519 = vmatprep.subr.mxu0 0.0
    %520 = vmatpush1.xpose.msra.mxu0 0.0
    %521 = vmatprep.subr.mxu0 0.0
    %522 = vmatpush1.xpose.msra.mxu0 0.0
    %523 = vmatprep.subr.mxu0 0.0
    %524 = vmatpush1.xpose.msra.mxu0 0.0
    %525 = vmatprep.subr.mxu0 0.0
    %526 = vmatpush1.xpose.msra.mxu0 0.0
    %527 = vmatprep.subr.mxu0 0.0
    %528 = vmatpush1.xpose.msra.mxu0 0.0
    %529 = vmatprep.subr.mxu0 0.0
    %530 = vmatpush1.xpose.msra.mxu0 0.0
    %531 = vmatprep.subr.mxu0 0.0
    %532 = vmatpush1.xpose.msra.mxu0 0.0
    %533 = vmatprep.subr.mxu0 0.0
    %534 = vmatpush1.xpose.msra.mxu0 0.0
    %535 = vmatprep.subr.mxu0 0.0
    %536 = vmatpush1.xpose.msra.mxu0 0.0
    %537 = vmatprep.subr.mxu0 0.0
    %538 = vmatpush1.xpose.msra.mxu0 0.0
    %539 = vmatprep.subr.mxu0 0.0
    %540 = vmatpush1.xpose.msra.mxu0 0.0
    %541 = vmatprep.mubr.f32.mxu0 0.0
    %542 = vmatmul.mubr.f32.gmra.mrb[0].mxu0 %v469
    %v543 = vpop.f32.mrb[0].mxu0
    %v544 = vadd.f32 0.0, %v543
    %v545 = vpop.f32.mrb[0].mxu0
    %546 = vmatprep.mubr.f32.mxu0 0.0
    %547 = vmatmul.mubr.f32.gmra.mrb[0].mxu0 %v471
    %v548 = vpop.f32.mrb[0].mxu0
    %v549 = vadd.f32 0.0, %v548
    %v550 = vpop.f32.mrb[0].mxu0
    %551 = vdwg.mxu0
    %v552 = vmul.f32 %v544, 0.35355338
    %v553 = vmul.f32 %v549, 0.35355338
    %v554 = vadd.f32 %v552, %v163
    %v555 = vadd.f32 %v553, %v164
    %v556 = vsel %vm351, %v554, -inf
    %557 = vmax.xlane.f32.xlu0 %v556
    %v558 = vpop.xlane.xlu0 %557
    %v559 = vsel %vm351, %v555, -inf
    %560 = vmax.xlane.f32.xlu0 %v559
    %v561 = vpop.xlane.xlu0 %560
    %v562 = vsub.f32 %v554, %v558
    %v563 = vsub.f32 %v555, %v561
    %v564 = vmul.f32 %v562, 1.442695
    %v565 = vpow.pop %v564
    %v566 = vmul.f32 %v563, 1.442695
    %v567 = vpow.pop %v566
    %v568 = vsel %vm351, %v565, 0.0
    %569 = vadd.xlane.f32.xlu0 %v568
    %v570 = vpop.xlane.xlu0 %569
    %v571 = vsel %vm351, %v567, 0.0
    %572 = vadd.xlane.f32.xlu0 %v571
    %v573 = vpop.xlane.xlu0 %572
    %v574 = vrcp.pop %v570
    %v575 = vrcp.pop %v573
    %v576 = vmul.f32 %v565, %v574
    %v577 = vmul.f32 %v567, %v575
    %578 = vrot.lane.b32.xlu0 %v249, 56
    %v579 = vpop.permute.xlu0 %578
    %580 = vrot.lane.b32.xlu0 %v254, 56
    %v581 = vpop.permute.xlu0 %580
    %v585 = vsel %vm351, %v576, 0
    %v588 = vsel %vm351, %v577, 0
    %590 = vmatprep.subr.mxu0 0.0
    %591 = vmatpush1.msra.mxu0 %v579
    %592 = vmatprep.subr.mxu0 0.0
    %593 = vmatpush1.msra.mxu0 %v581
    %594 = vmatprep.subr.mxu0 0.0
    %595 = vmatpush1.msra.mxu0 0.0
    %596 = vmatprep.subr.mxu0 0.0
    %597 = vmatpush1.msra.mxu0 0.0
    %598 = vmatprep.subr.mxu0 0.0
    %599 = vmatpush1.msra.mxu0 0.0
    %600 = vmatprep.subr.mxu0 0.0
    %601 = vmatpush1.msra.mxu0 0.0
    %602 = vmatprep.subr.mxu0 0.0
    %603 = vmatpush1.msra.mxu0 0.0
    %604 = vmatprep.subr.mxu0 0.0
    %605 = vmatpush1.msra.mxu0 0.0
    %606 = vmatprep.subr.mxu0 0.0
    %607 = vmatpush1.msra.mxu0 0.0
    %608 = vmatprep.subr.mxu0 0.0
    %609 = vmatpush1.msra.mxu0 0.0
    %610 = vmatprep.subr.mxu0 0.0
    %611 = vmatpush1.msra.mxu0 0.0
    %612 = vmatprep.subr.mxu0 0.0
    %613 = vmatpush1.msra.mxu0 0.0
    %614 = vmatprep.subr.mxu0 0.0
    %615 = vmatpush1.msra.mxu0 0.0
    %616 = vmatprep.subr.mxu0 0.0
    %617 = vmatpush1.msra.mxu0 0.0
    %618 = vmatprep.subr.mxu0 0.0
    %619 = vmatpush1.msra.mxu0 0.0
    %620 = vmatprep.subr.mxu0 0.0
    %621 = vmatpush1.msra.mxu0 0.0
    %622 = vmatprep.subr.mxu0 0.0
    %623 = vmatpush1.msra.mxu0 0.0
    %624 = vmatprep.subr.mxu0 0.0
    %625 = vmatpush1.msra.mxu0 0.0
    %626 = vmatprep.subr.mxu0 0.0
    %627 = vmatpush1.msra.mxu0 0.0
    %628 = vmatprep.subr.mxu0 0.0
    %629 = vmatpush1.msra.mxu0 0.0
    %630 = vmatprep.subr.mxu0 0.0
    %631 = vmatpush1.msra.mxu0 0.0
    %632 = vmatprep.subr.mxu0 0.0
    %633 = vmatpush1.msra.mxu0 0.0
    %634 = vmatprep.subr.mxu0 0.0
    %635 = vmatpush1.msra.mxu0 0.0
    %636 = vmatprep.subr.mxu0 0.0
    %637 = vmatpush1.msra.mxu0 0.0
    %638 = vmatprep.subr.mxu0 0.0
    %639 = vmatpush1.msra.mxu0 0.0
    %640 = vmatprep.subr.mxu0 0.0
    %641 = vmatpush1.msra.mxu0 0.0
    %642 = vmatprep.subr.mxu0 0.0
    %643 = vmatpush1.msra.mxu0 0.0
    %644 = vmatprep.subr.mxu0 0.0
    %645 = vmatpush1.msra.mxu0 0.0
    %646 = vmatprep.subr.mxu0 0.0
    %647 = vmatpush1.msra.mxu0 0.0
    %648 = vmatprep.subr.mxu0 0.0
    %649 = vmatpush1.msra.mxu0 0.0
    %650 = vmatprep.subr.mxu0 0.0
    %651 = vmatpush1.msra.mxu0 0.0
    %652 = vmatprep.subr.mxu0 0.0
    %653 = vmatpush1.msra.mxu0 0.0
    %654 = vmatprep.mubr.f32.mxu0 0.0
    %655 = vmatmul.mubr.f32.gmra.mrb[0].mxu0 %v585
    %v656 = vpop.f32.mrb[0].mxu0
    %v657 = vadd.f32 0.0, %v656
    %v658 = vpop.f32.mrb[0].mxu0
    %659 = vmatprep.mubr.f32.mxu0 0.0
    %660 = vmatmul.mubr.f32.gmra.mrb[0].mxu0 %v588
    %v661 = vpop.f32.mrb[0].mxu0
    %v662 = vadd.f32 0.0, %v661
    %v663 = vpop.f32.mrb[0].mxu0
    %664 = vdwg.mxu0
    %665 = vrot.lane.b32.xlu0 %v249, 112
    %v666 = vpop.permute.xlu0 %665
    %667 = vrot.lane.b32.xlu0 %v254, 112
    %v668 = vpop.permute.xlu0 %667
    %669 = vrot.lane.b32.xlu0 %v249, 80
    %v670 = vpop.permute.xlu0 %669
    %671 = vrot.lane.b32.xlu0 %v254, 80
    %v672 = vpop.permute.xlu0 %671
    %v673 = vsel %vm263, %v666, 0
    %v675 = vsel %vm263, %v668, 0
    %v677 = vsel %vm263, %v670, 0
    %v679 = vsel %vm263, %v672, 0
    %681 = vmatprep.subr.mxu0 0.0
    %682 = vmatpush1.xpose.msra.mxu0 %v677
    %683 = vmatprep.subr.mxu0 0.0
    %684 = vmatpush1.xpose.msra.mxu0 %v679
    %685 = vmatprep.subr.mxu0 0.0
    %686 = vmatpush1.xpose.msra.mxu0 0.0
    %687 = vmatprep.subr.mxu0 0.0
    %688 = vmatpush1.xpose.msra.mxu0 0.0
    %689 = vmatprep.subr.mxu0 0.0
    %690 = vmatpush1.xpose.msra.mxu0 0.0
    %691 = vmatprep.subr.mxu0 0.0
    %692 = vmatpush1.xpose.msra.mxu0 0.0
    %693 = vmatprep.subr.mxu0 0.0
    %694 = vmatpush1.xpose.msra.mxu0 0.0
    %695 = vmatprep.subr.mxu0 0.0
    %696 = vmatpush1.xpose.msra.mxu0 0.0
    %697 = vmatprep.subr.mxu0 0.0
    %698 = vmatpush1.xpose.msra.mxu0 0.0
    %699 = vmatprep.subr.mxu0 0.0
    %700 = vmatpush1.xpose.msra.mxu0 0.0
    %701 = vmatprep.subr.mxu0 0.0
    %702 = vmatpush1.xpose.msra.mxu0 0.0
    %703 = vmatprep.subr.mxu0 0.0
    %704 = vmatpush1.xpose.msra.mxu0 0.0
    %705 = vmatprep.subr.mxu0 0.0
    %706 = vmatpush1.xpose.msra.mxu0 0.0
    %707 = vmatprep.subr.mxu0 0.0
    %708 = vmatpush1.xpose.msra.mxu0 0.0
    %709 = vmatprep.subr.mxu0 0.0
    %710 = vmatpush1.xpose.msra.mxu0 0.0
    %711 = vmatprep.subr.mxu0 0.0
    %712 = vmatpush1.xpose.msra.mxu0 0.0
    %713 = vmatprep.subr.mxu0 0.0
    %714 = vmatpush1.xpose.msra.mxu0 0.0
    %715 = vmatprep.subr.mxu0 0.0
    %716 = vmatpush1.xpose.msra.mxu0 0.0
    %717 = vmatprep.subr.mxu0 0.0
    %718 = vmatpush1.xpose.msra.mxu0 0.0
    %719 = vmatprep.subr.mxu0 0.0
    %720 = vmatpush1.xpose.msra.mxu0 0.0
    %721 = vmatprep.subr.mxu0 0.0
    %722 = vmatpush1.xpose.msra.mxu0 0.0
    %723 = vmatprep.subr.mxu0 0.0
    %724 = vmatpush1.xpose.msra.mxu0 0.0
    %725 = vmatprep.subr.mxu0 0.0
    %726 = vmatpush1.xpose.msra.mxu0 0.0
    %727 = vmatprep.subr.mxu0 0.0
    %728 = vmatpush1.xpose.msra.mxu0 0.0
    %729 = vmatprep.subr.mxu0 0.0
    %730 = vmatpush1.xpose.msra.mxu0 0.0
    %731 = vmatprep.subr.mxu0 0.0
    %732 = vmatpush1.xpose.msra.mxu0 0.0
    %733 = vmatprep.subr.mxu0 0.0
    %734 = vmatpush1.xpose.msra.mxu0 0.0
    %735 = vmatprep.subr.mxu0 0.0
    %736 = vmatpush1.xpose.msra.mxu0 0.0
    %737 = vmatprep.subr.mxu0 0.0
    %738 = vmatpush1.xpose.msra.mxu0 0.0
    %739 = vmatprep.subr.mxu0 0.0
    %740 = vmatpush1.xpose.msra.mxu0 0.0
    %741 = vmatprep.subr.mxu0 0.0
    %742 = vmatpush1.xpose.msra.mxu0 0.0
    %743 = vmatprep.subr.mxu0 0.0
    %744 = vmatpush1.xpose.msra.mxu0 0.0
    %745 = vmatprep.mubr.f32.mxu0 0.0
    %746 = vmatmul.mubr.f32.gmra.mrb[0].mxu0 %v673
    %v747 = vpop.f32.mrb[0].mxu0
    %v748 = vadd.f32 0.0, %v747
    %v749 = vpop.f32.mrb[0].mxu0
    %750 = vmatprep.mubr.f32.mxu0 0.0
    %751 = vmatmul.mubr.f32.gmra.mrb[0].mxu0 %v675
    %v752 = vpop.f32.mrb[0].mxu0
    %v753 = vadd.f32 0.0, %v752
    %v754 = vpop.f32.mrb[0].mxu0
    %755 = vdwg.mxu0
    %v756 = vmul.f32 %v748, 0.35355338
    %v757 = vmul.f32 %v753, 0.35355338
    %v758 = vadd.f32 %v756, %v163
    %v759 = vadd.f32 %v757, %v164
    %v760 = vsel %vm351, %v758, -inf
    %761 = vmax.xlane.f32.xlu0 %v760
    %v762 = vpop.xlane.xlu0 %761
    %v763 = vsel %vm351, %v759, -inf
    %764 = vmax.xlane.f32.xlu0 %v763
    %v765 = vpop.xlane.xlu0 %764
    %v766 = vsub.f32 %v758, %v762
    %v767 = vsub.f32 %v759, %v765
    %v768 = vmul.f32 %v766, 1.442695
    %v769 = vpow.pop %v768
    %v770 = vmul.f32 %v767, 1.442695
    %v771 = vpow.pop %v770
    %v772 = vsel %vm351, %v769, 0.0
    %773 = vadd.xlane.f32.xlu0 %v772
    %v774 = vpop.xlane.xlu0 %773
    %v775 = vsel %vm351, %v771, 0.0
    %776 = vadd.xlane.f32.xlu0 %v775
    %v777 = vpop.xlane.xlu0 %776
    %v778 = vrcp.pop %v774
    %v779 = vrcp.pop %v777
    %v780 = vmul.f32 %v769, %v778
    %v781 = vmul.f32 %v771, %v779
    %782 = vrot.lane.b32.xlu0 %v249, 48
    %v783 = vpop.permute.xlu0 %782
    %784 = vrot.lane.b32.xlu0 %v254, 48
    %v785 = vpop.permute.xlu0 %784
    %v789 = vsel %vm351, %v780, 0
    %v792 = vsel %vm351, %v781, 0
    %794 = vmatprep.subr.mxu0 0.0
    %795 = vmatpush1.msra.mxu0 %v783
    %796 = vmatprep.subr.mxu0 0.0
    %797 = vmatpush1.msra.mxu0 %v785
    %798 = vmatprep.subr.mxu0 0.0
    %799 = vmatpush1.msra.mxu0 0.0
    %800 = vmatprep.subr.mxu0 0.0
    %801 = vmatpush1.msra.mxu0 0.0
    %802 = vmatprep.subr.mxu0 0.0
    %803 = vmatpush1.msra.mxu0 0.0
    %804 = vmatprep.subr.mxu0 0.0
    %805 = vmatpush1.msra.mxu0 0.0
    %806 = vmatprep.subr.mxu0 0.0
    %807 = vmatpush1.msra.mxu0 0.0
    %808 = vmatprep.subr.mxu0 0.0
    %809 = vmatpush1.msra.mxu0 0.0
    %810 = vmatprep.subr.mxu0 0.0
    %811 = vmatpush1.msra.mxu0 0.0
    %812 = vmatprep.subr.mxu0 0.0
    %813 = vmatpush1.msra.mxu0 0.0
    %814 = vmatprep.subr.mxu0 0.0
    %815 = vmatpush1.msra.mxu0 0.0
    %816 = vmatprep.subr.mxu0 0.0
    %817 = vmatpush1.msra.mxu0 0.0
    %818 = vmatprep.subr.mxu0 0.0
    %819 = vmatpush1.msra.mxu0 0.0
    %820 = vmatprep.subr.mxu0 0.0
    %821 = vmatpush1.msra.mxu0 0.0
    %822 = vmatprep.subr.mxu0 0.0
    %823 = vmatpush1.msra.mxu0 0.0
    %824 = vmatprep.subr.mxu0 0.0
    %825 = vmatpush1.msra.mxu0 0.0
    %826 = vmatprep.subr.mxu0 0.0
    %827 = vmatpush1.msra.mxu0 0.0
    %828 = vmatprep.subr.mxu0 0.0
    %829 = vmatpush1.msra.mxu0 0.0
    %830 = vmatprep.subr.mxu0 0.0
    %831 = vmatpush1.msra.mxu0 0.0
    %832 = vmatprep.subr.mxu0 0.0
    %833 = vmatpush1.msra.mxu0 0.0
    %834 = vmatprep.subr.mxu0 0.0
    %835 = vmatpush1.msra.mxu0 0.0
    %836 = vmatprep.subr.mxu0 0.0
    %837 = vmatpush1.msra.mxu0 0.0
    %838 = vmatprep.subr.mxu0 0.0
    %839 = vmatpush1.msra.mxu0 0.0
    %840 = vmatprep.subr.mxu0 0.0
    %841 = vmatpush1.msra.mxu0 0.0
    %842 = vmatprep.subr.mxu0 0.0
    %843 = vmatpush1.msra.mxu0 0.0
    %844 = vmatprep.subr.mxu0 0.0
    %845 = vmatpush1.msra.mxu0 0.0
    %846 = vmatprep.subr.mxu0 0.0
    %847 = vmatpush1.msra.mxu0 0.0
    %848 = vmatprep.subr.mxu0 0.0
    %849 = vmatpush1.msra.mxu0 0.0
    %850 = vmatprep.subr.mxu0 0.0
    %851 = vmatpush1.msra.mxu0 0.0
    %852 = vmatprep.subr.mxu0 0.0
    %853 = vmatpush1.msra.mxu0 0.0
    %854 = vmatprep.subr.mxu0 0.0
    %855 = vmatpush1.msra.mxu0 0.0
    %856 = vmatprep.subr.mxu0 0.0
    %857 = vmatpush1.msra.mxu0 0.0
    %858 = vmatprep.mubr.f32.mxu0 0.0
    %859 = vmatmul.mubr.f32.gmra.mrb[0].mxu0 %v789
    %v860 = vpop.f32.mrb[0].mxu0
    %v861 = vadd.f32 0.0, %v860
    %v862 = vpop.f32.mrb[0].mxu0
    %863 = vmatprep.mubr.f32.mxu0 0.0
    %864 = vmatmul.mubr.f32.gmra.mrb[0].mxu0 %v792
    %v865 = vpop.f32.mrb[0].mxu0
    %v866 = vadd.f32 0.0, %v865
    %v867 = vpop.f32.mrb[0].mxu0
    %868 = vdwg.mxu0
    %869 = vrot.lane.b32.xlu0 %v249, 104
    %v870 = vpop.permute.xlu0 %869
    %871 = vrot.lane.b32.xlu0 %v254, 104
    %v872 = vpop.permute.xlu0 %871
    %873 = vrot.lane.b32.xlu0 %v249, 72
    %v874 = vpop.permute.xlu0 %873
    %875 = vrot.lane.b32.xlu0 %v254, 72
    %v876 = vpop.permute.xlu0 %875
    %v877 = vsel %vm263, %v870, 0
    %v879 = vsel %vm263, %v872, 0
    %v881 = vsel %vm263, %v874, 0
    %v883 = vsel %vm263, %v876, 0
    %885 = vmatprep.subr.mxu0 0.0
    %886 = vmatpush1.xpose.msra.mxu0 %v881
    %887 = vmatprep.subr.mxu0 0.0
    %888 = vmatpush1.xpose.msra.mxu0 %v883
    %889 = vmatprep.subr.mxu0 0.0
    %890 = vmatpush1.xpose.msra.mxu0 0.0
    %891 = vmatprep.subr.mxu0 0.0
    %892 = vmatpush1.xpose.msra.mxu0 0.0
    %893 = vmatprep.subr.mxu0 0.0
    %894 = vmatpush1.xpose.msra.mxu0 0.0
    %895 = vmatprep.subr.mxu0 0.0
    %896 = vmatpush1.xpose.msra.mxu0 0.0
    %897 = vmatprep.subr.mxu0 0.0
    %898 = vmatpush1.xpose.msra.mxu0 0.0
    %899 = vmatprep.subr.mxu0 0.0
    %900 = vmatpush1.xpose.msra.mxu0 0.0
    %901 = vmatprep.subr.mxu0 0.0
    %902 = vmatpush1.xpose.msra.mxu0 0.0
    %903 = vmatprep.subr.mxu0 0.0
    %904 = vmatpush1.xpose.msra.mxu0 0.0
    %905 = vmatprep.subr.mxu0 0.0
    %906 = vmatpush1.xpose.msra.mxu0 0.0
    %907 = vmatprep.subr.mxu0 0.0
    %908 = vmatpush1.xpose.msra.mxu0 0.0
    %909 = vmatprep.subr.mxu0 0.0
    %910 = vmatpush1.xpose.msra.mxu0 0.0
    %911 = vmatprep.subr.mxu0 0.0
    %912 = vmatpush1.xpose.msra.mxu0 0.0
    %913 = vmatprep.subr.mxu0 0.0
    %914 = vmatpush1.xpose.msra.mxu0 0.0
    %915 = vmatprep.subr.mxu0 0.0
    %916 = vmatpush1.xpose.msra.mxu0 0.0
    %917 = vmatprep.subr.mxu0 0.0
    %918 = vmatpush1.xpose.msra.mxu0 0.0
    %919 = vmatprep.subr.mxu0 0.0
    %920 = vmatpush1.xpose.msra.mxu0 0.0
    %921 = vmatprep.subr.mxu0 0.0
    %922 = vmatpush1.xpose.msra.mxu0 0.0
    %923 = vmatprep.subr.mxu0 0.0
    %924 = vmatpush1.xpose.msra.mxu0 0.0
    %925 = vmatprep.subr.mxu0 0.0
    %926 = vmatpush1.xpose.msra.mxu0 0.0
    %927 = vmatprep.subr.mxu0 0.0
    %928 = vmatpush1.xpose.msra.mxu0 0.0
    %929 = vmatprep.subr.mxu0 0.0
    %930 = vmatpush1.xpose.msra.mxu0 0.0
    %931 = vmatprep.subr.mxu0 0.0
    %932 = vmatpush1.xpose.msra.mxu0 0.0
    %933 = vmatprep.subr.mxu0 0.0
    %934 = vmatpush1.xpose.msra.mxu0 0.0
    %935 = vmatprep.subr.mxu0 0.0
    %936 = vmatpush1.xpose.msra.mxu0 0.0
    %937 = vmatprep.subr.mxu0 0.0
    %938 = vmatpush1.xpose.msra.mxu0 0.0
    %939 = vmatprep.subr.mxu0 0.0
    %940 = vmatpush1.xpose.msra.mxu0 0.0
    %941 = vmatprep.subr.mxu0 0.0
    %942 = vmatpush1.xpose.msra.mxu0 0.0
    %943 = vmatprep.subr.mxu0 0.0
    %944 = vmatpush1.xpose.msra.mxu0 0.0
    %945 = vmatprep.subr.mxu0 0.0
    %946 = vmatpush1.xpose.msra.mxu0 0.0
    %947 = vmatprep.subr.mxu0 0.0
    %948 = vmatpush1.xpose.msra.mxu0 0.0
    %949 = vmatprep.mubr.f32.mxu0 0.0
    %950 = vmatmul.mubr.f32.gmra.mrb[0].mxu0 %v877
    %v951 = vpop.f32.mrb[0].mxu0
    %v952 = vadd.f32 0.0, %v951
    %v953 = vpop.f32.mrb[0].mxu0
    %954 = vmatprep.mubr.f32.mxu0 0.0
    %955 = vmatmul.mubr.f32.gmra.mrb[0].mxu0 %v879
    %v956 = vpop.f32.mrb[0].mxu0
    %v957 = vadd.f32 0.0, %v956
    %v958 = vpop.f32.mrb[0].mxu0
    %959 = vdwg.mxu0
    %v960 = vmul.f32 %v952, 0.35355338
    %v961 = vmul.f32 %v957, 0.35355338
    %v962 = vadd.f32 %v960, %v163
    %v963 = vadd.f32 %v961, %v164
    %v964 = vsel %vm351, %v962, -inf
    %965 = vmax.xlane.f32.xlu0 %v964
    %v966 = vpop.xlane.xlu0 %965
    %v967 = vsel %vm351, %v963, -inf
    %968 = vmax.xlane.f32.xlu0 %v967
    %v969 = vpop.xlane.xlu0 %968
    %v970 = vsub.f32 %v962, %v966
    %v971 = vsub.f32 %v963, %v969
    %v972 = vmul.f32 %v970, 1.442695
    %v973 = vpow.pop %v972
    %v974 = vmul.f32 %v971, 1.442695
    %v975 = vpow.pop %v974
    %v976 = vsel %vm351, %v973, 0.0
    %977 = vadd.xlane.f32.xlu0 %v976
    %v978 = vpop.xlane.xlu0 %977
    %v979 = vsel %vm351, %v975, 0.0
    %980 = vadd.xlane.f32.xlu0 %v979
    %v981 = vpop.xlane.xlu0 %980
    %v982 = vrcp.pop %v978
    %v983 = vrcp.pop %v981
    %v984 = vmul.f32 %v973, %v982
    %v985 = vmul.f32 %v975, %v983
    %986 = vrot.lane.b32.xlu0 %v249, 40
    %v987 = vpop.permute.xlu0 %986
    %988 = vrot.lane.b32.xlu0 %v254, 40
    %v989 = vpop.permute.xlu0 %988
    %v993 = vsel %vm351, %v984, 0
    %v996 = vsel %vm351, %v985, 0
    %998 = vmatprep.subr.mxu0 0.0
    %999 = vmatpush1.msra.mxu0 %v987
    %1000 = vmatprep.subr.mxu0 0.0
    %1001 = vmatpush1.msra.mxu0 %v989
    %1002 = vmatprep.subr.mxu0 0.0
    %1003 = vmatpush1.msra.mxu0 0.0
    %1004 = vmatprep.subr.mxu0 0.0
    %1005 = vmatpush1.msra.mxu0 0.0
    %1006 = vmatprep.subr.mxu0 0.0
    %1007 = vmatpush1.msra.mxu0 0.0
    %1008 = vmatprep.subr.mxu0 0.0
    %1009 = vmatpush1.msra.mxu0 0.0
    %1010 = vmatprep.subr.mxu0 0.0
    %1011 = vmatpush1.msra.mxu0 0.0
    %1012 = vmatprep.subr.mxu0 0.0
    %1013 = vmatpush1.msra.mxu0 0.0
    %1014 = vmatprep.subr.mxu0 0.0
    %1015 = vmatpush1.msra.mxu0 0.0
    %1016 = vmatprep.subr.mxu0 0.0
    %1017 = vmatpush1.msra.mxu0 0.0
    %1018 = vmatprep.subr.mxu0 0.0
    %1019 = vmatpush1.msra.mxu0 0.0
    %1020 = vmatprep.subr.mxu0 0.0
    %1021 = vmatpush1.msra.mxu0 0.0
    %1022 = vmatprep.subr.mxu0 0.0
    %1023 = vmatpush1.msra.mxu0 0.0
    %1024 = vmatprep.subr.mxu0 0.0
    %1025 = vmatpush1.msra.mxu0 0.0
    %1026 = vmatprep.subr.mxu0 0.0
    %1027 = vmatpush1.msra.mxu0 0.0
    %1028 = vmatprep.subr.mxu0 0.0
    %1029 = vmatpush1.msra.mxu0 0.0
    %1030 = vmatprep.subr.mxu0 0.0
    %1031 = vmatpush1.msra.mxu0 0.0
    %1032 = vmatprep.subr.mxu0 0.0
    %1033 = vmatpush1.msra.mxu0 0.0
    %1034 = vmatprep.subr.mxu0 0.0
    %1035 = vmatpush1.msra.mxu0 0.0
    %1036 = vmatprep.subr.mxu0 0.0
    %1037 = vmatpush1.msra.mxu0 0.0
    %1038 = vmatprep.subr.mxu0 0.0
    %1039 = vmatpush1.msra.mxu0 0.0
    %1040 = vmatprep.subr.mxu0 0.0
    %1041 = vmatpush1.msra.mxu0 0.0
    %1042 = vmatprep.subr.mxu0 0.0
    %1043 = vmatpush1.msra.mxu0 0.0
    %1044 = vmatprep.subr.mxu0 0.0
    %1045 = vmatpush1.msra.mxu0 0.0
    %1046 = vmatprep.subr.mxu0 0.0
    %1047 = vmatpush1.msra.mxu0 0.0
    %1048 = vmatprep.subr.mxu0 0.0
    %1049 = vmatpush1.msra.mxu0 0.0
    %1050 = vmatprep.subr.mxu0 0.0
    %1051 = vmatpush1.msra.mxu0 0.0
    %1052 = vmatprep.subr.mxu0 0.0
    %1053 = vmatpush1.msra.mxu0 0.0
    %1054 = vmatprep.subr.mxu0 0.0
    %1055 = vmatpush1.msra.mxu0 0.0
    %1056 = vmatprep.subr.mxu0 0.0
    %1057 = vmatpush1.msra.mxu0 0.0
    %1058 = vmatprep.subr.mxu0 0.0
    %1059 = vmatpush1.msra.mxu0 0.0
    %1060 = vmatprep.subr.mxu0 0.0
    %1061 = vmatpush1.msra.mxu0 0.0
    %1062 = vmatprep.mubr.f32.mxu0 0.0
    %1063 = vmatmul.mubr.f32.gmra.mrb[0].mxu0 %v993
    %v1064 = vpop.f32.mrb[0].mxu0
    %v1065 = vadd.f32 0.0, %v1064
    %v1066 = vpop.f32.mrb[0].mxu0
    %1067 = vmatprep.mubr.f32.mxu0 0.0
    %1068 = vmatmul.mubr.f32.gmra.mrb[0].mxu0 %v996
    %v1069 = vpop.f32.mrb[0].mxu0
    %v1070 = vadd.f32 0.0, %v1069
    %v1071 = vpop.f32.mrb[0].mxu0
    %1072 = vdwg.mxu0
    %1075 = vrot.lane.b32.xlu0 %v657, 8
    %v1076 = vpop.permute.xlu0 %1075
    %1077 = vrot.lane.b32.xlu0 %v662, 8
    %v1078 = vpop.permute.xlu0 %1077
    %1083 = vrot.lane.b32.xlu0 %v861, 16
    %v1084 = vpop.permute.xlu0 %1083
    %1085 = vrot.lane.b32.xlu0 %v866, 16
    %v1086 = vpop.permute.xlu0 %1085
    %1091 = vrot.lane.b32.xlu0 %v1065, 24
    %v1092 = vpop.permute.xlu0 %1091
    %1093 = vrot.lane.b32.xlu0 %v1070, 24
    %v1094 = vpop.permute.xlu0 %1093
    %v1097 = vsel %vm263, %v453, %v1076
    %v1098 = vsel %vm263, %v458, %v1078
    %v1099 = vsel %vm351, %v1097, %v1084
    %v1100 = vsel %vm351, %v1098, %v1086
    %vm1101 = vcmask 195584
    %v1102 = vsel %vm1101, %v1099, %v1092
    %v1103 = vsel %vm1101, %v1100, %v1094
    %v1104 = vld [vmem:[%s7] sm:$0xff]
    %v1105 = vld [vmem:[%s7 + $0x8] sm:$0xff]
    %v1106 = vld [vmem:[%s7 + $0x10] sm:$0xff]
    %v1107 = vld [vmem:[%s7 + $0x18] sm:$0xff]
    %v1108 = vld [vmem:[%s8] sm:$0x1]
    %v1110 = vlaneseq
    %v1111 = vshrl.u32 %v1110, 7
    %v1112 = vsub.s32 0, %v1111
    %v1113 = vrot.slane %v1108, %v1112
    %v1116 = vsel %vm119, %v1102, 0
    %v1119 = vsel %vm119, %v1103, 0
    %1121 = vmatprep.subr.mxu0 0.0
    %1122 = vmatpush1.msra.mxu0 %v1104
    %1123 = vmatprep.subr.mxu0 0.0
    %1124 = vmatpush1.msra.mxu0 %v1105
    %1125 = vmatprep.subr.mxu0 0.0
    %1126 = vmatpush1.msra.mxu0 %v1106
    %1127 = vmatprep.subr.mxu0 0.0
    %1128 = vmatpush1.msra.mxu0 %v1107
    %1129 = vmatprep.subr.mxu0 0.0
    %1130 = vmatpush1.msra.mxu0 0.0
    %1131 = vmatprep.subr.mxu0 0.0
    %1132 = vmatpush1.msra.mxu0 0.0
    %1133 = vmatprep.subr.mxu0 0.0
    %1134 = vmatpush1.msra.mxu0 0.0
    %1135 = vmatprep.subr.mxu0 0.0
    %1136 = vmatpush1.msra.mxu0 0.0
    %1137 = vmatprep.subr.mxu0 0.0
    %1138 = vmatpush1.msra.mxu0 0.0
    %1139 = vmatprep.subr.mxu0 0.0
    %1140 = vmatpush1.msra.mxu0 0.0
    %1141 = vmatprep.subr.mxu0 0.0
    %1142 = vmatpush1.msra.mxu0 0.0
    %1143 = vmatprep.subr.mxu0 0.0
    %1144 = vmatpush1.msra.mxu0 0.0
    %1145 = vmatprep.subr.mxu0 0.0
    %1146 = vmatpush1.msra.mxu0 0.0
    %1147 = vmatprep.subr.mxu0 0.0
    %1148 = vmatpush1.msra.mxu0 0.0
    %1149 = vmatprep.subr.mxu0 0.0
    %1150 = vmatpush1.msra.mxu0 0.0
    %1151 = vmatprep.subr.mxu0 0.0
    %1152 = vmatpush1.msra.mxu0 0.0
    %1153 = vmatprep.subr.mxu0 0.0
    %1154 = vmatpush1.msra.mxu0 0.0
    %1155 = vmatprep.subr.mxu0 0.0
    %1156 = vmatpush1.msra.mxu0 0.0
    %1157 = vmatprep.subr.mxu0 0.0
    %1158 = vmatpush1.msra.mxu0 0.0
    %1159 = vmatprep.subr.mxu0 0.0
    %1160 = vmatpush1.msra.mxu0 0.0
    %1161 = vmatprep.subr.mxu0 0.0
    %1162 = vmatpush1.msra.mxu0 0.0
    %1163 = vmatprep.subr.mxu0 0.0
    %1164 = vmatpush1.msra.mxu0 0.0
    %1165 = vmatprep.subr.mxu0 0.0
    %1166 = vmatpush1.msra.mxu0 0.0
    %1167 = vmatprep.subr.mxu0 0.0
    %1168 = vmatpush1.msra.mxu0 0.0
    %1169 = vmatprep.subr.mxu0 0.0
    %1170 = vmatpush1.msra.mxu0 0.0
    %1171 = vmatprep.subr.mxu0 0.0
    %1172 = vmatpush1.msra.mxu0 0.0
    %1173 = vmatprep.subr.mxu0 0.0
    %1174 = vmatpush1.msra.mxu0 0.0
    %1175 = vmatprep.subr.mxu0 0.0
    %1176 = vmatpush1.msra.mxu0 0.0
    %1177 = vmatprep.subr.mxu0 0.0
    %1178 = vmatpush1.msra.mxu0 0.0
    %1179 = vmatprep.subr.mxu0 0.0
    %1180 = vmatpush1.msra.mxu0 0.0
    %1181 = vmatprep.subr.mxu0 0.0
    %1182 = vmatpush1.msra.mxu0 0.0
    %1183 = vmatprep.subr.mxu0 0.0
    %1184 = vmatpush1.msra.mxu0 0.0
    %1185 = vmatprep.mubr.f32.mxu0 0.0
    %1186 = vmatmul.mubr.f32.gmra.mrb[0].mxu0 %v1116
    %v1187 = vpop.f32.mrb[0].mxu0
    %v1188 = vadd.f32 %v1113, %v1187
    %v1189 = vpop.f32.mrb[0].mxu0
    %1190 = vmatprep.mubr.f32.mxu0 0.0
    %1191 = vmatmul.mubr.f32.gmra.mrb[0].mxu0 %v1119
    %v1192 = vpop.f32.mrb[0].mxu0
    %v1193 = vadd.f32 %v1113, %v1192
    %v1194 = vpop.f32.mrb[0].mxu0
    %1195 = vdwg.mxu0
    %v1196 = vadd.f32 %v161, %v1188
    %v1197 = vadd.f32 %v162, %v1193
    %v1198 = vld [vmem:[%s9] sm:$0x1]
    %v1199 = vld [vmem:[%s10] sm:$0x1]
    %v1200 = vsel %vm119, %v1196, 0.0
    %1201 = vadd.xlane.f32.xlu0 %v1200
    %v1202 = vpop.xlane.xlu0 %1201
    %v1203 = vsel %vm119, %v1197, 0.0
    %1204 = vadd.xlane.f32.xlu0 %v1203
    %v1205 = vpop.xlane.xlu0 %1204
    %v1206 = vmul.f32 %v1202, %v126
    %v1207 = vmul.f32 %v1205, %v126
    %v1208 = vsub.f32 %v1196, %v1206
    %v1209 = vsub.f32 %v1197, %v1207
    %v1210 = vmul.f32 %v1208, %v1208
    %v1211 = vmul.f32 %v1209, %v1209
    %v1212 = vsel %vm119, %v1210, 0.0
    %1213 = vadd.xlane.f32.xlu0 %v1212
    %v1214 = vpop.xlane.xlu0 %1213
    %v1215 = vsel %vm119, %v1211, 0.0
    %1216 = vadd.xlane.f32.xlu0 %v1215
    %v1217 = vpop.xlane.xlu0 %1216
    %v1218 = vmul.f32 %v1214, %v126
    %v1219 = vmul.f32 %v1217, %v126
    %v1220 = vadd.f32 %v1218, 1e-12
    %v1221 = vadd.f32 %v1219, 1e-12
    %v1222 = vrsqrt.pop %v1220
    %v1223 = vrsqrt.pop %v1221
    %v1224 = vmul.f32 %v1208, %v1222
    %v1225 = vmul.f32 %v1209, %v1223
    %v1227 = vlaneseq
    %v1228 = vshrl.u32 %v1227, 7
    %v1229 = vsub.s32 0, %v1228
    %v1230 = vrot.slane %v1198, %v1229
    %v1232 = vmul.f32 %v1224, %v1230
    %v1233 = vmul.f32 %v1225, %v1230
    %v1235 = vlaneseq
    %v1236 = vshrl.u32 %v1235, 7
    %v1237 = vsub.s32 0, %v1236
    %v1238 = vrot.slane %v1199, %v1237
    %v1240 = vadd.f32 %v1232, %v1238
    %v1241 = vadd.f32 %v1233, %v1238
    %v1242 = vld [vmem:[%s11] sm:$0xff]
    %v1243 = vld [vmem:[%s11 + $0x8] sm:$0xff]
    %v1244 = vld [vmem:[%s11 + $0x10] sm:$0xff]
    %v1245 = vld [vmem:[%s11 + $0x18] sm:$0xff]
    %v1246 = vld [vmem:[%s12] sm:$0x1]
    %v1248 = vlaneseq
    %v1249 = vshrl.u32 %v1248, 7
    %v1250 = vsub.s32 0, %v1249
    %v1251 = vrot.slane %v1246, %v1250
    %v1254 = vsel %vm119, %v1240, 0
    %v1257 = vsel %vm119, %v1241, 0
    %1259 = vmatprep.subr.mxu0 0.0
    %1260 = vmatpush1.msra.mxu0 %v1242
    %1261 = vmatprep.subr.mxu0 0.0
    %1262 = vmatpush1.msra.mxu0 %v1243
    %1263 = vmatprep.subr.mxu0 0.0
    %1264 = vmatpush1.msra.mxu0 %v1244
    %1265 = vmatprep.subr.mxu0 0.0
    %1266 = vmatpush1.msra.mxu0 %v1245
    %1267 = vmatprep.subr.mxu0 0.0
    %1268 = vmatpush1.msra.mxu0 0.0
    %1269 = vmatprep.subr.mxu0 0.0
    %1270 = vmatpush1.msra.mxu0 0.0
    %1271 = vmatprep.subr.mxu0 0.0
    %1272 = vmatpush1.msra.mxu0 0.0
    %1273 = vmatprep.subr.mxu0 0.0
    %1274 = vmatpush1.msra.mxu0 0.0
    %1275 = vmatprep.subr.mxu0 0.0
    %1276 = vmatpush1.msra.mxu0 0.0
    %1277 = vmatprep.subr.mxu0 0.0
    %1278 = vmatpush1.msra.mxu0 0.0
    %1279 = vmatprep.subr.mxu0 0.0
    %1280 = vmatpush1.msra.mxu0 0.0
    %1281 = vmatprep.subr.mxu0 0.0
    %1282 = vmatpush1.msra.mxu0 0.0
    %1283 = vmatprep.subr.mxu0 0.0
    %1284 = vmatpush1.msra.mxu0 0.0
    %1285 = vmatprep.subr.mxu0 0.0
    %1286 = vmatpush1.msra.mxu0 0.0
    %1287 = vmatprep.subr.mxu0 0.0
    %1288 = vmatpush1.msra.mxu0 0.0
    %1289 = vmatprep.subr.mxu0 0.0
    %1290 = vmatpush1.msra.mxu0 0.0
    %1291 = vmatprep.subr.mxu0 0.0
    %1292 = vmatpush1.msra.mxu0 0.0
    %1293 = vmatprep.subr.mxu0 0.0
    %1294 = vmatpush1.msra.mxu0 0.0
    %1295 = vmatprep.subr.mxu0 0.0
    %1296 = vmatpush1.msra.mxu0 0.0
    %1297 = vmatprep.subr.mxu0 0.0
    %1298 = vmatpush1.msra.mxu0 0.0
    %1299 = vmatprep.subr.mxu0 0.0
    %1300 = vmatpush1.msra.mxu0 0.0
    %1301 = vmatprep.subr.mxu0 0.0
    %1302 = vmatpush1.msra.mxu0 0.0
    %1303 = vmatprep.subr.mxu0 0.0
    %1304 = vmatpush1.msra.mxu0 0.0
    %1305 = vmatprep.subr.mxu0 0.0
    %1306 = vmatpush1.msra.mxu0 0.0
    %1307 = vmatprep.subr.mxu0 0.0
    %1308 = vmatpush1.msra.mxu0 0.0
    %1309 = vmatprep.subr.mxu0 0.0
    %1310 = vmatpush1.msra.mxu0 0.0
    %1311 = vmatprep.subr.mxu0 0.0
    %1312 = vmatpush1.msra.mxu0 0.0
    %1313 = vmatprep.subr.mxu0 0.0
    %1314 = vmatpush1.msra.mxu0 0.0
    %1315 = vmatprep.subr.mxu0 0.0
    %1316 = vmatpush1.msra.mxu0 0.0
    %1317 = vmatprep.subr.mxu0 0.0
    %1318 = vmatpush1.msra.mxu0 0.0
    %1319 = vmatprep.subr.mxu0 0.0
    %1320 = vmatpush1.msra.mxu0 0.0
    %1321 = vmatprep.subr.mxu0 0.0
    %1322 = vmatpush1.msra.mxu0 0.0
    %1323 = vmatprep.mubr.f32.mxu0 0.0
    %1324 = vmatmul.mubr.f32.gmra.mrb[0].mxu0 %v1254
    %v1325 = vpop.f32.mrb[0].mxu0
    %v1326 = vadd.f32 %v1251, %v1325
    %v1327 = vpop.f32.mrb[0].mxu0
    %1328 = vmatprep.mubr.f32.mxu0 0.0
    %1329 = vmatmul.mubr.f32.gmra.mrb[0].mxu0 %v1257
    %v1330 = vpop.f32.mrb[0].mxu0
    %v1331 = vadd.f32 %v1251, %v1330
    %v1332 = vpop.f32.mrb[0].mxu0
    %1333 = vdwg.mxu0
    %v1334 = vmul.f32 %v1326, 0.5
    %v1335 = vmul.f32 %v1331, 0.5
    %v1336 = vmul.f32 %v1326, 0.044715
    %v1337 = vmul.f32 %v1331, 0.044715
    %v1338 = vmul.f32 %v1336, %v1326
    %v1339 = vmul.f32 %v1337, %v1331
    %v1340 = vmul.f32 %v1338, %v1326
    %v1341 = vmul.f32 %v1339, %v1331
    %v1342 = vadd.f32 %v1326, %v1340
    %v1343 = vadd.f32 %v1331, %v1341
    %v1344 = vmul.f32 %v1342, 0.7978846
    %v1345 = vmul.f32 %v1343, 0.7978846
    %v1346 = vtanh.pop %v1344
    %v1347 = vtanh.pop %v1345
    %v1348 = vadd.f32 %v1346, 1.0
    %v1349 = vadd.f32 %v1347, 1.0
    %v1350 = vmul.f32 %v1334, %v1348
    %v1351 = vmul.f32 %v1335, %v1349
    %v1352 = vld [vmem:[%s13] sm:$0xff]
    %v1353 = vld [vmem:[%s13 + $0x8] sm:$0xff]
    %v1354 = vld [vmem:[%s13 + $0x10] sm:$0xff]
    %v1355 = vld [vmem:[%s13 + $0x18] sm:$0xff]
    %v1356 = vld [vmem:[%s13 + $0x20] sm:$0xff]
    %v1357 = vld [vmem:[%s13 + $0x28] sm:$0xff]
    %v1358 = vld [vmem:[%s13 + $0x30] sm:$0xff]
    %v1359 = vld [vmem:[%s13 + $0x38] sm:$0xff]
    %v1360 = vld [vmem:[%s14] sm:$0x1]
    %v1362 = vlaneseq
    %v1363 = vshrl.u32 %v1362, 7
    %v1364 = vsub.s32 0, %v1363
    %v1365 = vrot.slane %v1360, %v1364
    %vm1367 = vcmask 523264
    %v1369 = vsel %vm1367, %v1350, 0
    %v1372 = vsel %vm1367, %v1351, 0
    %1374 = vmatprep.subr.mxu0 0.0
    %1375 = vmatpush1.msra.mxu0 %v1352
    %1376 = vmatprep.subr.mxu0 0.0
    %1377 = vmatpush1.msra.mxu0 %v1353
    %1378 = vmatprep.subr.mxu0 0.0
    %1379 = vmatpush1.msra.mxu0 %v1354
    %1380 = vmatprep.subr.mxu0 0.0
    %1381 = vmatpush1.msra.mxu0 %v1355
    %1382 = vmatprep.subr.mxu0 0.0
    %1383 = vmatpush1.msra.mxu0 %v1356
    %1384 = vmatprep.subr.mxu0 0.0
    %1385 = vmatpush1.msra.mxu0 %v1357
    %1386 = vmatprep.subr.mxu0 0.0
    %1387 = vmatpush1.msra.mxu0 %v1358
    %1388 = vmatprep.subr.mxu0 0.0
    %1389 = vmatpush1.msra.mxu0 %v1359
    %1390 = vmatprep.subr.mxu0 0.0
    %1391 = vmatpush1.msra.mxu0 0.0
    %1392 = vmatprep.subr.mxu0 0.0
    %1393 = vmatpush1.msra.mxu0 0.0
    %1394 = vmatprep.subr.mxu0 0.0
    %1395 = vmatpush1.msra.mxu0 0.0
    %1396 = vmatprep.subr.mxu0 0.0
    %1397 = vmatpush1.msra.mxu0 0.0
    %1398 = vmatprep.subr.mxu0 0.0
    %1399 = vmatpush1.msra.mxu0 0.0
    %1400 = vmatprep.subr.mxu0 0.0
    %1401 = vmatpush1.msra.mxu0 0.0
    %1402 = vmatprep.subr.mxu0 0.0
    %1403 = vmatpush1.msra.mxu0 0.0
    %1404 = vmatprep.subr.mxu0 0.0
    %1405 = vmatpush1.msra.mxu0 0.0
    %1406 = vmatprep.subr.mxu0 0.0
    %1407 = vmatpush1.msra.mxu0 0.0
    %1408 = vmatprep.subr.mxu0 0.0
    %1409 = vmatpush1.msra.mxu0 0.0
    %1410 = vmatprep.subr.mxu0 0.0
    %1411 = vmatpush1.msra.mxu0 0.0
    %1412 = vmatprep.subr.mxu0 0.0
    %1413 = vmatpush1.msra.mxu0 0.0
    %1414 = vmatprep.subr.mxu0 0.0
    %1415 = vmatpush1.msra.mxu0 0.0
    %1416 = vmatprep.subr.mxu0 0.0
    %1417 = vmatpush1.msra.mxu0 0.0
    %1418 = vmatprep.subr.mxu0 0.0
    %1419 = vmatpush1.msra.mxu0 0.0
    %1420 = vmatprep.subr.mxu0 0.0
    %1421 = vmatpush1.msra.mxu0 0.0
    %1422 = vmatprep.subr.mxu0 0.0
    %1423 = vmatpush1.msra.mxu0 0.0
    %1424 = vmatprep.subr.mxu0 0.0
    %1425 = vmatpush1.msra.mxu0 0.0
    %1426 = vmatprep.subr.mxu0 0.0
    %1427 = vmatpush1.msra.mxu0 0.0
    %1428 = vmatprep.subr.mxu0 0.0
    %1429 = vmatpush1.msra.mxu0 0.0
    %1430 = vmatprep.subr.mxu0 0.0
    %1431 = vmatpush1.msra.mxu0 0.0
    %1432 = vmatprep.subr.mxu0 0.0
    %1433 = vmatpush1.msra.mxu0 0.0
    %1434 = vmatprep.subr.mxu0 0.0
    %1435 = vmatpush1.msra.mxu0 0.0
    %1436 = vmatprep.subr.mxu0 0.0
    %1437 = vmatpush1.msra.mxu0 0.0
    %1438 = vmatprep.mubr.f32.mxu0 0.0
    %1439 = vmatmul.mubr.f32.gmra.mrb[0].mxu0 %v1369
    %v1440 = vpop.f32.mrb[0].mxu0
    %v1441 = vadd.f32 %v1365, %v1440
    %v1442 = vpop.f32.mrb[0].mxu0
    %1443 = vmatprep.mubr.f32.mxu0 0.0
    %1444 = vmatmul.mubr.f32.gmra.mrb[0].mxu0 %v1372
    %v1445 = vpop.f32.mrb[0].mxu0
    %v1446 = vadd.f32 %v1365, %v1445
    %v1447 = vpop.f32.mrb[0].mxu0
    %1448 = vdwg.mxu0
    %v1449 = vadd.f32 %v1240, %v1441
    %v1450 = vadd.f32 %v1241, %v1446
    %v1451 = vld [vmem:[%s15] sm:$0x1]
    %v1452 = vld [vmem:[%s16] sm:$0x1]
    %v1453 = vsel %vm119, %v1449, 0.0
    %1454 = vadd.xlane.f32.xlu0 %v1453
    %v1455 = vpop.xlane.xlu0 %1454
    %v1456 = vsel %vm119, %v1450, 0.0
    %1457 = vadd.xlane.f32.xlu0 %v1456
    %v1458 = vpop.xlane.xlu0 %1457
    %v1459 = vmul.f32 %v1455, %v126
    %v1460 = vmul.f32 %v1458, %v126
    %v1461 = vsub.f32 %v1449, %v1459
    %v1462 = vsub.f32 %v1450, %v1460
    %v1463 = vmul.f32 %v1461, %v1461
    %v1464 = vmul.f32 %v1462, %v1462
    %v1465 = vsel %vm119, %v1463, 0.0
    %1466 = vadd.xlane.f32.xlu0 %v1465
    %v1467 = vpop.xlane.xlu0 %1466
    %v1468 = vsel %vm119, %v1464, 0.0
    %1469 = vadd.xlane.f32.xlu0 %v1468
    %v1470 = vpop.xlane.xlu0 %1469
    %v1471 = vmul.f32 %v1467, %v126
    %v1472 = vmul.f32 %v1470, %v126
    %v1473 = vadd.f32 %v1471, 1e-12
    %v1474 = vadd.f32 %v1472, 1e-12
    %v1475 = vrsqrt.pop %v1473
    %v1476 = vrsqrt.pop %v1474
    %v1477 = vmul.f32 %v1461, %v1475
    %v1478 = vmul.f32 %v1462, %v1476
    %v1480 = vlaneseq
    %v1481 = vshrl.u32 %v1480, 7
    %v1482 = vsub.s32 0, %v1481
    %v1483 = vrot.slane %v1451, %v1482
    %v1485 = vmul.f32 %v1477, %v1483
    %v1486 = vmul.f32 %v1478, %v1483
    %v1488 = vlaneseq
    %v1489 = vshrl.u32 %v1488, 7
    %v1490 = vsub.s32 0, %v1489
    %v1491 = vrot.slane %v1452, %v1490
    %v1493 = vadd.f32 %v1485, %v1491
    %v1494 = vadd.f32 %v1486, %v1491
    %s1495 = scalar_lea.vmem %s5, 32
    %v1496 = vld [vmem:[%s1495] sm:$0xff]
    %v1497 = vld [vmem:[%s1495 + $0x8] sm:$0xff]
    %v1498 = vld [vmem:[%s1495 + $0x10] sm:$0xff]
    %v1499 = vld [vmem:[%s1495 + $0x18] sm:$0xff]
    %s1500 = scalar_lea.vmem %s6, 1
    %v1501 = vld [vmem:[%s1500] sm:$0x1]
    %v1503 = vlaneseq
    %v1504 = vshrl.u32 %v1503, 7
    %v1505 = vsub.s32 0, %v1504
    %v1506 = vrot.slane %v1501, %v1505
    %v1509 = vsel %vm119, %v1493, 0
    %v1512 = vsel %vm119, %v1494, 0
    %1514 = vmatprep.subr.mxu0 0.0
    %1515 = vmatpush1.msra.mxu0 %v1496
    %1516 = vmatprep.subr.mxu0 0.0
    %1517 = vmatpush1.msra.mxu0 %v1497
    %1518 = vmatprep.subr.mxu0 0.0
    %1519 = vmatpush1.msra.mxu0 %v1498
    %1520 = vmatprep.subr.mxu0 0.0
    %1521 = vmatpush1.msra.mxu0 %v1499
    %1522 = vmatprep.subr.mxu0 0.0
    %1523 = vmatpush1.msra.mxu0 0.0
    %1524 = vmatprep.subr.mxu0 0.0
    %1525 = vmatpush1.msra.mxu0 0.0
    %1526 = vmatprep.subr.mxu0 0.0
    %1527 = vmatpush1.msra.mxu0 0.0
    %1528 = vmatprep.subr.mxu0 0.0
    %1529 = vmatpush1.msra.mxu0 0.0
    %1530 = vmatprep.subr.mxu0 0.0
    %1531 = vmatpush1.msra.mxu0 0.0
    %1532 = vmatprep.subr.mxu0 0.0
    %1533 = vmatpush1.msra.mxu0 0.0
    %1534 = vmatprep.subr.mxu0 0.0
    %1535 = vmatpush1.msra.mxu0 0.0
    %1536 = vmatprep.subr.mxu0 0.0
    %1537 = vmatpush1.msra.mxu0 0.0
    %1538 = vmatprep.subr.mxu0 0.0
    %1539 = vmatpush1.msra.mxu0 0.0
    %1540 = vmatprep.subr.mxu0 0.0
    %1541 = vmatpush1.msra.mxu0 0.0
    %1542 = vmatprep.subr.mxu0 0.0
    %1543 = vmatpush1.msra.mxu0 0.0
    %1544 = vmatprep.subr.mxu0 0.0
    %1545 = vmatpush1.msra.mxu0 0.0
    %1546 = vmatprep.subr.mxu0 0.0
    %1547 = vmatpush1.msra.mxu0 0.0
    %1548 = vmatprep.subr.mxu0 0.0
    %1549 = vmatpush1.msra.mxu0 0.0
    %1550 = vmatprep.subr.mxu0 0.0
    %1551 = vmatpush1.msra.mxu0 0.0
    %1552 = vmatprep.subr.mxu0 0.0
    %1553 = vmatpush1.msra.mxu0 0.0
    %1554 = vmatprep.subr.mxu0 0.0
    %1555 = vmatpush1.msra.mxu0 0.0
    %1556 = vmatprep.subr.mxu0 0.0
    %1557 = vmatpush1.msra.mxu0 0.0
    %1558 = vmatprep.subr.mxu0 0.0
    %1559 = vmatpush1.msra.mxu0 0.0
    %1560 = vmatprep.subr.mxu0 0.0
    %1561 = vmatpush1.msra.mxu0 0.0
    %1562 = vmatprep.subr.mxu0 0.0
    %1563 = vmatpush1.msra.mxu0 0.0
    %1564 = vmatprep.subr.mxu0 0.0
    %1565 = vmatpush1.msra.mxu0 0.0
    %1566 = vmatprep.subr.mxu0 0.0
    %1567 = vmatpush1.msra.mxu0 0.0
    %1568 = vmatprep.subr.mxu0 0.0
    %1569 = vmatpush1.msra.mxu0 0.0
    %1570 = vmatprep.subr.mxu0 0.0
    %1571 = vmatpush1.msra.mxu0 0.0
    %1572 = vmatprep.subr.mxu0 0.0
    %1573 = vmatpush1.msra.mxu0 0.0
    %1574 = vmatprep.subr.mxu0 0.0
    %1575 = vmatpush1.msra.mxu0 0.0
    %1576 = vmatprep.subr.mxu0 0.0
    %1577 = vmatpush1.msra.mxu0 0.0
    %1578 = vmatprep.mubr.f32.mxu0 0.0
    %1579 = vmatmul.mubr.f32.gmra.mrb[0].mxu0 %v1509
    %v1580 = vpop.f32.mrb[0].mxu0
    %v1581 = vadd.f32 %v1506, %v1580
    %v1582 = vpop.f32.mrb[0].mxu0
    %1583 = vmatprep.mubr.f32.mxu0 0.0
    %1584 = vmatmul.mubr.f32.gmra.mrb[0].mxu0 %v1512
    %v1585 = vpop.f32.mrb[0].mxu0
    %v1586 = vadd.f32 %v1506, %v1585
    %v1587 = vpop.f32.mrb[0].mxu0
    %1588 = vdwg.mxu0
    %1591 = vrot.lane.b32.xlu0 %v1581, 96
    %v1592 = vpop.permute.xlu0 %1591
    %1593 = vrot.lane.b32.xlu0 %v1586, 96
    %v1594 = vpop.permute.xlu0 %1593
    %v1595 = vsel %vm263, %v1581, 0
    %v1597 = vsel %vm263, %v1586, 0
    %v1599 = vsel %vm263, %v1592, 0
    %v1601 = vsel %vm263, %v1594, 0
    %1603 = vmatprep.subr.mxu0 0.0
    %1604 = vmatpush1.xpose.msra.mxu0 %v1599
    %1605 = vmatprep.subr.mxu0 0.0
    %1606 = vmatpush1.xpose.msra.mxu0 %v1601
    %1607 = vmatprep.subr.mxu0 0.0
    %1608 = vmatpush1.xpose.msra.mxu0 0.0
    %1609 = vmatprep.subr.mxu0 0.0
    %1610 = vmatpush1.xpose.msra.mxu0 0.0
    %1611 = vmatprep.subr.mxu0 0.0
    %1612 = vmatpush1.xpose.msra.mxu0 0.0
    %1613 = vmatprep.subr.mxu0 0.0
    %1614 = vmatpush1.xpose.msra.mxu0 0.0
    %1615 = vmatprep.subr.mxu0 0.0
    %1616 = vmatpush1.xpose.msra.mxu0 0.0
    %1617 = vmatprep.subr.mxu0 0.0
    %1618 = vmatpush1.xpose.msra.mxu0 0.0
    %1619 = vmatprep.subr.mxu0 0.0
    %1620 = vmatpush1.xpose.msra.mxu0 0.0
    %1621 = vmatprep.subr.mxu0 0.0
    %1622 = vmatpush1.xpose.msra.mxu0 0.0
    %1623 = vmatprep.subr.mxu0 0.0
    %1624 = vmatpush1.xpose.msra.mxu0 0.0
    %1625 = vmatprep.subr.mxu0 0.0
    %1626 = vmatpush1.xpose.msra.mxu0 0.0
    %1627 = vmatprep.subr.mxu0 0.0
    %1628 = vmatpush1.xpose.msra.mxu0 0.0
    %1629 = vmatprep.subr.mxu0 0.0
    %1630 = vmatpush1.xpose.msra.mxu0 0.0
    %1631 = vmatprep.subr.mxu0 0.0
    %1632 = vmatpush1.xpose.msra.mxu0 0.0
    %1633 = vmatprep.subr.mxu0 0.0
    %1634 = vmatpush1.xpose.msra.mxu0 0.0
    %1635 = vmatprep.subr.mxu0 0.0
    %1636 = vmatpush1.xpose.msra.mxu0 0.0
    %1637 = vmatprep.subr.mxu0 0.0
    %1638 = vmatpush1.xpose.msra.mxu0 0.0
    %1639 = vmatprep.subr.mxu0 0.0
    %1640 = vmatpush1.xpose.msra.mxu0 0.0
    %1641 = vmatprep.subr.mxu0 0.0
    %1642 = vmatpush1.xpose.msra.mxu0 0.0
    %1643 = vmatprep.subr.mxu0 0.0
    %1644 = vmatpush1.xpose.msra.mxu0 0.0
    %1645 = vmatprep.subr.mxu0 0.0
    %1646 = vmatpush1.xpose.msra.mxu0 0.0
    %1647 = vmatprep.subr.mxu0 0.0
    %1648 = vmatpush1.xpose.msra.mxu0 0.0
    %1649 = vmatprep.subr.mxu0 0.0
    %1650 = vmatpush1.xpose.msra.mxu0 0.0
    %1651 = vmatprep.subr.mxu0 0.0
    %1652 = vmatpush1.xpose.msra.mxu0 0.0
    %1653 = vmatprep.subr.mxu0 0.0
    %1654 = vmatpush1.xpose.msra.mxu0 0.0
    %1655 = vmatprep.subr.mxu0 0.0
    %1656 = vmatpush1.xpose.msra.mxu0 0.0
    %1657 = vmatprep.subr.mxu0 0.0
    %1658 = vmatpush1.xpose.msra.mxu0 0.0
    %1659 = vmatprep.subr.mxu0 0.0
    %1660 = vmatpush1.xpose.msra.mxu0 0.0
    %1661 = vmatprep.subr.mxu0 0.0
    %1662 = vmatpush1.xpose.msra.mxu0 0.0
    %1663 = vmatprep.subr.mxu0 0.0
    %1664 = vmatpush1.xpose.msra.mxu0 0.0
    %1665 = vmatprep.subr.mxu0 0.0
    %1666 = vmatpush1.xpose.msra.mxu0 0.0
    %1667 = vmatprep.mubr.f32.mxu0 0.0
    %1668 = vmatmul.mubr.f32.gmra.mrb[0].mxu0 %v1595
    %v1669 = vpop.f32.mrb[0].mxu0
    %v1670 = vadd.f32 0.0, %v1669
    %v1671 = vpop.f32.mrb[0].mxu0
    %1672 = vmatprep.mubr.f32.mxu0 0.0
    %1673 = vmatmul.mubr.f32.gmra.mrb[0].mxu0 %v1597
    %v1674 = vpop.f32.mrb[0].mxu0
    %v1675 = vadd.f32 0.0, %v1674
    %v1676 = vpop.f32.mrb[0].mxu0
    %1677 = vdwg.mxu0
    %v1678 = vmul.f32 %v1670, 0.35355338
    %v1679 = vmul.f32 %v1675, 0.35355338
    %v1680 = vadd.f32 %v1678, %v163
    %v1681 = vadd.f32 %v1679, %v164
    %v1682 = vsel %vm351, %v1680, -inf
    %1683 = vmax.xlane.f32.xlu0 %v1682
    %v1684 = vpop.xlane.xlu0 %1683
    %v1685 = vsel %vm351, %v1681, -inf
    %1686 = vmax.xlane.f32.xlu0 %v1685
    %v1687 = vpop.xlane.xlu0 %1686
    %v1688 = vsub.f32 %v1680, %v1684
    %v1689 = vsub.f32 %v1681, %v1687
    %v1690 = vmul.f32 %v1688, 1.442695
    %v1691 = vpow.pop %v1690
    %v1692 = vmul.f32 %v1689, 1.442695
    %v1693 = vpow.pop %v1692
    %v1694 = vsel %vm351, %v1691, 0.0
    %1695 = vadd.xlane.f32.xlu0 %v1694
    %v1696 = vpop.xlane.xlu0 %1695
    %v1697 = vsel %vm351, %v1693, 0.0
    %1698 = vadd.xlane.f32.xlu0 %v1697
    %v1699 = vpop.xlane.xlu0 %1698
    %v1700 = vrcp.pop %v1696
    %v1701 = vrcp.pop %v1699
    %v1702 = vmul.f32 %v1691, %v1700
    %v1703 = vmul.f32 %v1693, %v1701
    %1704 = vrot.lane.b32.xlu0 %v1581, 64
    %v1705 = vpop.permute.xlu0 %1704
    %1706 = vrot.lane.b32.xlu0 %v1586, 64
    %v1707 = vpop.permute.xlu0 %1706
    %v1711 = vsel %vm351, %v1702, 0
    %v1714 = vsel %vm351, %v1703, 0
    %1716 = vmatprep.subr.mxu0 0.0
    %1717 = vmatpush1.msra.mxu0 %v1705
    %1718 = vmatprep.subr.mxu0 0.0
    %1719 = vmatpush1.msra.mxu0 %v1707
    %1720 = vmatprep.subr.mxu0 0.0
    %1721 = vmatpush1.msra.mxu0 0.0
    %1722 = vmatprep.subr.mxu0 0.0
    %1723 = vmatpush1.msra.mxu0 0.0
    %1724 = vmatprep.subr.mxu0 0.0
    %1725 = vmatpush1.msra.mxu0 0.0
    %1726 = vmatprep.subr.mxu0 0.0
    %1727 = vmatpush1.msra.mxu0 0.0
    %1728 = vmatprep.subr.mxu0 0.0
    %1729 = vmatpush1.msra.mxu0 0.0
    %1730 = vmatprep.subr.mxu0 0.0
    %1731 = vmatpush1.msra.mxu0 0.0
    %1732 = vmatprep.subr.mxu0 0.0
    %1733 = vmatpush1.msra.mxu0 0.0
    %1734 = vmatprep.subr.mxu0 0.0
    %1735 = vmatpush1.msra.mxu0 0.0
    %1736 = vmatprep.subr.mxu0 0.0
    %1737 = vmatpush1.msra.mxu0 0.0
    %1738 = vmatprep.subr.mxu0 0.0
    %1739 = vmatpush1.msra.mxu0 0.0
    %1740 = vmatprep.subr.mxu0 0.0
    %1741 = vmatpush1.msra.mxu0 0.0
    %1742 = vmatprep.subr.mxu0 0.0
    %1743 = vmatpush1.msra.mxu0 0.0
    %1744 = vmatprep.subr.mxu0 0.0
    %1745 = vmatpush1.msra.mxu0 0.0
    %1746 = vmatprep.subr.mxu0 0.0
    %1747 = vmatpush1.msra.mxu0 0.0
    %1748 = vmatprep.subr.mxu0 0.0
    %1749 = vmatpush1.msra.mxu0 0.0
    %1750 = vmatprep.subr.mxu0 0.0
    %1751 = vmatpush1.msra.mxu0 0.0
    %1752 = vmatprep.subr.mxu0 0.0
    %1753 = vmatpush1.msra.mxu0 0.0
    %1754 = vmatprep.subr.mxu0 0.0
    %1755 = vmatpush1.msra.mxu0 0.0
    %1756 = vmatprep.subr.mxu0 0.0
    %1757 = vmatpush1.msra.mxu0 0.0
    %1758 = vmatprep.subr.mxu0 0.0
    %1759 = vmatpush1.msra.mxu0 0.0
    %1760 = vmatprep.subr.mxu0 0.0
    %1761 = vmatpush1.msra.mxu0 0.0
    %1762 = vmatprep.subr.mxu0 0.0
    %1763 = vmatpush1.msra.mxu0 0.0
    %1764 = vmatprep.subr.mxu0 0.0
    %1765 = vmatpush1.msra.mxu0 0.0
    %1766 = vmatprep.subr.mxu0 0.0
    %1767 = vmatpush1.msra.mxu0 0.0
    %1768 = vmatprep.subr.mxu0 0.0
    %1769 = vmatpush1.msra.mxu0 0.0
    %1770 = vmatprep.subr.mxu0 0.0
    %1771 = vmatpush1.msra.mxu0 0.0
    %1772 = vmatprep.subr.mxu0 0.0
    %1773 = vmatpush1.msra.mxu0 0.0
    %1774 = vmatprep.subr.mxu0 0.0
    %1775 = vmatpush1.msra.mxu0 0.0
    %1776 = vmatprep.subr.mxu0 0.0
    %1777 = vmatpush1.msra.mxu0 0.0
    %1778 = vmatprep.subr.mxu0 0.0
    %1779 = vmatpush1.msra.mxu0 0.0
    %1780 = vmatprep.mubr.f32.mxu0 0.0
    %1781 = vmatmul.mubr.f32.gmra.mrb[0].mxu0 %v1711
    %v1782 = vpop.f32.mrb[0].mxu0
    %v1783 = vadd.f32 0.0, %v1782
    %v1784 = vpop.f32.mrb[0].mxu0
    %1785 = vmatprep.mubr.f32.mxu0 0.0
    %1786 = vmatmul.mubr.f32.gmra.mrb[0].mxu0 %v1714
    %v1787 = vpop.f32.mrb[0].mxu0
    %v1788 = vadd.f32 0.0, %v1787
    %v1789 = vpop.f32.mrb[0].mxu0
    %1790 = vdwg.mxu0
    %1791 = vrot.lane.b32.xlu0 %v1581, 120
    %v1792 = vpop.permute.xlu0 %1791
    %1793 = vrot.lane.b32.xlu0 %v1586, 120
    %v1794 = vpop.permute.xlu0 %1793
    %1795 = vrot.lane.b32.xlu0 %v1581, 88
    %v1796 = vpop.permute.xlu0 %1795
    %1797 = vrot.lane.b32.xlu0 %v1586, 88
    %v1798 = vpop.permute.xlu0 %1797
    %v1799 = vsel %vm263, %v1792, 0
    %v1801 = vsel %vm263, %v1794, 0
    %v1803 = vsel %vm263, %v1796, 0
    %v1805 = vsel %vm263, %v1798, 0
    %1807 = vmatprep.subr.mxu0 0.0
    %1808 = vmatpush1.xpose.msra.mxu0 %v1803
    %1809 = vmatprep.subr.mxu0 0.0
    %1810 = vmatpush1.xpose.msra.mxu0 %v1805
    %1811 = vmatprep.subr.mxu0 0.0
    %1812 = vmatpush1.xpose.msra.mxu0 0.0
    %1813 = vmatprep.subr.mxu0 0.0
    %1814 = vmatpush1.xpose.msra.mxu0 0.0
    %1815 = vmatprep.subr.mxu0 0.0
    %1816 = vmatpush1.xpose.msra.mxu0 0.0
    %1817 = vmatprep.subr.mxu0 0.0
    %1818 = vmatpush1.xpose.msra.mxu0 0.0
    %1819 = vmatprep.subr.mxu0 0.0
    %1820 = vmatpush1.xpose.msra.mxu0 0.0
    %1821 = vmatprep.subr.mxu0 0.0
    %1822 = vmatpush1.xpose.msra.mxu0 0.0
    %1823 = vmatprep.subr.mxu0 0.0
    %1824 = vmatpush1.xpose.msra.mxu0 0.0
    %1825 = vmatprep.subr.mxu0 0.0
    %1826 = vmatpush1.xpose.msra.mxu0 0.0
    %1827 = vmatprep.subr.mxu0 0.0
    %1828 = vmatpush1.xpose.msra.mxu0 0.0
    %1829 = vmatprep.subr.mxu0 0.0
    %1830 = vmatpush1.xpose.msra.mxu0 0.0
    %1831 = vmatprep.subr.mxu0 0.0
    %1832 = vmatpush1.xpose.msra.mxu0 0.0
    %1833 = vmatprep.subr.mxu0 0.0
    %1834 = vmatpush1.xpose.msra.mxu0 0.0
    %1835 = vmatprep.subr.mxu0 0.0
    %1836 = vmatpush1.xpose.msra.mxu0 0.0
    %1837 = vmatprep.subr.mxu0 0.0
    %1838 = vmatpush1.xpose.msra.mxu0 0.0
    %1839 = vmatprep.subr.mxu0 0.0
    %1840 = vmatpush1.xpose.msra.mxu0 0.0
    %1841 = vmatprep.subr.mxu0 0.0
    %1842 = vmatpush1.xpose.msra.mxu0 0.0
    %1843 = vmatprep.subr.mxu0 0.0
    %1844 = vmatpush1.xpose.msra.mxu0 0.0
    %1845 = vmatprep.subr.mxu0 0.0
    %1846 = vmatpush1.xpose.msra.mxu0 0.0
    %1847 = vmatprep.subr.mxu0 0.0
    %1848 = vmatpush1.xpose.msra.mxu0 0.0
    %1849 = vmatprep.subr.mxu0 0.0
    %1850 = vmatpush1.xpose.msra.mxu0 0.0
    %1851 = vmatprep.subr.mxu0 0.0
    %1852 = vmatpush1.xpose.msra.mxu0 0.0
    %1853 = vmatprep.subr.mxu0 0.0
    %1854 = vmatpush1.xpose.msra.mxu0 0.0
    %1855 = vmatprep.subr.mxu0 0.0
    %1856 = vmatpush1.xpose.msra.mxu0 0.0
    %1857 = vmatprep.subr.mxu0 0.0
    %1858 = vmatpush1.xpose.msra.mxu0 0.0
    %1859 = vmatprep.subr.mxu0 0.0
    %1860 = vmatpush1.xpose.msra.mxu0 0.0
    %1861 = vmatprep.subr.mxu0 0.0
    %1862 = vmatpush1.xpose.msra.mxu0 0.0
    %1863 = vmatprep.subr.mxu0 0.0
    %1864 = vmatpush1.xpose.msra.mxu0 0.0
    %1865 = vmatprep.subr.mxu0 0.0
    %1866 = vmatpush1.xpose.msra.mxu0 0.0
    %1867 = vmatprep.subr.mxu0 0.0
    %1868 = vmatpush1.xpose.msra.mxu0 0.0
    %1869 = vmatprep.subr.mxu0 0.0
    %1870 = vmatpush1.xpose.msra.mxu0 0.0
    %1871 = vmatprep.mubr.f32.mxu0 0.0
    %1872 = vmatmul.mubr.f32.gmra.mrb[0].mxu0 %v1799
    %v1873 = vpop.f32.mrb[0].mxu0
    %v1874 = vadd.f32 0.0, %v1873
    %v1875 = vpop.f32.mrb[0].mxu0
    %1876 = vmatprep.mubr.f32.mxu0 0.0
    %1877 = vmatmul.mubr.f32.gmra.mrb[0].mxu0 %v1801
    %v1878 = vpop.f32.mrb[0].mxu0
    %v1879 = vadd.f32 0.0, %v1878
    %v1880 = vpop.f32.mrb[0].mxu0
    %1881 = vdwg.mxu0
    %v1882 = vmul.f32 %v1874, 0.35355338
    %v1883 = vmul.f32 %v1879, 0.35355338
    %v1884 = vadd.f32 %v1882, %v163
    %v1885 = vadd.f32 %v1883, %v164
    %v1886 = vsel %vm351, %v1884, -inf
    %1887 = vmax.xlane.f32.xlu0 %v1886
    %v1888 = vpop.xlane.xlu0 %1887
    %v1889 = vsel %vm351, %v1885, -inf
    %1890 = vmax.xlane.f32.xlu0 %v1889
    %v1891 = vpop.xlane.xlu0 %1890
    %v1892 = vsub.f32 %v1884, %v1888
    %v1893 = vsub.f32 %v1885, %v1891
    %v1894 = vmul.f32 %v1892, 1.442695
    %v1895 = vpow.pop %v1894
    %v1896 = vmul.f32 %v1893, 1.442695
    %v1897 = vpow.pop %v1896
    %v1898 = vsel %vm351, %v1895, 0.0
    %1899 = vadd.xlane.f32.xlu0 %v1898
    %v1900 = vpop.xlane.xlu0 %1899
    %v1901 = vsel %vm351, %v1897, 0.0
    %1902 = vadd.xlane.f32.xlu0 %v1901
    %v1903 = vpop.xlane.xlu0 %1902
    %v1904 = vrcp.pop %v1900
    %v1905 = vrcp.pop %v1903
    %v1906 = vmul.f32 %v1895, %v1904
    %v1907 = vmul.f32 %v1897, %v1905
    %1908 = vrot.lane.b32.xlu0 %v1581, 56
    %v1909 = vpop.permute.xlu0 %1908
    %1910 = vrot.lane.b32.xlu0 %v1586, 56
    %v1911 = vpop.permute.xlu0 %1910
    %v1915 = vsel %vm351, %v1906, 0
    %v1918 = vsel %vm351, %v1907, 0
    %1920 = vmatprep.subr.mxu0 0.0
    %1921 = vmatpush1.msra.mxu0 %v1909
    %1922 = vmatprep.subr.mxu0 0.0
    %1923 = vmatpush1.msra.mxu0 %v1911
    %1924 = vmatprep.subr.mxu0 0.0
    %1925 = vmatpush1.msra.mxu0 0.0
    %1926 = vmatprep.subr.mxu0 0.0
    %1927 = vmatpush1.msra.mxu0 0.0
    %1928 = vmatprep.subr.mxu0 0.0
    %1929 = vmatpush1.msra.mxu0 0.0
    %1930 = vmatprep.subr.mxu0 0.0
    %1931 = vmatpush1.msra.mxu0 0.0
    %1932 = vmatprep.subr.mxu0 0.0
    %1933 = vmatpush1.msra.mxu0 0.0
    %1934 = vmatprep.subr.mxu0 0.0
    %1935 = vmatpush1.msra.mxu0 0.0
    %1936 = vmatprep.subr.mxu0 0.0
    %1937 = vmatpush1.msra.mxu0 0.0
    %1938 = vmatprep.subr.mxu0 0.0
    %1939 = vmatpush1.msra.mxu0 0.0
    %1940 = vmatprep.subr.mxu0 0.0
    %1941 = vmatpush1.msra.mxu0 0.0
    %1942 = vmatprep.subr.mxu0 0.0
    %1943 = vmatpush1.msra.mxu0 0.0
    %1944 = vmatprep.subr.mxu0 0.0
    %1945 = vmatpush1.msra.mxu0 0.0
    %1946 = vmatprep.subr.mxu0 0.0
    %1947 = vmatpush1.msra.mxu0 0.0
    %1948 = vmatprep.subr.mxu0 0.0
    %1949 = vmatpush1.msra.mxu0 0.0
    %1950 = vmatprep.subr.mxu0 0.0
    %1951 = vmatpush1.msra.mxu0 0.0
    %1952 = vmatprep.subr.mxu0 0.0
    %1953 = vmatpush1.msra.mxu0 0.0
    %1954 = vmatprep.subr.mxu0 0.0
    %1955 = vmatpush1.msra.mxu0 0.0
    %1956 = vmatprep.subr.mxu0 0.0
    %1957 = vmatpush1.msra.mxu0 0.0
    %1958 = vmatprep.subr.mxu0 0.0
    %1959 = vmatpush1.msra.mxu0 0.0
    %1960 = vmatprep.subr.mxu0 0.0
    %1961 = vmatpush1.msra.mxu0 0.0
    %1962 = vmatprep.subr.mxu0 0.0
    %1963 = vmatpush1.msra.mxu0 0.0
    %1964 = vmatprep.subr.mxu0 0.0
    %1965 = vmatpush1.msra.mxu0 0.0
    %1966 = vmatprep.subr.mxu0 0.0
    %1967 = vmatpush1.msra.mxu0 0.0
    %1968 = vmatprep.subr.mxu0 0.0
    %1969 = vmatpush1.msra.mxu0 0.0
    %1970 = vmatprep.subr.mxu0 0.0
    %1971 = vmatpush1.msra.mxu0 0.0
    %1972 = vmatprep.subr.mxu0 0.0
    %1973 = vmatpush1.msra.mxu0 0.0
    %1974 = vmatprep.subr.mxu0 0.0
    %1975 = vmatpush1.msra.mxu0 0.0
    %1976 = vmatprep.subr.mxu0 0.0
    %1977 = vmatpush1.msra.mxu0 0.0
    %1978 = vmatprep.subr.mxu0 0.0
    %1979 = vmatpush1.msra.mxu0 0.0
    %1980 = vmatprep.subr.mxu0 0.0
    %1981 = vmatpush1.msra.mxu0 0.0
    %1982 = vmatprep.subr.mxu0 0.0
    %1983 = vmatpush1.msra.mxu0 0.0
    %1984 = vmatprep.mubr.f32.mxu0 0.0
    %1985 = vmatmul.mubr.f32.gmra.mrb[0].mxu0 %v1915
    %v1986 = vpop.f32.mrb[0].mxu0
    %v1987 = vadd.f32 0.0, %v1986
    %v1988 = vpop.f32.mrb[0].mxu0
    %1989 = vmatprep.mubr.f32.mxu0 0.0
    %1990 = vmatmul.mubr.f32.gmra.mrb[0].mxu0 %v1918
    %v1991 = vpop.f32.mrb[0].mxu0
    %v1992 = vadd.f32 0.0, %v1991
    %v1993 = vpop.f32.mrb[0].mxu0
    %1994 = vdwg.mxu0
    %1995 = vrot.lane.b32.xlu0 %v1581, 112
    %v1996 = vpop.permute.xlu0 %1995
    %1997 = vrot.lane.b32.xlu0 %v1586, 112
    %v1998 = vpop.permute.xlu0 %1997
    %1999 = vrot.lane.b32.xlu0 %v1581, 80
    %v2000 = vpop.permute.xlu0 %1999
    %2001 = vrot.lane.b32.xlu0 %v1586, 80
    %v2002 = vpop.permute.xlu0 %2001
    %v2003 = vsel %vm263, %v1996, 0
    %v2005 = vsel %vm263, %v1998, 0
    %v2007 = vsel %vm263, %v2000, 0
    %v2009 = vsel %vm263, %v2002, 0
    %2011 = vmatprep.subr.mxu0 0.0
    %2012 = vmatpush1.xpose.msra.mxu0 %v2007
    %2013 = vmatprep.subr.mxu0 0.0
    %2014 = vmatpush1.xpose.msra.mxu0 %v2009
    %2015 = vmatprep.subr.mxu0 0.0
    %2016 = vmatpush1.xpose.msra.mxu0 0.0
    %2017 = vmatprep.subr.mxu0 0.0
    %2018 = vmatpush1.xpose.msra.mxu0 0.0
    %2019 = vmatprep.subr.mxu0 0.0
    %2020 = vmatpush1.xpose.msra.mxu0 0.0
    %2021 = vmatprep.subr.mxu0 0.0
    %2022 = vmatpush1.xpose.msra.mxu0 0.0
    %2023 = vmatprep.subr.mxu0 0.0
    %2024 = vmatpush1.xpose.msra.mxu0 0.0
    %2025 = vmatprep.subr.mxu0 0.0
    %2026 = vmatpush1.xpose.msra.mxu0 0.0
    %2027 = vmatprep.subr.mxu0 0.0
    %2028 = vmatpush1.xpose.msra.mxu0 0.0
    %2029 = vmatprep.subr.mxu0 0.0
    %2030 = vmatpush1.xpose.msra.mxu0 0.0
    %2031 = vmatprep.subr.mxu0 0.0
    %2032 = vmatpush1.xpose.msra.mxu0 0.0
    %2033 = vmatprep.subr.mxu0 0.0
    %2034 = vmatpush1.xpose.msra.mxu0 0.0
    %2035 = vmatprep.subr.mxu0 0.0
    %2036 = vmatpush1.xpose.msra.mxu0 0.0
    %2037 = vmatprep.subr.mxu0 0.0
    %2038 = vmatpush1.xpose.msra.mxu0 0.0
    %2039 = vmatprep.subr.mxu0 0.0
    %2040 = vmatpush1.xpose.msra.mxu0 0.0
    %2041 = vmatprep.subr.mxu0 0.0
    %2042 = vmatpush1.xpose.msra.mxu0 0.0
    %2043 = vmatprep.subr.mxu0 0.0
    %2044 = vmatpush1.xpose.msra.mxu0 0.0
    %2045 = vmatprep.subr.mxu0 0.0
    %2046 = vmatpush1.xpose.msra.mxu0 0.0
    %2047 = vmatprep.subr.mxu0 0.0
    %2048 = vmatpush1.xpose.msra.mxu0 0.0
    %2049 = vmatprep.subr.mxu0 0.0
    %2050 = vmatpush1.xpose.msra.mxu0 0.0
    %2051 = vmatprep.subr.mxu0 0.0
    %2052 = vmatpush1.xpose.msra.mxu0 0.0
    %2053 = vmatprep.subr.mxu0 0.0
    %2054 = vmatpush1.xpose.msra.mxu0 0.0
    %2055 = vmatprep.subr.mxu0 0.0
    %2056 = vmatpush1.xpose.msra.mxu0 0.0
    %2057 = vmatprep.subr.mxu0 0.0
    %2058 = vmatpush1.xpose.msra.mxu0 0.0
    %2059 = vmatprep.subr.mxu0 0.0
    %2060 = vmatpush1.xpose.msra.mxu0 0.0
    %2061 = vmatprep.subr.mxu0 0.0
    %2062 = vmatpush1.xpose.msra.mxu0 0.0
    %2063 = vmatprep.subr.mxu0 0.0
    %2064 = vmatpush1.xpose.msra.mxu0 0.0
    %2065 = vmatprep.subr.mxu0 0.0
    %2066 = vmatpush1.xpose.msra.mxu0 0.0
    %2067 = vmatprep.subr.mxu0 0.0
    %2068 = vmatpush1.xpose.msra.mxu0 0.0
    %2069 = vmatprep.subr.mxu0 0.0
    %2070 = vmatpush1.xpose.msra.mxu0 0.0
    %2071 = vmatprep.subr.mxu0 0.0
    %2072 = vmatpush1.xpose.msra.mxu0 0.0
    %2073 = vmatprep.subr.mxu0 0.0
    %2074 = vmatpush1.xpose.msra.mxu0 0.0
    %2075 = vmatprep.mubr.f32.mxu0 0.0
    %2076 = vmatmul.mubr.f32.gmra.mrb[0].mxu0 %v2003
    %v2077 = vpop.f32.mrb[0].mxu0
    %v2078 = vadd.f32 0.0, %v2077
    %v2079 = vpop.f32.mrb[0].mxu0
    %2080 = vmatprep.mubr.f32.mxu0 0.0
    %2081 = vmatmul.mubr.f32.gmra.mrb[0].mxu0 %v2005
    %v2082 = vpop.f32.mrb[0].mxu0
    %v2083 = vadd.f32 0.0, %v2082
    %v2084 = vpop.f32.mrb[0].mxu0
    %2085 = vdwg.mxu0
    %v2086 = vmul.f32 %v2078, 0.35355338
    %v2087 = vmul.f32 %v2083, 0.35355338
    %v2088 = vadd.f32 %v2086, %v163
    %v2089 = vadd.f32 %v2087, %v164
    %v2090 = vsel %vm351, %v2088, -inf
    %2091 = vmax.xlane.f32.xlu0 %v2090
    %v2092 = vpop.xlane.xlu0 %2091
    %v2093 = vsel %vm351, %v2089, -inf
    %2094 = vmax.xlane.f32.xlu0 %v2093
    %v2095 = vpop.xlane.xlu0 %2094
    %v2096 = vsub.f32 %v2088, %v2092
    %v2097 = vsub.f32 %v2089, %v2095
    %v2098 = vmul.f32 %v2096, 1.442695
    %v2099 = vpow.pop %v2098
    %v2100 = vmul.f32 %v2097, 1.442695
    %v2101 = vpow.pop %v2100
    %v2102 = vsel %vm351, %v2099, 0.0
    %2103 = vadd.xlane.f32.xlu0 %v2102
    %v2104 = vpop.xlane.xlu0 %2103
    %v2105 = vsel %vm351, %v2101, 0.0
    %2106 = vadd.xlane.f32.xlu0 %v2105
    %v2107 = vpop.xlane.xlu0 %2106
    %v2108 = vrcp.pop %v2104
    %v2109 = vrcp.pop %v2107
    %v2110 = vmul.f32 %v2099, %v2108
    %v2111 = vmul.f32 %v2101, %v2109
    %2112 = vrot.lane.b32.xlu0 %v1581, 48
    %v2113 = vpop.permute.xlu0 %2112
    %2114 = vrot.lane.b32.xlu0 %v1586, 48
    %v2115 = vpop.permute.xlu0 %2114
    %v2119 = vsel %vm351, %v2110, 0
    %v2122 = vsel %vm351, %v2111, 0
    %2124 = vmatprep.subr.mxu0 0.0
    %2125 = vmatpush1.msra.mxu0 %v2113
    %2126 = vmatprep.subr.mxu0 0.0
    %2127 = vmatpush1.msra.mxu0 %v2115
    %2128 = vmatprep.subr.mxu0 0.0
    %2129 = vmatpush1.msra.mxu0 0.0
    %2130 = vmatprep.subr.mxu0 0.0
    %2131 = vmatpush1.msra.mxu0 0.0
    %2132 = vmatprep.subr.mxu0 0.0
    %2133 = vmatpush1.msra.mxu0 0.0
    %2134 = vmatprep.subr.mxu0 0.0
    %2135 = vmatpush1.msra.mxu0 0.0
    %2136 = vmatprep.subr.mxu0 0.0
    %2137 = vmatpush1.msra.mxu0 0.0
    %2138 = vmatprep.subr.mxu0 0.0
    %2139 = vmatpush1.msra.mxu0 0.0
    %2140 = vmatprep.subr.mxu0 0.0
    %2141 = vmatpush1.msra.mxu0 0.0
    %2142 = vmatprep.subr.mxu0 0.0
    %2143 = vmatpush1.msra.mxu0 0.0
    %2144 = vmatprep.subr.mxu0 0.0
    %2145 = vmatpush1.msra.mxu0 0.0
    %2146 = vmatprep.subr.mxu0 0.0
    %2147 = vmatpush1.msra.mxu0 0.0
    %2148 = vmatprep.subr.mxu0 0.0
    %2149 = vmatpush1.msra.mxu0 0.0
    %2150 = vmatprep.subr.mxu0 0.0
    %2151 = vmatpush1.msra.mxu0 0.0
    %2152 = vmatprep.subr.mxu0 0.0
    %2153 = vmatpush1.msra.mxu0 0.0
    %2154 = vmatprep.subr.mxu0 0.0
    %2155 = vmatpush1.msra.mxu0 0.0
    %2156 = vmatprep.subr.mxu0 0.0
    %2157 = vmatpush1.msra.mxu0 0.0
    %2158 = vmatprep.subr.mxu0 0.0
    %2159 = vmatpush1.msra.mxu0 0.0
    %2160 = vmatprep.subr.mxu0 0.0
    %2161 = vmatpush1.msra.mxu0 0.0
    %2162 = vmatprep.subr.mxu0 0.0
    %2163 = vmatpush1.msra.mxu0 0.0
    %2164 = vmatprep.subr.mxu0 0.0
    %2165 = vmatpush1.msra.mxu0 0.0
    %2166 = vmatprep.subr.mxu0 0.0
    %2167 = vmatpush1.msra.mxu0 0.0
    %2168 = vmatprep.subr.mxu0 0.0
    %2169 = vmatpush1.msra.mxu0 0.0
    %2170 = vmatprep.subr.mxu0 0.0
    %2171 = vmatpush1.msra.mxu0 0.0
    %2172 = vmatprep.subr.mxu0 0.0
    %2173 = vmatpush1.msra.mxu0 0.0
    %2174 = vmatprep.subr.mxu0 0.0
    %2175 = vmatpush1.msra.mxu0 0.0
    %2176 = vmatprep.subr.mxu0 0.0
    %2177 = vmatpush1.msra.mxu0 0.0
    %2178 = vmatprep.subr.mxu0 0.0
    %2179 = vmatpush1.msra.mxu0 0.0
    %2180 = vmatprep.subr.mxu0 0.0
    %2181 = vmatpush1.msra.mxu0 0.0
    %2182 = vmatprep.subr.mxu0 0.0
    %2183 = vmatpush1.msra.mxu0 0.0
    %2184 = vmatprep.subr.mxu0 0.0
    %2185 = vmatpush1.msra.mxu0 0.0
    %2186 = vmatprep.subr.mxu0 0.0
    %2187 = vmatpush1.msra.mxu0 0.0
    %2188 = vmatprep.mubr.f32.mxu0 0.0
    %2189 = vmatmul.mubr.f32.gmra.mrb[0].mxu0 %v2119
    %v2190 = vpop.f32.mrb[0].mxu0
    %v2191 = vadd.f32 0.0, %v2190
    %v2192 = vpop.f32.mrb[0].mxu0
    %2193 = vmatprep.mubr.f32.mxu0 0.0
    %2194 = vmatmul.mubr.f32.gmra.mrb[0].mxu0 %v2122
    %v2195 = vpop.f32.mrb[0].mxu0
    %v2196 = vadd.f32 0.0, %v2195
    %v2197 = vpop.f32.mrb[0].mxu0
    %2198 = vdwg.mxu0
    %2199 = vrot.lane.b32.xlu0 %v1581, 104
    %v2200 = vpop.permute.xlu0 %2199
    %2201 = vrot.lane.b32.xlu0 %v1586, 104
    %v2202 = vpop.permute.xlu0 %2201
    %2203 = vrot.lane.b32.xlu0 %v1581, 72
    %v2204 = vpop.permute.xlu0 %2203
    %2205 = vrot.lane.b32.xlu0 %v1586, 72
    %v2206 = vpop.permute.xlu0 %2205
    %v2207 = vsel %vm263, %v2200, 0
    %v2209 = vsel %vm263, %v2202, 0
    %v2211 = vsel %vm263, %v2204, 0
    %v2213 = vsel %vm263, %v2206, 0
    %2215 = vmatprep.subr.mxu0 0.0
    %2216 = vmatpush1.xpose.msra.mxu0 %v2211
    %2217 = vmatprep.subr.mxu0 0.0
    %2218 = vmatpush1.xpose.msra.mxu0 %v2213
    %2219 = vmatprep.subr.mxu0 0.0
    %2220 = vmatpush1.xpose.msra.mxu0 0.0
    %2221 = vmatprep.subr.mxu0 0.0
    %2222 = vmatpush1.xpose.msra.mxu0 0.0
    %2223 = vmatprep.subr.mxu0 0.0
    %2224 = vmatpush1.xpose.msra.mxu0 0.0
    %2225 = vmatprep.subr.mxu0 0.0
    %2226 = vmatpush1.xpose.msra.mxu0 0.0
    %2227 = vmatprep.subr.mxu0 0.0
    %2228 = vmatpush1.xpose.msra.mxu0 0.0
    %2229 = vmatprep.subr.mxu0 0.0
    %2230 = vmatpush1.xpose.msra.mxu0 0.0
    %2231 = vmatprep.subr.mxu0 0.0
    %2232 = vmatpush1.xpose.msra.mxu0 0.0
    %2233 = vmatprep.subr.mxu0 0.0
    %2234 = vmatpush1.xpose.msra.mxu0 0.0
    %2235 = vmatprep.subr.mxu0 0.0
    %2236 = vmatpush1.xpose.msra.mxu0 0.0
    %2237 = vmatprep.subr.mxu0 0.0
    %2238 = vmatpush1.xpose.msra.mxu0 0.0
    %2239 = vmatprep.subr.mxu0 0.0
    %2240 = vmatpush1.xpose.msra.mxu0 0.0
    %2241 = vmatprep.subr.mxu0 0.0
    %2242 = vmatpush1.xpose.msra.mxu0 0.0
    %2243 = vmatprep.subr.mxu0 0.0
    %2244 = vmatpush1.xpose.msra.mxu0 0.0
    %2245 = vmatprep.subr.mxu0 0.0
    %2246 = vmatpush1.xpose.msra.mxu0 0.0
    %2247 = vmatprep.subr.mxu0 0.0
    %2248 = vmatpush1.xpose.msra.mxu0 0.0
    %2249 = vmatprep.subr.mxu0 0.0
    %2250 = vmatpush1.xpose.msra.mxu0 0.0
    %2251 = vmatprep.subr.mxu0 0.0
    %2252 = vmatpush1.xpose.msra.mxu0 0.0
    %2253 = vmatprep.subr.mxu0 0.0
    %2254 = vmatpush1.xpose.msra.mxu0 0.0
    %2255 = vmatprep.subr.mxu0 0.0
    %2256 = vmatpush1.xpose.msra.mxu0 0.0
    %2257 = vmatprep.subr.mxu0 0.0
    %2258 = vmatpush1.xpose.msra.mxu0 0.0
    %2259 = vmatprep.subr.mxu0 0.0
    %2260 = vmatpush1.xpose.msra.mxu0 0.0
    %2261 = vmatprep.subr.mxu0 0.0
    %2262 = vmatpush1.xpose.msra.mxu0 0.0
    %2263 = vmatprep.subr.mxu0 0.0
    %2264 = vmatpush1.xpose.msra.mxu0 0.0
    %2265 = vmatprep.subr.mxu0 0.0
    %2266 = vmatpush1.xpose.msra.mxu0 0.0
    %2267 = vmatprep.subr.mxu0 0.0
    %2268 = vmatpush1.xpose.msra.mxu0 0.0
    %2269 = vmatprep.subr.mxu0 0.0
    %2270 = vmatpush1.xpose.msra.mxu0 0.0
    %2271 = vmatprep.subr.mxu0 0.0
    %2272 = vmatpush1.xpose.msra.mxu0 0.0
    %2273 = vmatprep.subr.mxu0 0.0
    %2274 = vmatpush1.xpose.msra.mxu0 0.0
    %2275 = vmatprep.subr.mxu0 0.0
    %2276 = vmatpush1.xpose.msra.mxu0 0.0
    %2277 = vmatprep.subr.mxu0 0.0
    %2278 = vmatpush1.xpose.msra.mxu0 0.0
    %2279 = vmatprep.mubr.f32.mxu0 0.0
    %2280 = vmatmul.mubr.f32.gmra.mrb[0].mxu0 %v2207
    %v2281 = vpop.f32.mrb[0].mxu0
    %v2282 = vadd.f32 0.0, %v2281
    %v2283 = vpop.f32.mrb[0].mxu0
    %2284 = vmatprep.mubr.f32.mxu0 0.0
    %2285 = vmatmul.mubr.f32.gmra.mrb[0].mxu0 %v2209
    %v2286 = vpop.f32.mrb[0].mxu0
    %v2287 = vadd.f32 0.0, %v2286
    %v2288 = vpop.f32.mrb[0].mxu0
    %2289 = vdwg.mxu0
    %v2290 = vmul.f32 %v2282, 0.35355338
    %v2291 = vmul.f32 %v2287, 0.35355338
    %v2292 = vadd.f32 %v2290, %v163
    %v2293 = vadd.f32 %v2291, %v164
    %v2294 = vsel %vm351, %v2292, -inf
    %2295 = vmax.xlane.f32.xlu0 %v2294
    %v2296 = vpop.xlane.xlu0 %2295
    %v2297 = vsel %vm351, %v2293, -inf
    %2298 = vmax.xlane.f32.xlu0 %v2297
    %v2299 = vpop.xlane.xlu0 %2298
    %v2300 = vsub.f32 %v2292, %v2296
    %v2301 = vsub.f32 %v2293, %v2299
    %v2302 = vmul.f32 %v2300, 1.442695
    %v2303 = vpow.pop %v2302
    %v2304 = vmul.f32 %v2301, 1.442695
    %v2305 = vpow.pop %v2304
    %v2306 = vsel %vm351, %v2303, 0.0
    %2307 = vadd.xlane.f32.xlu0 %v2306
    %v2308 = vpop.xlane.xlu0 %2307
    %v2309 = vsel %vm351, %v2305, 0.0
    %2310 = vadd.xlane.f32.xlu0 %v2309
    %v2311 = vpop.xlane.xlu0 %2310
    %v2312 = vrcp.pop %v2308
    %v2313 = vrcp.pop %v2311
    %v2314 = vmul.f32 %v2303, %v2312
    %v2315 = vmul.f32 %v2305, %v2313
    %2316 = vrot.lane.b32.xlu0 %v1581, 40
    %v2317 = vpop.permute.xlu0 %2316
    %2318 = vrot.lane.b32.xlu0 %v1586, 40
    %v2319 = vpop.permute.xlu0 %2318
    %v2323 = vsel %vm351, %v2314, 0
    %v2326 = vsel %vm351, %v2315, 0
    %2328 = vmatprep.subr.mxu0 0.0
    %2329 = vmatpush1.msra.mxu0 %v2317
    %2330 = vmatprep.subr.mxu0 0.0
    %2331 = vmatpush1.msra.mxu0 %v2319
    %2332 = vmatprep.subr.mxu0 0.0
    %2333 = vmatpush1.msra.mxu0 0.0
    %2334 = vmatprep.subr.mxu0 0.0
    %2335 = vmatpush1.msra.mxu0 0.0
    %2336 = vmatprep.subr.mxu0 0.0
    %2337 = vmatpush1.msra.mxu0 0.0
    %2338 = vmatprep.subr.mxu0 0.0
    %2339 = vmatpush1.msra.mxu0 0.0
    %2340 = vmatprep.subr.mxu0 0.0
    %2341 = vmatpush1.msra.mxu0 0.0
    %2342 = vmatprep.subr.mxu0 0.0
    %2343 = vmatpush1.msra.mxu0 0.0
    %2344 = vmatprep.subr.mxu0 0.0
    %2345 = vmatpush1.msra.mxu0 0.0
    %2346 = vmatprep.subr.mxu0 0.0
    %2347 = vmatpush1.msra.mxu0 0.0
    %2348 = vmatprep.subr.mxu0 0.0
    %2349 = vmatpush1.msra.mxu0 0.0
    %2350 = vmatprep.subr.mxu0 0.0
    %2351 = vmatpush1.msra.mxu0 0.0
    %2352 = vmatprep.subr.mxu0 0.0
    %2353 = vmatpush1.msra.mxu0 0.0
    %2354 = vmatprep.subr.mxu0 0.0
    %2355 = vmatpush1.msra.mxu0 0.0
    %2356 = vmatprep.subr.mxu0 0.0
    %2357 = vmatpush1.msra.mxu0 0.0
    %2358 = vmatprep.subr.mxu0 0.0
    %2359 = vmatpush1.msra.mxu0 0.0
    %2360 = vmatprep.subr.mxu0 0.0
    %2361 = vmatpush1.msra.mxu0 0.0
    %2362 = vmatprep.subr.mxu0 0.0
    %2363 = vmatpush1.msra.mxu0 0.0
    %2364 = vmatprep.subr.mxu0 0.0
    %2365 = vmatpush1.msra.mxu0 0.0
    %2366 = vmatprep.subr.mxu0 0.0
    %2367 = vmatpush1.msra.mxu0 0.0
    %2368 = vmatprep.subr.mxu0 0.0
    %2369 = vmatpush1.msra.mxu0 0.0
    %2370 = vmatprep.subr.mxu0 0.0
    %2371 = vmatpush1.msra.mxu0 0.0
    %2372 = vmatprep.subr.mxu0 0.0
    %2373 = vmatpush1.msra.mxu0 0.0
    %2374 = vmatprep.subr.mxu0 0.0
    %2375 = vmatpush1.msra.mxu0 0.0
    %2376 = vmatprep.subr.mxu0 0.0
    %2377 = vmatpush1.msra.mxu0 0.0
    %2378 = vmatprep.subr.mxu0 0.0
    %2379 = vmatpush1.msra.mxu0 0.0
    %2380 = vmatprep.subr.mxu0 0.0
    %2381 = vmatpush1.msra.mxu0 0.0
    %2382 = vmatprep.subr.mxu0 0.0
    %2383 = vmatpush1.msra.mxu0 0.0
    %2384 = vmatprep.subr.mxu0 0.0
    %2385 = vmatpush1.msra.mxu0 0.0
    %2386 = vmatprep.subr.mxu0 0.0
    %2387 = vmatpush1.msra.mxu0 0.0
    %2388 = vmatprep.subr.mxu0 0.0
    %2389 = vmatpush1.msra.mxu0 0.0
    %2390 = vmatprep.subr.mxu0 0.0
    %2391 = vmatpush1.msra.mxu0 0.0
    %2392 = vmatprep.mubr.f32.mxu0 0.0
    %2393 = vmatmul.mubr.f32.gmra.mrb[0].mxu0 %v2323
    %v2394 = vpop.f32.mrb[0].mxu0
    %v2395 = vadd.f32 0.0, %v2394
    %v2396 = vpop.f32.mrb[0].mxu0
    %2397 = vmatprep.mubr.f32.mxu0 0.0
    %2398 = vmatmul.mubr.f32.gmra.mrb[0].mxu0 %v2326
    %v2399 = vpop.f32.mrb[0].mxu0
    %v2400 = vadd.f32 0.0, %v2399
    %v2401 = vpop.f32.mrb[0].mxu0
    %2402 = vdwg.mxu0
    %2405 = vrot.lane.b32.xlu0 %v1987, 8
    %v2406 = vpop.permute.xlu0 %2405
    %2407 = vrot.lane.b32.xlu0 %v1992, 8
    %v2408 = vpop.permute.xlu0 %2407
    %2413 = vrot.lane.b32.xlu0 %v2191, 16
    %v2414 = vpop.permute.xlu0 %2413
    %2415 = vrot.lane.b32.xlu0 %v2196, 16
    %v2416 = vpop.permute.xlu0 %2415
    %2421 = vrot.lane.b32.xlu0 %v2395, 24
    %v2422 = vpop.permute.xlu0 %2421
    %2423 = vrot.lane.b32.xlu0 %v2400, 24
    %v2424 = vpop.permute.xlu0 %2423
    %v2427 = vsel %vm263, %v1783, %v2406
    %v2428 = vsel %vm263, %v1788, %v2408
    %v2429 = vsel %vm351, %v2427, %v2414
    %v2430 = vsel %vm351, %v2428, %v2416
    %v2431 = vsel %vm1101, %v2429, %v2422
    %v2432 = vsel %vm1101, %v2430, %v2424
    %s2433 = scalar_lea.vmem %s7, 32
    %v2434 = vld [vmem:[%s2433] sm:$0xff]
    %v2435 = vld [vmem:[%s2433 + $0x8] sm:$0xff]
    %v2436 = vld [vmem:[%s2433 + $0x10] sm:$0xff]
    %v2437 = vld [vmem:[%s2433 + $0x18] sm:$0xff]
    %s2438 = scalar_lea.vmem %s8, 1
    %v2439 = vld [vmem:[%s2438] sm:$0x1]
    %v2441 = vlaneseq
    %v2442 = vshrl.u32 %v2441, 7
    %v2443 = vsub.s32 0, %v2442
    %v2444 = vrot.slane %v2439, %v2443
    %v2447 = vsel %vm119, %v2431, 0
    %v2450 = vsel %vm119, %v2432, 0
    %2452 = vmatprep.subr.mxu0 0.0
    %2453 = vmatpush1.msra.mxu0 %v2434
    %2454 = vmatprep.subr.mxu0 0.0
    %2455 = vmatpush1.msra.mxu0 %v2435
    %2456 = vmatprep.subr.mxu0 0.0
    %2457 = vmatpush1.msra.mxu0 %v2436
    %2458 = vmatprep.subr.mxu0 0.0
    %2459 = vmatpush1.msra.mxu0 %v2437
    %2460 = vmatprep.subr.mxu0 0.0
    %2461 = vmatpush1.msra.mxu0 0.0
    %2462 = vmatprep.subr.mxu0 0.0
    %2463 = vmatpush1.msra.mxu0 0.0
    %2464 = vmatprep.subr.mxu0 0.0
    %2465 = vmatpush1.msra.mxu0 0.0
    %2466 = vmatprep.subr.mxu0 0.0
    %2467 = vmatpush1.msra.mxu0 0.0
    %2468 = vmatprep.subr.mxu0 0.0
    %2469 = vmatpush1.msra.mxu0 0.0
    %2470 = vmatprep.subr.mxu0 0.0
    %2471 = vmatpush1.msra.mxu0 0.0
    %2472 = vmatprep.subr.mxu0 0.0
    %2473 = vmatpush1.msra.mxu0 0.0
    %2474 = vmatprep.subr.mxu0 0.0
    %2475 = vmatpush1.msra.mxu0 0.0
    %2476 = vmatprep.subr.mxu0 0.0
    %2477 = vmatpush1.msra.mxu0 0.0
    %2478 = vmatprep.subr.mxu0 0.0
    %2479 = vmatpush1.msra.mxu0 0.0
    %2480 = vmatprep.subr.mxu0 0.0
    %2481 = vmatpush1.msra.mxu0 0.0
    %2482 = vmatprep.subr.mxu0 0.0
    %2483 = vmatpush1.msra.mxu0 0.0
    %2484 = vmatprep.subr.mxu0 0.0
    %2485 = vmatpush1.msra.mxu0 0.0
    %2486 = vmatprep.subr.mxu0 0.0
    %2487 = vmatpush1.msra.mxu0 0.0
    %2488 = vmatprep.subr.mxu0 0.0
    %2489 = vmatpush1.msra.mxu0 0.0
    %2490 = vmatprep.subr.mxu0 0.0
    %2491 = vmatpush1.msra.mxu0 0.0
    %2492 = vmatprep.subr.mxu0 0.0
    %2493 = vmatpush1.msra.mxu0 0.0
    %2494 = vmatprep.subr.mxu0 0.0
    %2495 = vmatpush1.msra.mxu0 0.0
    %2496 = vmatprep.subr.mxu0 0.0
    %2497 = vmatpush1.msra.mxu0 0.0
    %2498 = vmatprep.subr.mxu0 0.0
    %2499 = vmatpush1.msra.mxu0 0.0
    %2500 = vmatprep.subr.mxu0 0.0
    %2501 = vmatpush1.msra.mxu0 0.0
    %2502 = vmatprep.subr.mxu0 0.0
    %2503 = vmatpush1.msra.mxu0 0.0
    %2504 = vmatprep.subr.mxu0 0.0
    %2505 = vmatpush1.msra.mxu0 0.0
    %2506 = vmatprep.subr.mxu0 0.0
    %2507 = vmatpush1.msra.mxu0 0.0
    %2508 = vmatprep.subr.mxu0 0.0
    %2509 = vmatpush1.msra.mxu0 0.0
    %2510 = vmatprep.subr.mxu0 0.0
    %2511 = vmatpush1.msra.mxu0 0.0
    %2512 = vmatprep.subr.mxu0 0.0
    %2513 = vmatpush1.msra.mxu0 0.0
    %2514 = vmatprep.subr.mxu0 0.0
    %2515 = vmatpush1.msra.mxu0 0.0
    %2516 = vmatprep.mubr.f32.mxu0 0.0
    %2517 = vmatmul.mubr.f32.gmra.mrb[0].mxu0 %v2447
    %v2518 = vpop.f32.mrb[0].mxu0
    %v2519 = vadd.f32 %v2444, %v2518
    %v2520 = vpop.f32.mrb[0].mxu0
    %2521 = vmatprep.mubr.f32.mxu0 0.0
    %2522 = vmatmul.mubr.f32.gmra.mrb[0].mxu0 %v2450
    %v2523 = vpop.f32.mrb[0].mxu0
    %v2524 = vadd.f32 %v2444, %v2523
    %v2525 = vpop.f32.mrb[0].mxu0
    %2526 = vdwg.mxu0
    %v2527 = vadd.f32 %v1493, %v2519
    %v2528 = vadd.f32 %v1494, %v2524
    %s2529 = scalar_lea.vmem %s9, 1
    %v2530 = vld [vmem:[%s2529] sm:$0x1]
    %s2531 = scalar_lea.vmem %s10, 1
    %v2532 = vld [vmem:[%s2531] sm:$0x1]
    %v2533 = vsel %vm119, %v2527, 0.0
    %2534 = vadd.xlane.f32.xlu0 %v2533
    %v2535 = vpop.xlane.xlu0 %2534
    %v2536 = vsel %vm119, %v2528, 0.0
    %2537 = vadd.xlane.f32.xlu0 %v2536
    %v2538 = vpop.xlane.xlu0 %2537
    %v2539 = vmul.f32 %v2535, %v126
    %v2540 = vmul.f32 %v2538, %v126
    %v2541 = vsub.f32 %v2527, %v2539
    %v2542 = vsub.f32 %v2528, %v2540
    %v2543 = vmul.f32 %v2541, %v2541
    %v2544 = vmul.f32 %v2542, %v2542
    %v2545 = vsel %vm119, %v2543, 0.0
    %2546 = vadd.xlane.f32.xlu0 %v2545
    %v2547 = vpop.xlane.xlu0 %2546
    %v2548 = vsel %vm119, %v2544, 0.0
    %2549 = vadd.xlane.f32.xlu0 %v2548
    %v2550 = vpop.xlane.xlu0 %2549
    %v2551 = vmul.f32 %v2547, %v126
    %v2552 = vmul.f32 %v2550, %v126
    %v2553 = vadd.f32 %v2551, 1e-12
    %v2554 = vadd.f32 %v2552, 1e-12
    %v2555 = vrsqrt.pop %v2553
    %v2556 = vrsqrt.pop %v2554
    %v2557 = vmul.f32 %v2541, %v2555
    %v2558 = vmul.f32 %v2542, %v2556
    %v2560 = vlaneseq
    %v2561 = vshrl.u32 %v2560, 7
    %v2562 = vsub.s32 0, %v2561
    %v2563 = vrot.slane %v2530, %v2562
    %v2565 = vmul.f32 %v2557, %v2563
    %v2566 = vmul.f32 %v2558, %v2563
    %v2568 = vlaneseq
    %v2569 = vshrl.u32 %v2568, 7
    %v2570 = vsub.s32 0, %v2569
    %v2571 = vrot.slane %v2532, %v2570
    %v2573 = vadd.f32 %v2565, %v2571
    %v2574 = vadd.f32 %v2566, %v2571
    %s2575 = scalar_lea.vmem %s11, 32
    %v2576 = vld [vmem:[%s2575] sm:$0xff]
    %v2577 = vld [vmem:[%s2575 + $0x8] sm:$0xff]
    %v2578 = vld [vmem:[%s2575 + $0x10] sm:$0xff]
    %v2579 = vld [vmem:[%s2575 + $0x18] sm:$0xff]
    %s2580 = scalar_lea.vmem %s12, 1
    %v2581 = vld [vmem:[%s2580] sm:$0x1]
    %v2583 = vlaneseq
    %v2584 = vshrl.u32 %v2583, 7
    %v2585 = vsub.s32 0, %v2584
    %v2586 = vrot.slane %v2581, %v2585
    %v2589 = vsel %vm119, %v2573, 0
    %v2592 = vsel %vm119, %v2574, 0
    %2594 = vmatprep.subr.mxu0 0.0
    %2595 = vmatpush1.msra.mxu0 %v2576
    %2596 = vmatprep.subr.mxu0 0.0
    %2597 = vmatpush1.msra.mxu0 %v2577
    %2598 = vmatprep.subr.mxu0 0.0
    %2599 = vmatpush1.msra.mxu0 %v2578
    %2600 = vmatprep.subr.mxu0 0.0
    %2601 = vmatpush1.msra.mxu0 %v2579
    %2602 = vmatprep.subr.mxu0 0.0
    %2603 = vmatpush1.msra.mxu0 0.0
    %2604 = vmatprep.subr.mxu0 0.0
    %2605 = vmatpush1.msra.mxu0 0.0
    %2606 = vmatprep.subr.mxu0 0.0
    %2607 = vmatpush1.msra.mxu0 0.0
    %2608 = vmatprep.subr.mxu0 0.0
    %2609 = vmatpush1.msra.mxu0 0.0
    %2610 = vmatprep.subr.mxu0 0.0
    %2611 = vmatpush1.msra.mxu0 0.0
    %2612 = vmatprep.subr.mxu0 0.0
    %2613 = vmatpush1.msra.mxu0 0.0
    %2614 = vmatprep.subr.mxu0 0.0
    %2615 = vmatpush1.msra.mxu0 0.0
    %2616 = vmatprep.subr.mxu0 0.0
    %2617 = vmatpush1.msra.mxu0 0.0
    %2618 = vmatprep.subr.mxu0 0.0
    %2619 = vmatpush1.msra.mxu0 0.0
    %2620 = vmatprep.subr.mxu0 0.0
    %2621 = vmatpush1.msra.mxu0 0.0
    %2622 = vmatprep.subr.mxu0 0.0
    %2623 = vmatpush1.msra.mxu0 0.0
    %2624 = vmatprep.subr.mxu0 0.0
    %2625 = vmatpush1.msra.mxu0 0.0
    %2626 = vmatprep.subr.mxu0 0.0
    %2627 = vmatpush1.msra.mxu0 0.0
    %2628 = vmatprep.subr.mxu0 0.0
    %2629 = vmatpush1.msra.mxu0 0.0
    %2630 = vmatprep.subr.mxu0 0.0
    %2631 = vmatpush1.msra.mxu0 0.0
    %2632 = vmatprep.subr.mxu0 0.0
    %2633 = vmatpush1.msra.mxu0 0.0
    %2634 = vmatprep.subr.mxu0 0.0
    %2635 = vmatpush1.msra.mxu0 0.0
    %2636 = vmatprep.subr.mxu0 0.0
    %2637 = vmatpush1.msra.mxu0 0.0
    %2638 = vmatprep.subr.mxu0 0.0
    %2639 = vmatpush1.msra.mxu0 0.0
    %2640 = vmatprep.subr.mxu0 0.0
    %2641 = vmatpush1.msra.mxu0 0.0
    %2642 = vmatprep.subr.mxu0 0.0
    %2643 = vmatpush1.msra.mxu0 0.0
    %2644 = vmatprep.subr.mxu0 0.0
    %2645 = vmatpush1.msra.mxu0 0.0
    %2646 = vmatprep.subr.mxu0 0.0
    %2647 = vmatpush1.msra.mxu0 0.0
    %2648 = vmatprep.subr.mxu0 0.0
    %2649 = vmatpush1.msra.mxu0 0.0
    %2650 = vmatprep.subr.mxu0 0.0
    %2651 = vmatpush1.msra.mxu0 0.0
    %2652 = vmatprep.subr.mxu0 0.0
    %2653 = vmatpush1.msra.mxu0 0.0
    %2654 = vmatprep.subr.mxu0 0.0
    %2655 = vmatpush1.msra.mxu0 0.0
    %2656 = vmatprep.subr.mxu0 0.0
    %2657 = vmatpush1.msra.mxu0 0.0
    %2658 = vmatprep.mubr.f32.mxu0 0.0
    %2659 = vmatmul.mubr.f32.gmra.mrb[0].mxu0 %v2589
    %v2660 = vpop.f32.mrb[0].mxu0
    %v2661 = vadd.f32 %v2586, %v2660
    %v2662 = vpop.f32.mrb[0].mxu0
    %2663 = vmatprep.mubr.f32.mxu0 0.0
    %2664 = vmatmul.mubr.f32.gmra.mrb[0].mxu0 %v2592
    %v2665 = vpop.f32.mrb[0].mxu0
    %v2666 = vadd.f32 %v2586, %v2665
    %v2667 = vpop.f32.mrb[0].mxu0
    %2668 = vdwg.mxu0
    %v2669 = vmul.f32 %v2661, 0.5
    %v2670 = vmul.f32 %v2666, 0.5
    %v2671 = vmul.f32 %v2661, 0.044715
    %v2672 = vmul.f32 %v2666, 0.044715
    %v2673 = vmul.f32 %v2671, %v2661
    %v2674 = vmul.f32 %v2672, %v2666
    %v2675 = vmul.f32 %v2673, %v2661
    %v2676 = vmul.f32 %v2674, %v2666
    %v2677 = vadd.f32 %v2661, %v2675
    %v2678 = vadd.f32 %v2666, %v2676
    %v2679 = vmul.f32 %v2677, 0.7978846
    %v2680 = vmul.f32 %v2678, 0.7978846
    %v2681 = vtanh.pop %v2679
    %v2682 = vtanh.pop %v2680
    %v2683 = vadd.f32 %v2681, 1.0
    %v2684 = vadd.f32 %v2682, 1.0
    %v2685 = vmul.f32 %v2669, %v2683
    %v2686 = vmul.f32 %v2670, %v2684
    %s2687 = scalar_lea.vmem %s13, 64
    %v2688 = vld [vmem:[%s2687] sm:$0xff]
    %v2689 = vld [vmem:[%s2687 + $0x8] sm:$0xff]
    %v2690 = vld [vmem:[%s2687 + $0x10] sm:$0xff]
    %v2691 = vld [vmem:[%s2687 + $0x18] sm:$0xff]
    %v2692 = vld [vmem:[%s2687 + $0x20] sm:$0xff]
    %v2693 = vld [vmem:[%s2687 + $0x28] sm:$0xff]
    %v2694 = vld [vmem:[%s2687 + $0x30] sm:$0xff]
    %v2695 = vld [vmem:[%s2687 + $0x38] sm:$0xff]
    %s2696 = scalar_lea.vmem %s14, 1
    %v2697 = vld [vmem:[%s2696] sm:$0x1]
    %v2699 = vlaneseq
    %v2700 = vshrl.u32 %v2699, 7
    %v2701 = vsub.s32 0, %v2700
    %v2702 = vrot.slane %v2697, %v2701
    %v2705 = vsel %vm1367, %v2685, 0
    %v2708 = vsel %vm1367, %v2686, 0
    %2710 = vmatprep.subr.mxu0 0.0
    %2711 = vmatpush1.msra.mxu0 %v2688
    %2712 = vmatprep.subr.mxu0 0.0
    %2713 = vmatpush1.msra.mxu0 %v2689
    %2714 = vmatprep.subr.mxu0 0.0
    %2715 = vmatpush1.msra.mxu0 %v2690
    %2716 = vmatprep.subr.mxu0 0.0
    %2717 = vmatpush1.msra.mxu0 %v2691
    %2718 = vmatprep.subr.mxu0 0.0
    %2719 = vmatpush1.msra.mxu0 %v2692
    %2720 = vmatprep.subr.mxu0 0.0
    %2721 = vmatpush1.msra.mxu0 %v2693
    %2722 = vmatprep.subr.mxu0 0.0
    %2723 = vmatpush1.msra.mxu0 %v2694
    %2724 = vmatprep.subr.mxu0 0.0
    %2725 = vmatpush1.msra.mxu0 %v2695
    %2726 = vmatprep.subr.mxu0 0.0
    %2727 = vmatpush1.msra.mxu0 0.0
    %2728 = vmatprep.subr.mxu0 0.0
    %2729 = vmatpush1.msra.mxu0 0.0
    %2730 = vmatprep.subr.mxu0 0.0
    %2731 = vmatpush1.msra.mxu0 0.0
    %2732 = vmatprep.subr.mxu0 0.0
    %2733 = vmatpush1.msra.mxu0 0.0
    %2734 = vmatprep.subr.mxu0 0.0
    %2735 = vmatpush1.msra.mxu0 0.0
    %2736 = vmatprep.subr.mxu0 0.0
    %2737 = vmatpush1.msra.mxu0 0.0
    %2738 = vmatprep.subr.mxu0 0.0
    %2739 = vmatpush1.msra.mxu0 0.0
    %2740 = vmatprep.subr.mxu0 0.0
    %2741 = vmatpush1.msra.mxu0 0.0
    %2742 = vmatprep.subr.mxu0 0.0
    %2743 = vmatpush1.msra.mxu0 0.0
    %2744 = vmatprep.subr.mxu0 0.0
    %2745 = vmatpush1.msra.mxu0 0.0
    %2746 = vmatprep.subr.mxu0 0.0
    %2747 = vmatpush1.msra.mxu0 0.0
    %2748 = vmatprep.subr.mxu0 0.0
    %2749 = vmatpush1.msra.mxu0 0.0
    %2750 = vmatprep.subr.mxu0 0.0
    %2751 = vmatpush1.msra.mxu0 0.0
    %2752 = vmatprep.subr.mxu0 0.0
    %2753 = vmatpush1.msra.mxu0 0.0
    %2754 = vmatprep.subr.mxu0 0.0
    %2755 = vmatpush1.msra.mxu0 0.0
    %2756 = vmatprep.subr.mxu0 0.0
    %2757 = vmatpush1.msra.mxu0 0.0
    %2758 = vmatprep.subr.mxu0 0.0
    %2759 = vmatpush1.msra.mxu0 0.0
    %2760 = vmatprep.subr.mxu0 0.0
    %2761 = vmatpush1.msra.mxu0 0.0
    %2762 = vmatprep.subr.mxu0 0.0
    %2763 = vmatpush1.msra.mxu0 0.0
    %2764 = vmatprep.subr.mxu0 0.0
    %2765 = vmatpush1.msra.mxu0 0.0
    %2766 = vmatprep.subr.mxu0 0.0
    %2767 = vmatpush1.msra.mxu0 0.0
    %2768 = vmatprep.subr.mxu0 0.0
    %2769 = vmatpush1.msra.mxu0 0.0
    %2770 = vmatprep.subr.mxu0 0.0
    %2771 = vmatpush1.msra.mxu0 0.0
    %2772 = vmatprep.subr.mxu0 0.0
    %2773 = vmatpush1.msra.mxu0 0.0
    %2774 = vmatprep.mubr.f32.mxu0 0.0
    %2775 = vmatmul.mubr.f32.gmra.mrb[0].mxu0 %v2705
    %v2776 = vpop.f32.mrb[0].mxu0
    %v2777 = vadd.f32 %v2702, %v2776
    %v2778 = vpop.f32.mrb[0].mxu0
    %2779 = vmatprep.mubr.f32.mxu0 0.0
    %2780 = vmatmul.mubr.f32.gmra.mrb[0].mxu0 %v2708
    %v2781 = vpop.f32.mrb[0].mxu0
    %v2782 = vadd.f32 %v2702, %v2781
    %v2783 = vpop.f32.mrb[0].mxu0
    %2784 = vdwg.mxu0
    %v2785 = vadd.f32 %v2573, %v2777
    %v2786 = vadd.f32 %v2574, %v2782
    %s2787 = scalar_lea.vmem %s15, 1
    %v2788 = vld [vmem:[%s2787] sm:$0x1]
    %s2789 = scalar_lea.vmem %s16, 1
    %v2790 = vld [vmem:[%s2789] sm:$0x1]
    %v2791 = vsel %vm119, %v2785, 0.0
    %2792 = vadd.xlane.f32.xlu0 %v2791
    %v2793 = vpop.xlane.xlu0 %2792
    %v2794 = vsel %vm119, %v2786, 0.0
    %2795 = vadd.xlane.f32.xlu0 %v2794
    %v2796 = vpop.xlane.xlu0 %2795
    %v2797 = vmul.f32 %v2793, %v126
    %v2798 = vmul.f32 %v2796, %v126
    %v2799 = vsub.f32 %v2785, %v2797
    %v2800 = vsub.f32 %v2786, %v2798
    %v2801 = vmul.f32 %v2799, %v2799
    %v2802 = vmul.f32 %v2800, %v2800
    %v2803 = vsel %vm119, %v2801, 0.0
    %2804 = vadd.xlane.f32.xlu0 %v2803
    %v2805 = vpop.xlane.xlu0 %2804
    %v2806 = vsel %vm119, %v2802, 0.0
    %2807 = vadd.xlane.f32.xlu0 %v2806
    %v2808 = vpop.xlane.xlu0 %2807
    %v2809 = vmul.f32 %v2805, %v126
    %v2810 = vmul.f32 %v2808, %v126
    %v2811 = vadd.f32 %v2809, 1e-12
    %v2812 = vadd.f32 %v2810, 1e-12
    %v2813 = vrsqrt.pop %v2811
    %v2814 = vrsqrt.pop %v2812
    %v2815 = vmul.f32 %v2799, %v2813
    %v2816 = vmul.f32 %v2800, %v2814
    %v2818 = vlaneseq
    %v2819 = vshrl.u32 %v2818, 7
    %v2820 = vsub.s32 0, %v2819
    %v2821 = vrot.slane %v2788, %v2820
    %v2823 = vmul.f32 %v2815, %v2821
    %v2824 = vmul.f32 %v2816, %v2821
    %v2826 = vlaneseq
    %v2827 = vshrl.u32 %v2826, 7
    %v2828 = vsub.s32 0, %v2827
    %v2829 = vrot.slane %v2790, %v2828
    %v2831 = vadd.f32 %v2823, %v2829
    %v2832 = vadd.f32 %v2824, %v2829
    %v2833 = vld [vmem:[%s2] sm:$0x3]
    %v2835 = vsel %vm351, %v2833, 0
    %2837 = vmatprep.subr.mxu0 0.0
    %2838 = vmatpush1.msra.mxu0 %v2831
    %2839 = vmatprep.subr.mxu0 0.0
    %2840 = vmatpush1.msra.mxu0 %v2832
    %2841 = vmatprep.subr.mxu0 0.0
    %2842 = vmatpush1.msra.mxu0 0.0
    %2843 = vmatprep.subr.mxu0 0.0
    %2844 = vmatpush1.msra.mxu0 0.0
    %2845 = vmatprep.subr.mxu0 0.0
    %2846 = vmatpush1.msra.mxu0 0.0
    %2847 = vmatprep.subr.mxu0 0.0
    %2848 = vmatpush1.msra.mxu0 0.0
    %2849 = vmatprep.subr.mxu0 0.0
    %2850 = vmatpush1.msra.mxu0 0.0
    %2851 = vmatprep.subr.mxu0 0.0
    %2852 = vmatpush1.msra.mxu0 0.0
    %2853 = vmatprep.subr.mxu0 0.0
    %2854 = vmatpush1.msra.mxu0 0.0
    %2855 = vmatprep.subr.mxu0 0.0
    %2856 = vmatpush1.msra.mxu0 0.0
    %2857 = vmatprep.subr.mxu0 0.0
    %2858 = vmatpush1.msra.mxu0 0.0
    %2859 = vmatprep.subr.mxu0 0.0
    %2860 = vmatpush1.msra.mxu0 0.0
    %2861 = vmatprep.subr.mxu0 0.0
    %2862 = vmatpush1.msra.mxu0 0.0
    %2863 = vmatprep.subr.mxu0 0.0
    %2864 = vmatpush1.msra.mxu0 0.0
    %2865 = vmatprep.subr.mxu0 0.0
    %2866 = vmatpush1.msra.mxu0 0.0
    %2867 = vmatprep.subr.mxu0 0.0
    %2868 = vmatpush1.msra.mxu0 0.0
    %2869 = vmatprep.subr.mxu0 0.0
    %2870 = vmatpush1.msra.mxu0 0.0
    %2871 = vmatprep.subr.mxu0 0.0
    %2872 = vmatpush1.msra.mxu0 0.0
    %2873 = vmatprep.subr.mxu0 0.0
    %2874 = vmatpush1.msra.mxu0 0.0
    %2875 = vmatprep.subr.mxu0 0.0
    %2876 = vmatpush1.msra.mxu0 0.0
    %2877 = vmatprep.subr.mxu0 0.0
    %2878 = vmatpush1.msra.mxu0 0.0
    %2879 = vmatprep.subr.mxu0 0.0
    %2880 = vmatpush1.msra.mxu0 0.0
    %2881 = vmatprep.subr.mxu0 0.0
    %2882 = vmatpush1.msra.mxu0 0.0
    %2883 = vmatprep.subr.mxu0 0.0
    %2884 = vmatpush1.msra.mxu0 0.0
    %2885 = vmatprep.subr.mxu0 0.0
    %2886 = vmatpush1.msra.mxu0 0.0
    %2887 = vmatprep.subr.mxu0 0.0
    %2888 = vmatpush1.msra.mxu0 0.0
    %2889 = vmatprep.subr.mxu0 0.0
    %2890 = vmatpush1.msra.mxu0 0.0
    %2891 = vmatprep.subr.mxu0 0.0
    %2892 = vmatpush1.msra.mxu0 0.0
    %2893 = vmatprep.subr.mxu0 0.0
    %2894 = vmatpush1.msra.mxu0 0.0
    %2895 = vmatprep.subr.mxu0 0.0
    %2896 = vmatpush1.msra.mxu0 0.0
    %2897 = vmatprep.subr.mxu0 0.0
    %2898 = vmatpush1.msra.mxu0 0.0
    %2899 = vmatprep.subr.mxu0 0.0
    %2900 = vmatpush1.msra.mxu0 0.0
    %2901 = vmatprep.mubr.f32.mxu0 0.0
    %2902 = vmatmul.mubr.f32.gmra.mrb[0].mxu0 %v2835
    %v2903 = vpop.f32.mrb[0].mxu0
    %v2904 = vadd.f32 0.0, %v2903
    %v2905 = vpop.f32.mrb[0].mxu0
    %2906 = vdwg.mxu0
    %vm2907 = vcmask 123904
    %v2908 = vsel %vm2907, %v2833, 0.0
    %2909 = vadd.xlane.f32.xlu0 %v2908
    %v2910 = vpop.xlane.xlu0 %2909
    %v2911 = vrcp.pop %v2910
    %v2912 = vmul.f32 %v2904, %v2911
    %v2913 = vld [vmem:[%s17] sm:$0x1]
    %v2915 = vlaneseq
    %v2916 = vshrl.u32 %v2915, 7
    %v2917 = vsub.s32 0, %v2916
    %v2918 = vrot.slane %v2913, %v2917
    %v2920 = vmul.f32 %v2912, %v2918
    %vm2921 = vcmask 254976
    %v2922 = vsel %vm2921, %v2920, 0.0
    %2923 = vadd.xlane.f32.xlu0 %v2922
    %v2924 = vpop.xlane.xlu0 %2923
    %v2925 = vld [vmem:[#allocation2] sm:$0x1]
    %v2927 = vlaneseq
    %v2928 = vshrl.u32 %v2927, 7
    %v2929 = vsub.s32 0, %v2928
    %v2930 = vrot.slane %v2925, %v2929
    %v2932 = vadd.f32 %v2924, %v2930
    %v2933 = vsub.f32 0.0, %v2932
    %v2934 = vmul.f32 %v2933, 1.442695
    %v2935 = vpow.pop %v2934
    %v2936 = vadd.f32 %v2935, 1.0
    %v2937 = vrcp.pop %v2936
    %v2938 = vmul.f32 1.0, %v2937
    %vm2939 = vcmask 1024
    %2940 = vst.msk [vmem:[%s19] sm:$0x3] %vm2939, %v2938
    // Predicated region
    $region94: #{tpu_custom_call.1} parent=1 // pred_check
      _
    $region95: #{tpu_custom_call.1} parent=1 // pred_check_branch
      %2942 = sbr.rel (0) target = $region97
    $region96: #{tpu_custom_call.1} parent=1 // pred_region
      _
    $region97: #{tpu_custom_call.1} parent=1 // pred_fallthru
      _
    // Predicated region
    $region98: #{tpu_custom_call.1} parent=1 // pred_check
      _
    $region99: #{tpu_custom_call.1} parent=1 // pred_check_branch
      %2944 = sbr.rel (0) target = $region101
    $region100: #{tpu_custom_call.1} parent=1 // pred_region
      _
    $region101: #{tpu_custom_call.1} parent=1 // pred_fallthru
      _
    %2945 = vsyncpa [#allocation4], 1
    %2946 = vsyncpa [#allocation6], 1
    %2947 = vsyncpa [#allocation9], 1

</llo_original>
